<compile_context>
chip_gen: v7x
topology: tpu7x:2x2x1
jax: 0.10.0
libtpu: 0.0.40
codegen_flags: <defaults>
</compile_context>

<pallas_src>
import math
import jax
import jax.numpy as jnp
from jax import lax
from jax.experimental import pallas as pl
from jax.experimental.pallas import tpu as pltpu

# ----------------------------- configuration (small shapes) -----------------------------
B = 2              # batch
T = 16             # temporal length of video feature sequence
C_IN = 2048        # Conv1d input channels (hard-coded in the module)
HIDDEN = 64        # transformer.d_model
NUM_GROUPS = 32    # GroupNorm(32, hidden)
NUM_QUERIES = 8
NUM_CLASSES = 20
QUERY_DIM = 2
NUM_DEC_LAYERS = 3
GN_EPS = 1e-5
LANE = 128         # lane-dense output width
N_ROWS = NUM_DEC_LAYERS * B * NUM_QUERIES   # 48 head rows, order (layer, batch, query)


# ----------------------------- helpers (plain JAX glue) -----------------------------
def inverse_sigmoid(x, eps=1e-3):
    x = jnp.clip(x, 0.0, 1.0)
    x1 = jnp.maximum(x, eps)
    x2 = jnp.maximum(1.0 - x, eps)
    return jnp.log(x1 / x2)


def sine_position_embedding(mask, hidden_dim, temperature=10000.0):
    # mask: (B, T) bool, True on padded positions.  Returns (B, T, hidden_dim).
    not_mask = (~mask).astype(jnp.float32)
    embed = jnp.cumsum(not_mask, axis=1)
    embed = embed / (embed[:, -1:] + 1e-6) * (2.0 * math.pi)
    dim_t = jnp.arange(hidden_dim, dtype=jnp.float32)
    dim_t = temperature ** (2.0 * jnp.floor(dim_t / 2.0) / hidden_dim)
    pos = embed[:, :, None] / dim_t                              # (B, T, H)
    pos_sin = jnp.sin(pos[:, :, 0::2])
    pos_cos = jnp.cos(pos[:, :, 1::2])
    pos = jnp.stack([pos_sin, pos_cos], axis=3).reshape(mask.shape[0], mask.shape[1], hidden_dim)
    return pos


# ----------------------------- the fused kernel -----------------------------
_DN_LAST = (((1,), (1,)), ((), ()))   # contract last axes of both operands (x @ y.T without XLU)


def _softmax(z):
    z = z - jnp.max(z, axis=-1, keepdims=True)
    e = jnp.exp(z)
    return e * pl.reciprocal(jnp.sum(e, axis=-1, keepdims=True), approx=True)


def _inverse_sigmoid_k(x, eps=1e-3):
    x = jnp.clip(x, 0.0, 1.0)
    x1 = jnp.maximum(x, eps)
    x2 = jnp.maximum(1.0 - x, eps)
    return jnp.log(x1) - jnp.log(x2)


def fused_kernel(src_ref, wproj_ref, bproj_ref, gamma_ref, beta_ref, gmat_ref, pos_ref,
                 refp_ref, wq_ref, wc_ref, bc_ref, w1_ref, b1_ref, w2_ref, b2_ref,
                 w3_ref, b3_ref,
                 logits_ref, coord_ref, qw_ref, kw_ref, cw_ref):
    # ---- 1) input_proj (Conv1d k=1): bf16 MXU matmul, f32 accumulation ----
    y = jnp.dot(src_ref[...], wproj_ref[...],
                preferred_element_type=jnp.float32) + bproj_ref[...]          # (B*T, H) f32

    gamma = gamma_ref[...]
    beta = beta_ref[...]
    gmat = gmat_ref[...]
    pos = pos_ref[...]
    scale = 1.0 / math.sqrt(HIDDEN)

    # ---- batch-independent query path (computed once, hoisted out of the batch loop) ----
    refp = refp_ref[...]                                                      # (Q, 128) padded
    q0 = jnp.dot(refp, wq_ref[...], preferred_element_type=jnp.float32)       # (Q, H)
    qw_ref[...] = _softmax(
        lax.dot_general(q0, q0, _DN_LAST, preferred_element_type=jnp.float32) * scale)

    hs_per_layer_batch = [[None] * B for _ in range(NUM_DEC_LAYERS)]

    for b in range(B):                                     # B=2, fully unrolled at trace time
        # ---- GroupNorm(32, H) per sample, f32 math ----
        yb = y[b * T:(b + 1) * T, :]                                          # (T, H)
        m = jnp.mean(yb, axis=0, keepdims=True)                               # (1, H)
        s = jnp.mean(yb * yb, axis=0, keepdims=True)                          # (1, H)
        gm = jnp.dot(m, gmat, preferred_element_type=jnp.float32)             # per-channel group mean
        gs = jnp.dot(s, gmat, preferred_element_type=jnp.float32)             # per-channel group E[x^2]
        var = gs - gm * gm
        yn = (yb - gm) * jax.lax.rsqrt(var + GN_EPS)
        mem = yn * gamma + beta + pos[b * T:(b + 1) * T, :]                   # (T, H)

        # ---- 2) decoder stand-in (deterministic cross-attention) ----
        kw_ref[b] = _softmax(
            lax.dot_general(mem, mem, _DN_LAST, preferred_element_type=jnp.float32) * scale)

        q = q0
        attn = None
        for l in range(NUM_DEC_LAYERS):
            attn = _softmax(
                lax.dot_general(q, mem, _DN_LAST, preferred_element_type=jnp.float32) * scale)  # (Q, T)
            h = jnp.dot(attn, mem, preferred_element_type=jnp.float32)        # (Q, H)
            hs_per_layer_batch[l][b] = h
            q = h
        cw_ref[b] = attn

    # assemble hs rows in (layer, batch, query) order -> (L*B*Q, H)
    hs_all = jnp.concatenate(
        [hs_per_layer_batch[l][b] for l in range(NUM_DEC_LAYERS) for b in range(B)], axis=0)

    # ---- 3) detection head, lane-dense (rows, 128) outputs via lane-padded weights ----
    logits_ref[...] = jnp.dot(hs_all, wc_ref[...],
                              preferred_element_type=jnp.float32) + bc_ref[...]

    h1 = jnp.maximum(jnp.dot(hs_all, w1_ref[...], preferred_element_type=jnp.float32)
                     + b1_ref[...], 0.0)
    h2 = jnp.maximum(jnp.dot(h1, w2_ref[...], preferred_element_type=jnp.float32)
                     + b2_ref[...], 0.0)
    seg = jnp.dot(h2, w3_ref[...], preferred_element_type=jnp.float32) + b3_ref[...]  # (rows, 128)

    # tmp[..., :query_dim] += reference_before_sigmoid ; outputs_coord = tmp.sigmoid()
    # reference = sigmoid(refpoints); padded lanes are 0 -> inverse_sigmoid(sigmoid(0)) == 0.
    refbs = _inverse_sigmoid_k(jax.nn.sigmoid(refp))                          # (Q, 128)
    refbs_rows = jnp.concatenate([refbs] * (NUM_DEC_LAYERS * B), axis=0)      # (rows, 128)
    coord_ref[...] = jax.nn.sigmoid(seg + refbs_rows)


def fused_forward(src2d, pos2d, p):
    f2 = lambda i: (0, 0)
    f3 = lambda i: (0, 0, 0)
    cost = pl.CostEstimate(flops=11_200_000, transcendentals=12_000, bytes_accessed=560_000)
    return pl.pallas_call(
        fused_kernel,
        out_shape=(
            jax.ShapeDtypeStruct((N_ROWS, LANE), jnp.float32),                 # logits (padded lanes)
            jax.ShapeDtypeStruct((N_ROWS, LANE), jnp.float32),                 # coords (padded lanes)
            jax.ShapeDtypeStruct((NUM_QUERIES, NUM_QUERIES), jnp.float32),     # Q_weights (batch-indep)
            jax.ShapeDtypeStruct((B, T, T), jnp.float32),                      # K_weights
            jax.ShapeDtypeStruct((B, NUM_QUERIES, T), jnp.float32),            # C_weights
        ),
        grid=(1,),
        in_specs=[
            pl.BlockSpec((B * T, C_IN), f2),        # src  (bf16)
            pl.BlockSpec((C_IN, HIDDEN), f2),       # w_proj (bf16)
            pl.BlockSpec((1, HIDDEN), f2),          # b_proj
            pl.BlockSpec((1, HIDDEN), f2),          # gamma
            pl.BlockSpec((1, HIDDEN), f2),          # beta
            pl.BlockSpec((HIDDEN, HIDDEN), f2),     # group-averaging matrix
            pl.BlockSpec((B * T, HIDDEN), f2),      # positional embedding
            pl.BlockSpec((NUM_QUERIES, LANE), f2),  # refpoints (lane-padded)
            pl.BlockSpec((LANE, HIDDEN), f2),       # wq (row-padded)
            pl.BlockSpec((HIDDEN, LANE), f2),       # wc (lane-padded)
            pl.BlockSpec((1, LANE), f2),            # bc (lane-padded)
            pl.BlockSpec((HIDDEN, HIDDEN), f2),     # w1
            pl.BlockSpec((1, HIDDEN), f2),          # b1
            pl.BlockSpec((HIDDEN, HIDDEN), f2),     # w2
            pl.BlockSpec((1, HIDDEN), f2),          # b2
            pl.BlockSpec((HIDDEN, LANE), f2),       # w3 (lane-padded)
            pl.BlockSpec((1, LANE), f2),            # b3 (lane-padded)
        ],
        out_specs=(
            pl.BlockSpec((N_ROWS, LANE), f2),
            pl.BlockSpec((N_ROWS, LANE), f2),
            pl.BlockSpec((NUM_QUERIES, NUM_QUERIES), f2),
            pl.BlockSpec((B, T, T), f3),
            pl.BlockSpec((B, NUM_QUERIES, T), f3),
        ),
        compiler_params=pltpu.CompilerParams(
            dimension_semantics=("arbitrary",),
            vmem_limit_bytes=32 * 1024 * 1024),
        cost_estimate=cost,
    )(src2d, p["w_proj"], p["b_proj"], p["gamma"], p["beta"], p["gmat"], pos2d,
      p["refpoints_pad"], p["wq_pad"], p["wc_pad"], p["bc_pad"],
      p["w1"], p["b1"], p["w2"], p["b2"], p["w3_pad"], p["b3_pad"])


# ----------------------------- deterministic parameter init -----------------------------
def init_params(key):
    ks = jax.random.split(key, 8)

    def linear(k, n_in, n_out):
        lim = 1.0 / math.sqrt(n_in)
        kw, kb = jax.random.split(k)
        w = jax.random.uniform(kw, (n_in, n_out), minval=-lim, maxval=lim, dtype=jnp.float32)
        b = jax.random.uniform(kb, (1, n_out), minval=-lim, maxval=lim, dtype=jnp.float32)
        return w, b

    # input_proj: xavier_uniform conv weight, zero bias; GroupNorm affine defaults.
    bound = math.sqrt(6.0 / (C_IN + HIDDEN))
    w_proj = jax.random.uniform(ks[0], (C_IN, HIDDEN), minval=-bound, maxval=bound,
                                dtype=jnp.float32).astype(jnp.bfloat16)       # bf16 for MXU
    b_proj = jnp.zeros((1, HIDDEN), jnp.float32)
    gamma = jnp.ones((1, HIDDEN), jnp.float32)
    beta = jnp.zeros((1, HIDDEN), jnp.float32)

    # group-averaging matrix for GroupNorm statistics (lane-friendly (H, H) matmul)
    gsize = HIDDEN // NUM_GROUPS
    gid = jnp.arange(HIDDEN) // gsize
    gmat = (gid[:, None] == gid[None, :]).astype(jnp.float32) / float(gsize)

    # class_embed: bias = -log((1-p)/p) with p=0.01; lane-pad to 128 for dense stores.
    wc, _ = linear(ks[1], HIDDEN, NUM_CLASSES)
    bias_value = -math.log((1.0 - 0.01) / 0.01)
    wc_pad = jnp.zeros((HIDDEN, LANE), jnp.float32).at[:, :NUM_CLASSES].set(wc)
    bc_pad = jnp.zeros((1, LANE), jnp.float32).at[:, :NUM_CLASSES].set(bias_value)

    # segment_embed MLP(hidden, hidden, 2, 3); last layer weight/bias constant 0 (lane-padded).
    w1, b1 = linear(ks[2], HIDDEN, HIDDEN)
    w2, b2 = linear(ks[3], HIDDEN, HIDDEN)
    w3_pad = jnp.zeros((HIDDEN, LANE), jnp.float32)
    b3_pad = jnp.zeros((1, LANE), jnp.float32)

    # refpoint_embed: Embedding(Q, 2), col 0 <- inverse_sigmoid(uniform(0,1)); lane-padded.
    refpoints = jax.random.normal(ks[4], (NUM_QUERIES, QUERY_DIM), jnp.float32)
    col0 = jax.random.uniform(ks[5], (NUM_QUERIES, 1), dtype=jnp.float32)
    refpoints = refpoints.at[:, :1].set(inverse_sigmoid(col0))
    refpoints_pad = jnp.zeros((NUM_QUERIES, LANE), jnp.float32).at[:, :QUERY_DIM].set(refpoints)

    # stand-in transformer query projection (refpoint -> hidden), row-padded to 128.
    wq = jax.random.normal(ks[6], (QUERY_DIM, HIDDEN), jnp.float32) / math.sqrt(QUERY_DIM)
    wq_pad = jnp.zeros((LANE, HIDDEN), jnp.float32).at[:QUERY_DIM, :].set(wq)

    return dict(w_proj=w_proj, b_proj=b_proj, gamma=gamma, beta=beta, gmat=gmat,
                wc_pad=wc_pad, bc_pad=bc_pad, w1=w1, b1=b1, w2=w2, b2=b2,
                w3_pad=w3_pad, b3_pad=b3_pad,
                refpoints_pad=refpoints_pad, wq_pad=wq_pad)


# ----------------------------- full forward pass -----------------------------
def dabdetr_forward(params, samples, queries=None):
    tensors, mask = samples                                      # (B, 2048, T) NCW, (B, T) bool
    pos = sine_position_embedding(mask, HIDDEN)                  # (B, T, H)
    pos2d = pos.reshape(B * T, HIDDEN)

    # Conv1d NCW -> channels-last rows, cast to bf16 before the transpose (cheaper copy).
    src2d = jnp.transpose(tensors.astype(jnp.bfloat16), (0, 2, 1)).reshape(B * T, C_IN)

    query_embed = None                                           # queries is None in this path

    logits_pad, coord_pad, qw, K_weights, C_weights = fused_forward(src2d, pos2d, params)

    outputs_class = logits_pad[:, :NUM_CLASSES].reshape(NUM_DEC_LAYERS, B, NUM_QUERIES, NUM_CLASSES)
    outputs_coord = coord_pad[:, :QUERY_DIM].reshape(NUM_DEC_LAYERS, B, NUM_QUERIES, QUERY_DIM)
    Q_weights = jnp.broadcast_to(qw[None], (B, NUM_QUERIES, NUM_QUERIES))   # batch-independent stand-in

    out = {
        "pred_logits": outputs_class[-1],
        "pred_segments": outputs_coord[-1],
        "Q_weights": Q_weights,
        "K_weights": K_weights,
        "C_weights": C_weights,
        "queries": query_embed,
        "aux_outputs": [{"pred_logits": a, "pred_segments": b}
                        for a, b in zip(outputs_class[:-1], outputs_coord[:-1])],
    }
    return out


# ----------------------------- main -----------------------------
if __name__ == "__main__":
    key = jax.random.PRNGKey(0)
    k_params, k_data = jax.random.split(key)

    params = init_params(k_params)
    tensors = jax.random.normal(k_data, (B, C_IN, T), jnp.float32)   # NCW like PyTorch Conv1d
    mask = jnp.zeros((B, T), dtype=jnp.bool_)                        # no padding

    out = dabdetr_forward(params, (tensors, mask))
    jax.block_until_ready(out["pred_logits"])
    jax.block_until_ready(out["pred_segments"])
    jax.block_until_ready(out["C_weights"])

    assert out["pred_logits"].shape == (B, NUM_QUERIES, NUM_CLASSES)
    assert out["pred_segments"].shape == (B, NUM_QUERIES, QUERY_DIM)
    assert out["Q_weights"].shape == (B, NUM_QUERIES, NUM_QUERIES)
    assert out["K_weights"].shape == (B, T, T)
    assert out["C_weights"].shape == (B, NUM_QUERIES, T)
    assert len(out["aux_outputs"]) == NUM_DEC_LAYERS - 1
    assert bool(jnp.all(jnp.isfinite(out["pred_logits"])))
    assert bool(jnp.all((out["pred_segments"] >= 0.0) & (out["pred_segments"] <= 1.0)))
    print("KERNEL_OK")
</pallas_src>

<mosaic_0001>
module attributes {stable_mosaic.version = 11 : i64} {
  func.func @fused_kernel(%arg0: i32, %arg1: memref<32x2048xbf16, #tpu.memory_space<vmem>>, %arg2: memref<2048x64xbf16, #tpu.memory_space<vmem>>, %arg3: memref<1x64xf32, #tpu.memory_space<vmem>>, %arg4: memref<1x64xf32, #tpu.memory_space<vmem>>, %arg5: memref<1x64xf32, #tpu.memory_space<vmem>>, %arg6: memref<64x64xf32, #tpu.memory_space<vmem>>, %arg7: memref<32x64xf32, #tpu.memory_space<vmem>>, %arg8: memref<8x128xf32, #tpu.memory_space<vmem>>, %arg9: memref<128x64xf32, #tpu.memory_space<vmem>>, %arg10: memref<64x128xf32, #tpu.memory_space<vmem>>, %arg11: memref<1x128xf32, #tpu.memory_space<vmem>>, %arg12: memref<64x64xf32, #tpu.memory_space<vmem>>, %arg13: memref<1x64xf32, #tpu.memory_space<vmem>>, %arg14: memref<64x64xf32, #tpu.memory_space<vmem>>, %arg15: memref<1x64xf32, #tpu.memory_space<vmem>>, %arg16: memref<64x128xf32, #tpu.memory_space<vmem>>, %arg17: memref<1x128xf32, #tpu.memory_space<vmem>>, %arg18: memref<48x128xf32, #tpu.memory_space<vmem>>, %arg19: memref<48x128xf32, #tpu.memory_space<vmem>>, %arg20: memref<8x8xf32, #tpu.memory_space<vmem>>, %arg21: memref<2x16x16xf32, #tpu.memory_space<vmem>>, %arg22: memref<2x8x16xf32, #tpu.memory_space<vmem>>) attributes {dimension_semantics = [#tpu.dimension_semantics<arbitrary>], iteration_bounds = array<i64: 1>, scalar_prefetch = 0 : i64, scratch_operands = 0 : i64, tpu.core_type = #tpu.core_type<tc>, window_params = [{pipeline_mode = #tpu.pipeline_mode<synchronous>, transform_indices = @transform_0, window_bounds = array<i64: 32, 2048>}, {pipeline_mode = #tpu.pipeline_mode<synchronous>, transform_indices = @transform_1, window_bounds = array<i64: 2048, 64>}, {pipeline_mode = #tpu.pipeline_mode<synchronous>, transform_indices = @transform_2, window_bounds = array<i64: 1, 64>}, {pipeline_mode = #tpu.pipeline_mode<synchronous>, transform_indices = @transform_3, window_bounds = array<i64: 1, 64>}, {pipeline_mode = #tpu.pipeline_mode<synchronous>, transform_indices = @transform_4, window_bounds = array<i64: 1, 64>}, {pipeline_mode = #tpu.pipeline_mode<synchronous>, transform_indices = @transform_5, window_bounds = array<i64: 64, 64>}, {pipeline_mode = #tpu.pipeline_mode<synchronous>, transform_indices = @transform_6, window_bounds = array<i64: 32, 64>}, {pipeline_mode = #tpu.pipeline_mode<synchronous>, transform_indices = @transform_7, window_bounds = array<i64: 8, 128>}, {pipeline_mode = #tpu.pipeline_mode<synchronous>, transform_indices = @transform_8, window_bounds = array<i64: 128, 64>}, {pipeline_mode = #tpu.pipeline_mode<synchronous>, transform_indices = @transform_9, window_bounds = array<i64: 64, 128>}, {pipeline_mode = #tpu.pipeline_mode<synchronous>, transform_indices = @transform_10, window_bounds = array<i64: 1, 128>}, {pipeline_mode = #tpu.pipeline_mode<synchronous>, transform_indices = @transform_11, window_bounds = array<i64: 64, 64>}, {pipeline_mode = #tpu.pipeline_mode<synchronous>, transform_indices = @transform_12, window_bounds = array<i64: 1, 64>}, {pipeline_mode = #tpu.pipeline_mode<synchronous>, transform_indices = @transform_13, window_bounds = array<i64: 64, 64>}, {pipeline_mode = #tpu.pipeline_mode<synchronous>, transform_indices = @transform_14, window_bounds = array<i64: 1, 64>}, {pipeline_mode = #tpu.pipeline_mode<synchronous>, transform_indices = @transform_15, window_bounds = array<i64: 64, 128>}, {pipeline_mode = #tpu.pipeline_mode<synchronous>, transform_indices = @transform_16, window_bounds = array<i64: 1, 128>}, {pipeline_mode = #tpu.pipeline_mode<synchronous>, transform_indices = @transform_17, window_bounds = array<i64: 48, 128>}, {pipeline_mode = #tpu.pipeline_mode<synchronous>, transform_indices = @transform_18, window_bounds = array<i64: 48, 128>}, {pipeline_mode = #tpu.pipeline_mode<synchronous>, transform_indices = @transform_19, window_bounds = array<i64: 8, 8>}, {pipeline_mode = #tpu.pipeline_mode<synchronous>, transform_indices = @transform_20, window_bounds = array<i64: 2, 16, 16>}, {pipeline_mode = #tpu.pipeline_mode<synchronous>, transform_indices = @transform_21, window_bounds = array<i64: 2, 8, 16>}]} {
    %c0 = arith.constant 0 : index
    %c0_0 = arith.constant 0 : index
    %0 = vector.load %arg1[%c0, %c0_0] : memref<32x2048xbf16, #tpu.memory_space<vmem>>, vector<32x2048xbf16>
    %c0_1 = arith.constant 0 : index
    %c0_2 = arith.constant 0 : index
    %1 = vector.load %arg2[%c0_1, %c0_2] : memref<2048x64xbf16, #tpu.memory_space<vmem>>, vector<2048x64xbf16>
    %cst = arith.constant dense<0.000000e+00> : vector<32x64xf32>
    %2 = tpu.matmul %0, %1, %cst {dimension_numbers = #tpu.dot_dimension_numbers<[1], [0], [0], [1], [0, 0, 1, 1], [], []>} : vector<32x2048xbf16>, vector<2048x64xbf16>, vector<32x64xf32> -> vector<32x64xf32>
    %c0_3 = arith.constant 0 : index
    %c0_4 = arith.constant 0 : index
    %3 = vector.load %arg3[%c0_3, %c0_4] : memref<1x64xf32, #tpu.memory_space<vmem>>, vector<1x64xf32>
    %4 = vector.broadcast %3 : vector<1x64xf32> to vector<32x64xf32>
    %5 = arith.addf %2, %4 : vector<32x64xf32>
    %c0_5 = arith.constant 0 : index
    %c0_6 = arith.constant 0 : index
    %6 = vector.load %arg4[%c0_5, %c0_6] : memref<1x64xf32, #tpu.memory_space<vmem>>, vector<1x64xf32>
    %c0_7 = arith.constant 0 : index
    %c0_8 = arith.constant 0 : index
    %7 = vector.load %arg5[%c0_7, %c0_8] : memref<1x64xf32, #tpu.memory_space<vmem>>, vector<1x64xf32>
    %c0_9 = arith.constant 0 : index
    %c0_10 = arith.constant 0 : index
    %8 = vector.load %arg6[%c0_9, %c0_10] : memref<64x64xf32, #tpu.memory_space<vmem>>, vector<64x64xf32>
    %c0_11 = arith.constant 0 : index
    %c0_12 = arith.constant 0 : index
    %9 = vector.load %arg7[%c0_11, %c0_12] : memref<32x64xf32, #tpu.memory_space<vmem>>, vector<32x64xf32>
    %c0_13 = arith.constant 0 : index
    %c0_14 = arith.constant 0 : index
    %10 = vector.load %arg8[%c0_13, %c0_14] : memref<8x128xf32, #tpu.memory_space<vmem>>, vector<8x128xf32>
    %c0_15 = arith.constant 0 : index
    %c0_16 = arith.constant 0 : index
    %11 = vector.load %arg9[%c0_15, %c0_16] : memref<128x64xf32, #tpu.memory_space<vmem>>, vector<128x64xf32>
    %cst_17 = arith.constant dense<0.000000e+00> : vector<8x64xf32>
    %12 = tpu.matmul %10, %11, %cst_17 {dimension_numbers = #tpu.dot_dimension_numbers<[1], [0], [0], [1], [0, 0, 1, 1], [], []>} : vector<8x128xf32>, vector<128x64xf32>, vector<8x64xf32> -> vector<8x64xf32>
    %cst_18 = arith.constant dense<0.000000e+00> : vector<8x8xf32>
    %13 = tpu.matmul %12, %12, %cst_18 {dimension_numbers = #tpu.dot_dimension_numbers<[1], [1], [0], [0], [0, 0, 1, 0], [], []>} : vector<8x64xf32>, vector<8x64xf32>, vector<8x8xf32> -> vector<8x8xf32>
    %cst_19 = arith.constant 1.250000e-01 : f32
    %14 = vector.broadcast %cst_19 : f32 to vector<8x8xf32>
    %15 = arith.mulf %13, %14 : vector<8x8xf32>
    %cst_20 = arith.constant dense<0xFF800000> : vector<8xf32>
    %16 = vector.multi_reduction <maximumf>, %15, %cst_20 [1] : vector<8x8xf32> to vector<8xf32>
    %17 = vector.shape_cast %16 : vector<8xf32> to vector<8x1xf32>
    %18 = vector.broadcast %17 : vector<8x1xf32> to vector<8x8xf32>
    %19 = arith.subf %15, %18 : vector<8x8xf32>
    %20 = math.exp %19 : vector<8x8xf32>
    %cst_21 = arith.constant dense<0.000000e+00> : vector<8xf32>
    %21 = vector.multi_reduction <add>, %20, %cst_21 [1] : vector<8x8xf32> to vector<8xf32>
    %22 = vector.shape_cast %21 : vector<8xf32> to vector<8x1xf32>
    %23 = tpu.reciprocal %22 {approx = true} : vector<8x1xf32> -> vector<8x1xf32>
    %24 = vector.broadcast %23 : vector<8x1xf32> to vector<8x8xf32>
    %25 = arith.mulf %20, %24 : vector<8x8xf32>
    %c0_22 = arith.constant 0 : index
    %c0_23 = arith.constant 0 : index
    %26 = vector.load %arg20[%c0_22, %c0_23] : memref<8x8xf32, #tpu.memory_space<vmem>>, vector<8x8xf32>
    tpu.vector_store %arg20[%c0_22, %c0_23], %25 {strides = array<i32>} : memref<8x8xf32, #tpu.memory_space<vmem>>, vector<8x8xf32>,
    %27 = vector.extract_strided_slice %5 {offsets = [0, 0], sizes = [16, 64], strides = [1, 1]} : vector<32x64xf32> to vector<16x64xf32>
    %cst_24 = arith.constant dense<0.000000e+00> : vector<64xf32>
    %28 = vector.multi_reduction <add>, %27, %cst_24 [0] : vector<16x64xf32> to vector<64xf32>
    %29 = vector.shape_cast %28 : vector<64xf32> to vector<1x64xf32>
    %cst_25 = arith.constant 1.600000e+01 : f32
    %30 = vector.broadcast %cst_25 : f32 to vector<1x64xf32>
    %31 = arith.divf %29, %30 : vector<1x64xf32>
    %32 = arith.mulf %27, %27 : vector<16x64xf32>
    %cst_26 = arith.constant dense<0.000000e+00> : vector<64xf32>
    %33 = vector.multi_reduction <add>, %32, %cst_26 [0] : vector<16x64xf32> to vector<64xf32>
    %34 = vector.shape_cast %33 : vector<64xf32> to vector<1x64xf32>
    %cst_27 = arith.constant 1.600000e+01 : f32
    %35 = vector.broadcast %cst_27 : f32 to vector<1x64xf32>
    %36 = arith.divf %34, %35 : vector<1x64xf32>
    %cst_28 = arith.constant dense<0.000000e+00> : vector<1x64xf32>
    %37 = tpu.matmul %31, %8, %cst_28 {dimension_numbers = #tpu.dot_dimension_numbers<[1], [0], [0], [1], [0, 0, 1, 1], [], []>} : vector<1x64xf32>, vector<64x64xf32>, vector<1x64xf32> -> vector<1x64xf32>
    %cst_29 = arith.constant dense<0.000000e+00> : vector<1x64xf32>
    %38 = tpu.matmul %36, %8, %cst_29 {dimension_numbers = #tpu.dot_dimension_numbers<[1], [0], [0], [1], [0, 0, 1, 1], [], []>} : vector<1x64xf32>, vector<64x64xf32>, vector<1x64xf32> -> vector<1x64xf32>
    %39 = arith.mulf %37, %37 : vector<1x64xf32>
    %40 = arith.subf %38, %39 : vector<1x64xf32>
    %41 = vector.broadcast %37 : vector<1x64xf32> to vector<16x64xf32>
    %42 = arith.subf %27, %41 : vector<16x64xf32>
    %cst_30 = arith.constant 9.99999974E-6 : f32
    %43 = vector.broadcast %cst_30 : f32 to vector<1x64xf32>
    %44 = arith.addf %40, %43 : vector<1x64xf32>
    %45 = math.rsqrt %44 : vector<1x64xf32>
    %46 = vector.broadcast %45 : vector<1x64xf32> to vector<16x64xf32>
    %47 = arith.mulf %42, %46 : vector<16x64xf32>
    %48 = vector.broadcast %6 : vector<1x64xf32> to vector<16x64xf32>
    %49 = arith.mulf %47, %48 : vector<16x64xf32>
    %50 = vector.broadcast %7 : vector<1x64xf32> to vector<16x64xf32>
    %51 = arith.addf %49, %50 : vector<16x64xf32>
    %52 = vector.extract_strided_slice %9 {offsets = [0, 0], sizes = [16, 64], strides = [1, 1]} : vector<32x64xf32> to vector<16x64xf32>
    %53 = arith.addf %51, %52 : vector<16x64xf32>
    %cst_31 = arith.constant dense<0.000000e+00> : vector<16x16xf32>
    %54 = tpu.matmul %53, %53, %cst_31 {dimension_numbers = #tpu.dot_dimension_numbers<[1], [1], [0], [0], [0, 0, 1, 0], [], []>} : vector<16x64xf32>, vector<16x64xf32>, vector<16x16xf32> -> vector<16x16xf32>
    %cst_32 = arith.constant 1.250000e-01 : f32
    %55 = vector.broadcast %cst_32 : f32 to vector<16x16xf32>
    %56 = arith.mulf %54, %55 : vector<16x16xf32>
    %cst_33 = arith.constant dense<0xFF800000> : vector<16xf32>
    %57 = vector.multi_reduction <maximumf>, %56, %cst_33 [1] : vector<16x16xf32> to vector<16xf32>
    %58 = vector.shape_cast %57 : vector<16xf32> to vector<16x1xf32>
    %59 = vector.broadcast %58 : vector<16x1xf32> to vector<16x16xf32>
    %60 = arith.subf %56, %59 : vector<16x16xf32>
    %61 = math.exp %60 : vector<16x16xf32>
    %cst_34 = arith.constant dense<0.000000e+00> : vector<16xf32>
    %62 = vector.multi_reduction <add>, %61, %cst_34 [1] : vector<16x16xf32> to vector<16xf32>
    %63 = vector.shape_cast %62 : vector<16xf32> to vector<16x1xf32>
    %64 = tpu.reciprocal %63 {approx = true} : vector<16x1xf32> -> vector<16x1xf32>
    %65 = vector.broadcast %64 : vector<16x1xf32> to vector<16x16xf32>
    %66 = arith.mulf %61, %65 : vector<16x16xf32>
    %c0_35 = arith.constant 0 : index
    %c0_36 = arith.constant 0 : index
    %c0_37 = arith.constant 0 : index
    %67 = vector.load %arg21[%c0_35, %c0_36, %c0_37] : memref<2x16x16xf32, #tpu.memory_space<vmem>>, vector<1x16x16xf32>
    %68 = vector.shape_cast %67 : vector<1x16x16xf32> to vector<16x16xf32>
    %69 = vector.shape_cast %66 : vector<16x16xf32> to vector<1x16x16xf32>
    tpu.vector_store %arg21[%c0_35, %c0_36, %c0_37], %69 {strides = array<i32>} : memref<2x16x16xf32, #tpu.memory_space<vmem>>, vector<1x16x16xf32>,
    %cst_38 = arith.constant dense<0.000000e+00> : vector<8x16xf32>
    %70 = tpu.matmul %12, %53, %cst_38 {dimension_numbers = #tpu.dot_dimension_numbers<[1], [1], [0], [0], [0, 0, 1, 0], [], []>} : vector<8x64xf32>, vector<16x64xf32>, vector<8x16xf32> -> vector<8x16xf32>
    %cst_39 = arith.constant 1.250000e-01 : f32
    %71 = vector.broadcast %cst_39 : f32 to vector<8x16xf32>
    %72 = arith.mulf %70, %71 : vector<8x16xf32>
    %cst_40 = arith.constant dense<0xFF800000> : vector<8xf32>
    %73 = vector.multi_reduction <maximumf>, %72, %cst_40 [1] : vector<8x16xf32> to vector<8xf32>
    %74 = vector.shape_cast %73 : vector<8xf32> to vector<8x1xf32>
    %75 = vector.broadcast %74 : vector<8x1xf32> to vector<8x16xf32>
    %76 = arith.subf %72, %75 : vector<8x16xf32>
    %77 = math.exp %76 : vector<8x16xf32>
    %cst_41 = arith.constant dense<0.000000e+00> : vector<8xf32>
    %78 = vector.multi_reduction <add>, %77, %cst_41 [1] : vector<8x16xf32> to vector<8xf32>
    %79 = vector.shape_cast %78 : vector<8xf32> to vector<8x1xf32>
    %80 = tpu.reciprocal %79 {approx = true} : vector<8x1xf32> -> vector<8x1xf32>
    %81 = vector.broadcast %80 : vector<8x1xf32> to vector<8x16xf32>
    %82 = arith.mulf %77, %81 : vector<8x16xf32>
    %cst_42 = arith.constant dense<0.000000e+00> : vector<8x64xf32>
    %83 = tpu.matmul %82, %53, %cst_42 {dimension_numbers = #tpu.dot_dimension_numbers<[1], [0], [0], [1], [0, 0, 1, 1], [], []>} : vector<8x16xf32>, vector<16x64xf32>, vector<8x64xf32> -> vector<8x64xf32>
    %cst_43 = arith.constant dense<0.000000e+00> : vector<8x16xf32>
    %84 = tpu.matmul %83, %53, %cst_43 {dimension_numbers = #tpu.dot_dimension_numbers<[1], [1], [0], [0], [0, 0, 1, 0], [], []>} : vector<8x64xf32>, vector<16x64xf32>, vector<8x16xf32> -> vector<8x16xf32>
    %cst_44 = arith.constant 1.250000e-01 : f32
    %85 = vector.broadcast %cst_44 : f32 to vector<8x16xf32>
    %86 = arith.mulf %84, %85 : vector<8x16xf32>
    %cst_45 = arith.constant dense<0xFF800000> : vector<8xf32>
    %87 = vector.multi_reduction <maximumf>, %86, %cst_45 [1] : vector<8x16xf32> to vector<8xf32>
    %88 = vector.shape_cast %87 : vector<8xf32> to vector<8x1xf32>
    %89 = vector.broadcast %88 : vector<8x1xf32> to vector<8x16xf32>
    %90 = arith.subf %86, %89 : vector<8x16xf32>
    %91 = math.exp %90 : vector<8x16xf32>
    %cst_46 = arith.constant dense<0.000000e+00> : vector<8xf32>
    %92 = vector.multi_reduction <add>, %91, %cst_46 [1] : vector<8x16xf32> to vector<8xf32>
    %93 = vector.shape_cast %92 : vector<8xf32> to vector<8x1xf32>
    %94 = tpu.reciprocal %93 {approx = true} : vector<8x1xf32> -> vector<8x1xf32>
    %95 = vector.broadcast %94 : vector<8x1xf32> to vector<8x16xf32>
    %96 = arith.mulf %91, %95 : vector<8x16xf32>
    %cst_47 = arith.constant dense<0.000000e+00> : vector<8x64xf32>
    %97 = tpu.matmul %96, %53, %cst_47 {dimension_numbers = #tpu.dot_dimension_numbers<[1], [0], [0], [1], [0, 0, 1, 1], [], []>} : vector<8x16xf32>, vector<16x64xf32>, vector<8x64xf32> -> vector<8x64xf32>
    %cst_48 = arith.constant dense<0.000000e+00> : vector<8x16xf32>
    %98 = tpu.matmul %97, %53, %cst_48 {dimension_numbers = #tpu.dot_dimension_numbers<[1], [1], [0], [0], [0, 0, 1, 0], [], []>} : vector<8x64xf32>, vector<16x64xf32>, vector<8x16xf32> -> vector<8x16xf32>
    %cst_49 = arith.constant 1.250000e-01 : f32
    %99 = vector.broadcast %cst_49 : f32 to vector<8x16xf32>
    %100 = arith.mulf %98, %99 : vector<8x16xf32>
    %cst_50 = arith.constant dense<0xFF800000> : vector<8xf32>
    %101 = vector.multi_reduction <maximumf>, %100, %cst_50 [1] : vector<8x16xf32> to vector<8xf32>
    %102 = vector.shape_cast %101 : vector<8xf32> to vector<8x1xf32>
    %103 = vector.broadcast %102 : vector<8x1xf32> to vector<8x16xf32>
    %104 = arith.subf %100, %103 : vector<8x16xf32>
    %105 = math.exp %104 : vector<8x16xf32>
    %cst_51 = arith.constant dense<0.000000e+00> : vector<8xf32>
    %106 = vector.multi_reduction <add>, %105, %cst_51 [1] : vector<8x16xf32> to vector<8xf32>
    %107 = vector.shape_cast %106 : vector<8xf32> to vector<8x1xf32>
    %108 = tpu.reciprocal %107 {approx = true} : vector<8x1xf32> -> vector<8x1xf32>
    %109 = vector.broadcast %108 : vector<8x1xf32> to vector<8x16xf32>
    %110 = arith.mulf %105, %109 : vector<8x16xf32>
    %cst_52 = arith.constant dense<0.000000e+00> : vector<8x64xf32>
    %111 = tpu.matmul %110, %53, %cst_52 {dimension_numbers = #tpu.dot_dimension_numbers<[1], [0], [0], [1], [0, 0, 1, 1], [], []>} : vector<8x16xf32>, vector<16x64xf32>, vector<8x64xf32> -> vector<8x64xf32>
    %c0_53 = arith.constant 0 : index
    %c0_54 = arith.constant 0 : index
    %c0_55 = arith.constant 0 : index
    %112 = vector.load %arg22[%c0_53, %c0_54, %c0_55] : memref<2x8x16xf32, #tpu.memory_space<vmem>>, vector<1x8x16xf32>
    %113 = vector.shape_cast %112 : vector<1x8x16xf32> to vector<8x16xf32>
    %114 = vector.shape_cast %110 : vector<8x16xf32> to vector<1x8x16xf32>
    tpu.vector_store %arg22[%c0_53, %c0_54, %c0_55], %114 {strides = array<i32>} : memref<2x8x16xf32, #tpu.memory_space<vmem>>, vector<1x8x16xf32>,
    %115 = vector.extract_strided_slice %5 {offsets = [16, 0], sizes = [16, 64], strides = [1, 1]} : vector<32x64xf32> to vector<16x64xf32>
    %cst_56 = arith.constant dense<0.000000e+00> : vector<64xf32>
    %116 = vector.multi_reduction <add>, %115, %cst_56 [0] : vector<16x64xf32> to vector<64xf32>
    %117 = vector.shape_cast %116 : vector<64xf32> to vector<1x64xf32>
    %cst_57 = arith.constant 1.600000e+01 : f32
    %118 = vector.broadcast %cst_57 : f32 to vector<1x64xf32>
    %119 = arith.divf %117, %118 : vector<1x64xf32>
    %120 = arith.mulf %115, %115 : vector<16x64xf32>
    %cst_58 = arith.constant dense<0.000000e+00> : vector<64xf32>
    %121 = vector.multi_reduction <add>, %120, %cst_58 [0] : vector<16x64xf32> to vector<64xf32>
    %122 = vector.shape_cast %121 : vector<64xf32> to vector<1x64xf32>
    %cst_59 = arith.constant 1.600000e+01 : f32
    %123 = vector.broadcast %cst_59 : f32 to vector<1x64xf32>
    %124 = arith.divf %122, %123 : vector<1x64xf32>
    %cst_60 = arith.constant dense<0.000000e+00> : vector<1x64xf32>
    %125 = tpu.matmul %119, %8, %cst_60 {dimension_numbers = #tpu.dot_dimension_numbers<[1], [0], [0], [1], [0, 0, 1, 1], [], []>} : vector<1x64xf32>, vector<64x64xf32>, vector<1x64xf32> -> vector<1x64xf32>
    %cst_61 = arith.constant dense<0.000000e+00> : vector<1x64xf32>
    %126 = tpu.matmul %124, %8, %cst_61 {dimension_numbers = #tpu.dot_dimension_numbers<[1], [0], [0], [1], [0, 0, 1, 1], [], []>} : vector<1x64xf32>, vector<64x64xf32>, vector<1x64xf32> -> vector<1x64xf32>
    %127 = arith.mulf %125, %125 : vector<1x64xf32>
    %128 = arith.subf %126, %127 : vector<1x64xf32>
    %129 = vector.broadcast %125 : vector<1x64xf32> to vector<16x64xf32>
    %130 = arith.subf %115, %129 : vector<16x64xf32>
    %cst_62 = arith.constant 9.99999974E-6 : f32
    %131 = vector.broadcast %cst_62 : f32 to vector<1x64xf32>
    %132 = arith.addf %128, %131 : vector<1x64xf32>
    %133 = math.rsqrt %132 : vector<1x64xf32>
    %134 = vector.broadcast %133 : vector<1x64xf32> to vector<16x64xf32>
    %135 = arith.mulf %130, %134 : vector<16x64xf32>
    %136 = vector.broadcast %6 : vector<1x64xf32> to vector<16x64xf32>
    %137 = arith.mulf %135, %136 : vector<16x64xf32>
    %138 = vector.broadcast %7 : vector<1x64xf32> to vector<16x64xf32>
    %139 = arith.addf %137, %138 : vector<16x64xf32>
    %140 = vector.extract_strided_slice %9 {offsets = [16, 0], sizes = [16, 64], strides = [1, 1]} : vector<32x64xf32> to vector<16x64xf32>
    %141 = arith.addf %139, %140 : vector<16x64xf32>
    %cst_63 = arith.constant dense<0.000000e+00> : vector<16x16xf32>
    %142 = tpu.matmul %141, %141, %cst_63 {dimension_numbers = #tpu.dot_dimension_numbers<[1], [1], [0], [0], [0, 0, 1, 0], [], []>} : vector<16x64xf32>, vector<16x64xf32>, vector<16x16xf32> -> vector<16x16xf32>
    %cst_64 = arith.constant 1.250000e-01 : f32
    %143 = vector.broadcast %cst_64 : f32 to vector<16x16xf32>
    %144 = arith.mulf %142, %143 : vector<16x16xf32>
    %cst_65 = arith.constant dense<0xFF800000> : vector<16xf32>
    %145 = vector.multi_reduction <maximumf>, %144, %cst_65 [1] : vector<16x16xf32> to vector<16xf32>
    %146 = vector.shape_cast %145 : vector<16xf32> to vector<16x1xf32>
    %147 = vector.broadcast %146 : vector<16x1xf32> to vector<16x16xf32>
    %148 = arith.subf %144, %147 : vector<16x16xf32>
    %149 = math.exp %148 : vector<16x16xf32>
    %cst_66 = arith.constant dense<0.000000e+00> : vector<16xf32>
    %150 = vector.multi_reduction <add>, %149, %cst_66 [1] : vector<16x16xf32> to vector<16xf32>
    %151 = vector.shape_cast %150 : vector<16xf32> to vector<16x1xf32>
    %152 = tpu.reciprocal %151 {approx = true} : vector<16x1xf32> -> vector<16x1xf32>
    %153 = vector.broadcast %152 : vector<16x1xf32> to vector<16x16xf32>
    %154 = arith.mulf %149, %153 : vector<16x16xf32>
    %c1 = arith.constant 1 : index
    %c0_67 = arith.constant 0 : index
    %c0_68 = arith.constant 0 : index
    %155 = vector.load %arg21[%c1, %c0_67, %c0_68] : memref<2x16x16xf32, #tpu.memory_space<vmem>>, vector<1x16x16xf32>
    %156 = vector.shape_cast %155 : vector<1x16x16xf32> to vector<16x16xf32>
    %157 = vector.shape_cast %154 : vector<16x16xf32> to vector<1x16x16xf32>
    tpu.vector_store %arg21[%c1, %c0_67, %c0_68], %157 {strides = array<i32>} : memref<2x16x16xf32, #tpu.memory_space<vmem>>, vector<1x16x16xf32>,
    %cst_69 = arith.constant dense<0.000000e+00> : vector<8x16xf32>
    %158 = tpu.matmul %12, %141, %cst_69 {dimension_numbers = #tpu.dot_dimension_numbers<[1], [1], [0], [0], [0, 0, 1, 0], [], []>} : vector<8x64xf32>, vector<16x64xf32>, vector<8x16xf32> -> vector<8x16xf32>
    %cst_70 = arith.constant 1.250000e-01 : f32
    %159 = vector.broadcast %cst_70 : f32 to vector<8x16xf32>
    %160 = arith.mulf %158, %159 : vector<8x16xf32>
    %cst_71 = arith.constant dense<0xFF800000> : vector<8xf32>
    %161 = vector.multi_reduction <maximumf>, %160, %cst_71 [1] : vector<8x16xf32> to vector<8xf32>
    %162 = vector.shape_cast %161 : vector<8xf32> to vector<8x1xf32>
    %163 = vector.broadcast %162 : vector<8x1xf32> to vector<8x16xf32>
    %164 = arith.subf %160, %163 : vector<8x16xf32>
    %165 = math.exp %164 : vector<8x16xf32>
    %cst_72 = arith.constant dense<0.000000e+00> : vector<8xf32>
    %166 = vector.multi_reduction <add>, %165, %cst_72 [1] : vector<8x16xf32> to vector<8xf32>
    %167 = vector.shape_cast %166 : vector<8xf32> to vector<8x1xf32>
    %168 = tpu.reciprocal %167 {approx = true} : vector<8x1xf32> -> vector<8x1xf32>
    %169 = vector.broadcast %168 : vector<8x1xf32> to vector<8x16xf32>
    %170 = arith.mulf %165, %169 : vector<8x16xf32>
    %cst_73 = arith.constant dense<0.000000e+00> : vector<8x64xf32>
    %171 = tpu.matmul %170, %141, %cst_73 {dimension_numbers = #tpu.dot_dimension_numbers<[1], [0], [0], [1], [0, 0, 1, 1], [], []>} : vector<8x16xf32>, vector<16x64xf32>, vector<8x64xf32> -> vector<8x64xf32>
    %cst_74 = arith.constant dense<0.000000e+00> : vector<8x16xf32>
    %172 = tpu.matmul %171, %141, %cst_74 {dimension_numbers = #tpu.dot_dimension_numbers<[1], [1], [0], [0], [0, 0, 1, 0], [], []>} : vector<8x64xf32>, vector<16x64xf32>, vector<8x16xf32> -> vector<8x16xf32>
    %cst_75 = arith.constant 1.250000e-01 : f32
    %173 = vector.broadcast %cst_75 : f32 to vector<8x16xf32>
    %174 = arith.mulf %172, %173 : vector<8x16xf32>
    %cst_76 = arith.constant dense<0xFF800000> : vector<8xf32>
    %175 = vector.multi_reduction <maximumf>, %174, %cst_76 [1] : vector<8x16xf32> to vector<8xf32>
    %176 = vector.shape_cast %175 : vector<8xf32> to vector<8x1xf32>
    %177 = vector.broadcast %176 : vector<8x1xf32> to vector<8x16xf32>
    %178 = arith.subf %174, %177 : vector<8x16xf32>
    %179 = math.exp %178 : vector<8x16xf32>
    %cst_77 = arith.constant dense<0.000000e+00> : vector<8xf32>
    %180 = vector.multi_reduction <add>, %179, %cst_77 [1] : vector<8x16xf32> to vector<8xf32>
    %181 = vector.shape_cast %180 : vector<8xf32> to vector<8x1xf32>
    %182 = tpu.reciprocal %181 {approx = true} : vector<8x1xf32> -> vector<8x1xf32>
    %183 = vector.broadcast %182 : vector<8x1xf32> to vector<8x16xf32>
    %184 = arith.mulf %179, %183 : vector<8x16xf32>
    %cst_78 = arith.constant dense<0.000000e+00> : vector<8x64xf32>
    %185 = tpu.matmul %184, %141, %cst_78 {dimension_numbers = #tpu.dot_dimension_numbers<[1], [0], [0], [1], [0, 0, 1, 1], [], []>} : vector<8x16xf32>, vector<16x64xf32>, vector<8x64xf32> -> vector<8x64xf32>
    %cst_79 = arith.constant dense<0.000000e+00> : vector<8x16xf32>
    %186 = tpu.matmul %185, %141, %cst_79 {dimension_numbers = #tpu.dot_dimension_numbers<[1], [1], [0], [0], [0, 0, 1, 0], [], []>} : vector<8x64xf32>, vector<16x64xf32>, vector<8x16xf32> -> vector<8x16xf32>
    %cst_80 = arith.constant 1.250000e-01 : f32
    %187 = vector.broadcast %cst_80 : f32 to vector<8x16xf32>
    %188 = arith.mulf %186, %187 : vector<8x16xf32>
    %cst_81 = arith.constant dense<0xFF800000> : vector<8xf32>
    %189 = vector.multi_reduction <maximumf>, %188, %cst_81 [1] : vector<8x16xf32> to vector<8xf32>
    %190 = vector.shape_cast %189 : vector<8xf32> to vector<8x1xf32>
    %191 = vector.broadcast %190 : vector<8x1xf32> to vector<8x16xf32>
    %192 = arith.subf %188, %191 : vector<8x16xf32>
    %193 = math.exp %192 : vector<8x16xf32>
    %cst_82 = arith.constant dense<0.000000e+00> : vector<8xf32>
    %194 = vector.multi_reduction <add>, %193, %cst_82 [1] : vector<8x16xf32> to vector<8xf32>
    %195 = vector.shape_cast %194 : vector<8xf32> to vector<8x1xf32>
    %196 = tpu.reciprocal %195 {approx = true} : vector<8x1xf32> -> vector<8x1xf32>
    %197 = vector.broadcast %196 : vector<8x1xf32> to vector<8x16xf32>
    %198 = arith.mulf %193, %197 : vector<8x16xf32>
    %cst_83 = arith.constant dense<0.000000e+00> : vector<8x64xf32>
    %199 = tpu.matmul %198, %141, %cst_83 {dimension_numbers = #tpu.dot_dimension_numbers<[1], [0], [0], [1], [0, 0, 1, 1], [], []>} : vector<8x16xf32>, vector<16x64xf32>, vector<8x64xf32> -> vector<8x64xf32>
    %c1_84 = arith.constant 1 : index
    %c0_85 = arith.constant 0 : index
    %c0_86 = arith.constant 0 : index
    %200 = vector.load %arg22[%c1_84, %c0_85, %c0_86] : memref<2x8x16xf32, #tpu.memory_space<vmem>>, vector<1x8x16xf32>
    %201 = vector.shape_cast %200 : vector<1x8x16xf32> to vector<8x16xf32>
    %202 = vector.shape_cast %198 : vector<8x16xf32> to vector<1x8x16xf32>
    tpu.vector_store %arg22[%c1_84, %c0_85, %c0_86], %202 {strides = array<i32>} : memref<2x8x16xf32, #tpu.memory_space<vmem>>, vector<1x8x16xf32>,
    %203 = tpu.concatenate %83, %171, %97, %185, %111, %199 in 0 : vector<8x64xf32>, vector<8x64xf32>, vector<8x64xf32>, vector<8x64xf32>, vector<8x64xf32>, vector<8x64xf32> -> vector<48x64xf32>
    %c0_87 = arith.constant 0 : index
    %c0_88 = arith.constant 0 : index
    %204 = vector.load %arg10[%c0_87, %c0_88] : memref<64x128xf32, #tpu.memory_space<vmem>>, vector<64x128xf32>
    %cst_89 = arith.constant dense<0.000000e+00> : vector<48x128xf32>
    %205 = tpu.matmul %203, %204, %cst_89 {dimension_numbers = #tpu.dot_dimension_numbers<[1], [0], [0], [1], [0, 0, 1, 1], [], []>} : vector<48x64xf32>, vector<64x128xf32>, vector<48x128xf32> -> vector<48x128xf32>
    %c0_90 = arith.constant 0 : index
    %c0_91 = arith.constant 0 : index
    %206 = vector.load %arg11[%c0_90, %c0_91] : memref<1x128xf32, #tpu.memory_space<vmem>>, vector<1x128xf32>
    %207 = vector.broadcast %206 : vector<1x128xf32> to vector<48x128xf32>
    %208 = arith.addf %205, %207 : vector<48x128xf32>
    %c0_92 = arith.constant 0 : index
    %c0_93 = arith.constant 0 : index
    %209 = vector.load %arg18[%c0_92, %c0_93] : memref<48x128xf32, #tpu.memory_space<vmem>>, vector<48x128xf32>
    tpu.vector_store %arg18[%c0_92, %c0_93], %208 {strides = array<i32>} : memref<48x128xf32, #tpu.memory_space<vmem>>, vector<48x128xf32>,
    %c0_94 = arith.constant 0 : index
    %c0_95 = arith.constant 0 : index
    %210 = vector.load %arg12[%c0_94, %c0_95] : memref<64x64xf32, #tpu.memory_space<vmem>>, vector<64x64xf32>
    %cst_96 = arith.constant dense<0.000000e+00> : vector<48x64xf32>
    %211 = tpu.matmul %203, %210, %cst_96 {dimension_numbers = #tpu.dot_dimension_numbers<[1], [0], [0], [1], [0, 0, 1, 1], [], []>} : vector<48x64xf32>, vector<64x64xf32>, vector<48x64xf32> -> vector<48x64xf32>
    %c0_97 = arith.constant 0 : index
    %c0_98 = arith.constant 0 : index
    %212 = vector.load %arg13[%c0_97, %c0_98] : memref<1x64xf32, #tpu.memory_space<vmem>>, vector<1x64xf32>
    %213 = vector.broadcast %212 : vector<1x64xf32> to vector<48x64xf32>
    %214 = arith.addf %211, %213 : vector<48x64xf32>
    %cst_99 = arith.constant 0.000000e+00 : f32
    %215 = vector.broadcast %cst_99 : f32 to vector<48x64xf32>
    %216 = arith.maximumf %214, %215 : vector<48x64xf32>
    %c0_100 = arith.constant 0 : index
    %c0_101 = arith.constant 0 : index
    %217 = vector.load %arg14[%c0_100, %c0_101] : memref<64x64xf32, #tpu.memory_space<vmem>>, vector<64x64xf32>
    %cst_102 = arith.constant dense<0.000000e+00> : vector<48x64xf32>
    %218 = tpu.matmul %216, %217, %cst_102 {dimension_numbers = #tpu.dot_dimension_numbers<[1], [0], [0], [1], [0, 0, 1, 1], [], []>} : vector<48x64xf32>, vector<64x64xf32>, vector<48x64xf32> -> vector<48x64xf32>
    %c0_103 = arith.constant 0 : index
    %c0_104 = arith.constant 0 : index
    %219 = vector.load %arg15[%c0_103, %c0_104] : memref<1x64xf32, #tpu.memory_space<vmem>>, vector<1x64xf32>
    %220 = vector.broadcast %219 : vector<1x64xf32> to vector<48x64xf32>
    %221 = arith.addf %218, %220 : vector<48x64xf32>
    %cst_105 = arith.constant 0.000000e+00 : f32
    %222 = vector.broadcast %cst_105 : f32 to vector<48x64xf32>
    %223 = arith.maximumf %221, %222 : vector<48x64xf32>
    %c0_106 = arith.constant 0 : index
    %c0_107 = arith.constant 0 : index
    %224 = vector.load %arg16[%c0_106, %c0_107] : memref<64x128xf32, #tpu.memory_space<vmem>>, vector<64x128xf32>
    %cst_108 = arith.constant dense<0.000000e+00> : vector<48x128xf32>
    %225 = tpu.matmul %223, %224, %cst_108 {dimension_numbers = #tpu.dot_dimension_numbers<[1], [0], [0], [1], [0, 0, 1, 1], [], []>} : vector<48x64xf32>, vector<64x128xf32>, vector<48x128xf32> -> vector<48x128xf32>
    %c0_109 = arith.constant 0 : index
    %c0_110 = arith.constant 0 : index
    %226 = vector.load %arg17[%c0_109, %c0_110] : memref<1x128xf32, #tpu.memory_space<vmem>>, vector<1x128xf32>
    %227 = vector.broadcast %226 : vector<1x128xf32> to vector<48x128xf32>
    %228 = arith.addf %225, %227 : vector<48x128xf32>
    %229 = arith.negf %10 : vector<8x128xf32>
    %230 = math.exp %229 : vector<8x128xf32>
    %cst_111 = arith.constant 1.000000e+00 : f32
    %231 = vector.broadcast %cst_111 : f32 to vector<8x128xf32>
    %232 = arith.addf %231, %230 : vector<8x128xf32>
    %233 = arith.divf %231, %232 : vector<8x128xf32>
    %cst_112 = arith.constant 0.000000e+00 : f32
    %cst_113 = arith.constant 1.000000e+00 : f32
    %234 = vector.broadcast %cst_112 : f32 to vector<8x128xf32>
    %235 = arith.maximumf %234, %233 : vector<8x128xf32>
    %236 = vector.broadcast %cst_113 : f32 to vector<8x128xf32>
    %237 = arith.minimumf %236, %235 : vector<8x128xf32>
    %cst_114 = arith.constant 1.000000e-03 : f32
    %238 = vector.broadcast %cst_114 : f32 to vector<8x128xf32>
    %239 = arith.maximumf %237, %238 : vector<8x128xf32>
    %cst_115 = arith.constant 1.000000e+00 : f32
    %240 = vector.broadcast %cst_115 : f32 to vector<8x128xf32>
    %241 = arith.subf %240, %237 : vector<8x128xf32>
    %cst_116 = arith.constant 1.000000e-03 : f32
    %242 = vector.broadcast %cst_116 : f32 to vector<8x128xf32>
    %243 = arith.maximumf %241, %242 : vector<8x128xf32>
    %244 = math.log %239 : vector<8x128xf32>
    %245 = math.log %243 : vector<8x128xf32>
    %246 = arith.subf %244, %245 : vector<8x128xf32>
    %247 = tpu.concatenate %246, %246, %246, %246, %246, %246 in 0 : vector<8x128xf32>, vector<8x128xf32>, vector<8x128xf32>, vector<8x128xf32>, vector<8x128xf32>, vector<8x128xf32> -> vector<48x128xf32>
    %248 = arith.addf %228, %247 : vector<48x128xf32>
    %249 = arith.negf %248 : vector<48x128xf32>
    %250 = math.exp %249 : vector<48x128xf32>
    %cst_117 = arith.constant 1.000000e+00 : f32
    %251 = vector.broadcast %cst_117 : f32 to vector<48x128xf32>
    %252 = arith.addf %251, %250 : vector<48x128xf32>
    %253 = arith.divf %251, %252 : vector<48x128xf32>
    %c0_118 = arith.constant 0 : index
    %c0_119 = arith.constant 0 : index
    %254 = vector.load %arg19[%c0_118, %c0_119] : memref<48x128xf32, #tpu.memory_space<vmem>>, vector<48x128xf32>
    tpu.vector_store %arg19[%c0_118, %c0_119], %253 {strides = array<i32>} : memref<48x128xf32, #tpu.memory_space<vmem>>, vector<48x128xf32>,
    return
  }
  func.func @transform_0(%arg0: i32) -> (i32, i32) {
    %c0_i32 = arith.constant 0 : i32
    %c0_i32_0 = arith.constant 0 : i32
    %c0_i32_1 = arith.constant 0 : i32
    return %c0_i32, %c0_i32_0 : i32, i32
  }
  func.func @transform_1(%arg0: i32) -> (i32, i32) {
    %c0_i32 = arith.constant 0 : i32
    %c0_i32_0 = arith.constant 0 : i32
    %c0_i32_1 = arith.constant 0 : i32
    return %c0_i32, %c0_i32_0 : i32, i32
  }
  func.func @transform_2(%arg0: i32) -> (i32, i32) {
    %c0_i32 = arith.constant 0 : i32
    %c0_i32_0 = arith.constant 0 : i32
    %c0_i32_1 = arith.constant 0 : i32
    return %c0_i32, %c0_i32_0 : i32, i32
  }
  func.func @transform_3(%arg0: i32) -> (i32, i32) {
    %c0_i32 = arith.constant 0 : i32
    %c0_i32_0 = arith.constant 0 : i32
    %c0_i32_1 = arith.constant 0 : i32
    return %c0_i32, %c0_i32_0 : i32, i32
  }
  func.func @transform_4(%arg0: i32) -> (i32, i32) {
    %c0_i32 = arith.constant 0 : i32
    %c0_i32_0 = arith.constant 0 : i32
    %c0_i32_1 = arith.constant 0 : i32
    return %c0_i32, %c0_i32_0 : i32, i32
  }
  func.func @transform_5(%arg0: i32) -> (i32, i32) {
    %c0_i32 = arith.constant 0 : i32
    %c0_i32_0 = arith.constant 0 : i32
    %c0_i32_1 = arith.constant 0 : i32
    return %c0_i32, %c0_i32_0 : i32, i32
  }
  func.func @transform_6(%arg0: i32) -> (i32, i32) {
    %c0_i32 = arith.constant 0 : i32
    %c0_i32_0 = arith.constant 0 : i32
    %c0_i32_1 = arith.constant 0 : i32
    return %c0_i32, %c0_i32_0 : i32, i32
  }
  func.func @transform_7(%arg0: i32) -> (i32, i32) {
    %c0_i32 = arith.constant 0 : i32
    %c0_i32_0 = arith.constant 0 : i32
    %c0_i32_1 = arith.constant 0 : i32
    return %c0_i32, %c0_i32_0 : i32, i32
  }
  func.func @transform_8(%arg0: i32) -> (i32, i32) {
    %c0_i32 = arith.constant 0 : i32
    %c0_i32_0 = arith.constant 0 : i32
    %c0_i32_1 = arith.constant 0 : i32
    return %c0_i32, %c0_i32_0 : i32, i32
  }
  func.func @transform_9(%arg0: i32) -> (i32, i32) {
    %c0_i32 = arith.constant 0 : i32
    %c0_i32_0 = arith.constant 0 : i32
    %c0_i32_1 = arith.constant 0 : i32
    return %c0_i32, %c0_i32_0 : i32, i32
  }
  func.func @transform_10(%arg0: i32) -> (i32, i32) {
    %c0_i32 = arith.constant 0 : i32
    %c0_i32_0 = arith.constant 0 : i32
    %c0_i32_1 = arith.constant 0 : i32
    return %c0_i32, %c0_i32_0 : i32, i32
  }
  func.func @transform_11(%arg0: i32) -> (i32, i32) {
    %c0_i32 = arith.constant 0 : i32
    %c0_i32_0 = arith.constant 0 : i32
    %c0_i32_1 = arith.constant 0 : i32
    return %c0_i32, %c0_i32_0 : i32, i32
  }
  func.func @transform_12(%arg0: i32) -> (i32, i32) {
    %c0_i32 = arith.constant 0 : i32
    %c0_i32_0 = arith.constant 0 : i32
    %c0_i32_1 = arith.constant 0 : i32
    return %c0_i32, %c0_i32_0 : i32, i32
  }
  func.func @transform_13(%arg0: i32) -> (i32, i32) {
    %c0_i32 = arith.constant 0 : i32
    %c0_i32_0 = arith.constant 0 : i32
    %c0_i32_1 = arith.constant 0 : i32
    return %c0_i32, %c0_i32_0 : i32, i32
  }
  func.func @transform_14(%arg0: i32) -> (i32, i32) {
    %c0_i32 = arith.constant 0 : i32
    %c0_i32_0 = arith.constant 0 : i32
    %c0_i32_1 = arith.constant 0 : i32
    return %c0_i32, %c0_i32_0 : i32, i32
  }
  func.func @transform_15(%arg0: i32) -> (i32, i32) {
    %c0_i32 = arith.constant 0 : i32
    %c0_i32_0 = arith.constant 0 : i32
    %c0_i32_1 = arith.constant 0 : i32
    return %c0_i32, %c0_i32_0 : i32, i32
  }
  func.func @transform_16(%arg0: i32) -> (i32, i32) {
    %c0_i32 = arith.constant 0 : i32
    %c0_i32_0 = arith.constant 0 : i32
    %c0_i32_1 = arith.constant 0 : i32
    return %c0_i32, %c0_i32_0 : i32, i32
  }
  func.func @transform_17(%arg0: i32) -> (i32, i32) {
    %c0_i32 = arith.constant 0 : i32
    %c0_i32_0 = arith.constant 0 : i32
    %c0_i32_1 = arith.constant 0 : i32
    return %c0_i32, %c0_i32_0 : i32, i32
  }
  func.func @transform_18(%arg0: i32) -> (i32, i32) {
    %c0_i32 = arith.constant 0 : i32
    %c0_i32_0 = arith.constant 0 : i32
    %c0_i32_1 = arith.constant 0 : i32
    return %c0_i32, %c0_i32_0 : i32, i32
  }
  func.func @transform_19(%arg0: i32) -> (i32, i32) {
    %c0_i32 = arith.constant 0 : i32
    %c0_i32_0 = arith.constant 0 : i32
    %c0_i32_1 = arith.constant 0 : i32
    return %c0_i32, %c0_i32_0 : i32, i32
  }
  func.func @transform_20(%arg0: i32) -> (i32, i32, i32) {
    %c0_i32 = arith.constant 0 : i32
    %c0_i32_0 = arith.constant 0 : i32
    %c0_i32_1 = arith.constant 0 : i32
    %c0_i32_2 = arith.constant 0 : i32
    return %c0_i32, %c0_i32_0, %c0_i32_1 : i32, i32, i32
  }
  func.func @transform_21(%arg0: i32) -> (i32, i32, i32) {
    %c0_i32 = arith.constant 0 : i32
    %c0_i32_0 = arith.constant 0 : i32
    %c0_i32_1 = arith.constant 0 : i32
    %c0_i32_2 = arith.constant 0 : i32
    return %c0_i32, %c0_i32_0, %c0_i32_1 : i32, i32, i32
  }
}

</mosaic_0001>

<llo_original>
// kernel: tpu_custom_call.1
$region0: #{tpu_custom_call.1}
  #allocation0 [shape = 'u32[]', space=smem, size = 0x4, offset = 0x4, fixed_abs, tag = 'smem constant byte address 0x4 - core index']
  #allocation1 [shape = 'u32[144,128]{1,0:T(1,128)}', space=vmem, size = 0x12000, scoped, tag = 'internal scratch']
  %s0 = inlined_call_operand.vmem [shape: bf16[32,2048], index: 0, kind: input, shape index: {}]
  %s1 = inlined_call_operand.vmem [shape: bf16[2048,64], index: 1, kind: input, shape index: {}]
  %s2 = inlined_call_operand.vmem [shape: f32[1,64], index: 2, kind: input, shape index: {}]
  %s3 = inlined_call_operand.vmem [shape: f32[1,64], index: 3, kind: input, shape index: {}]
  %s4 = inlined_call_operand.vmem [shape: f32[1,64], index: 4, kind: input, shape index: {}]
  %s5 = inlined_call_operand.vmem [shape: f32[64,64], index: 5, kind: input, shape index: {}]
  %s6 = inlined_call_operand.vmem [shape: f32[32,64], index: 6, kind: input, shape index: {}]
  %s7 = inlined_call_operand.vmem [shape: f32[8,128], index: 7, kind: input, shape index: {}]
  %s8 = inlined_call_operand.vmem [shape: f32[128,64], index: 8, kind: input, shape index: {}]
  %s9 = inlined_call_operand.vmem [shape: f32[64,128], index: 9, kind: input, shape index: {}]
  %s10 = inlined_call_operand.vmem [shape: f32[1,128], index: 10, kind: input, shape index: {}]
  %s11 = inlined_call_operand.vmem [shape: f32[64,64], index: 11, kind: input, shape index: {}]
  %s12 = inlined_call_operand.vmem [shape: f32[1,64], index: 12, kind: input, shape index: {}]
  %s13 = inlined_call_operand.vmem [shape: f32[64,64], index: 13, kind: input, shape index: {}]
  %s14 = inlined_call_operand.vmem [shape: f32[1,64], index: 14, kind: input, shape index: {}]
  %s15 = inlined_call_operand.vmem [shape: f32[64,128], index: 15, kind: input, shape index: {}]
  %s16 = inlined_call_operand.vmem [shape: f32[1,128], index: 16, kind: input, shape index: {}]
  %s17 = inlined_call_operand.hbm [shape: f32[48,128], index: 17, kind: output, shape index: {0}]
  %s18 = inlined_call_operand.hbm [shape: f32[48,128], index: 18, kind: output, shape index: {1}]
  %s19 = inlined_call_operand.hbm [shape: f32[8,8], index: 19, kind: output, shape index: {2}]
  %s20 = inlined_call_operand.hbm [shape: f32[2,16,16], index: 20, kind: output, shape index: {3}]
  %s21 = inlined_call_operand.hbm [shape: f32[2,8,16], index: 21, kind: output, shape index: {4}]
  %22 = xla_tuple %s17, %s18, %s19, %s20, %s21
  %s23 = sld [smem:[#allocation0]]
  $region110: #{tpu_custom_call.1} parent=0
    _
  %s25 = ssub.s32 1, %s23
  %s26 = scalar_select 0, %s25, %s23
  $region1: #{tpu_custom_call.1} parent=0
    #allocation2 [shape = 'u8[24576]{0}', space=vmem, size = 0x6000, scoped, tag = 'output window, operand 0, single buffered']
    #allocation3 [shape = 's32[1]{0}', space=sflag, size = 0x4, scoped, tag = 'scoped memory for tpu_custom_call.1']
    #allocation4 [shape = 'u8[24576]{0}', space=vmem, size = 0x6000, scoped, tag = 'output window, operand 1, single buffered']
    #allocation5 [shape = 's32[1]{0}', space=sflag, size = 0x4, scoped, tag = 'scoped memory for tpu_custom_call.1']
    #allocation6 [shape = 'u8[4096]{0}', space=vmem, size = 0x1000, scoped, tag = 'output window, operand 2, single buffered']
    #allocation7 [shape = 'u8[16384]{0}', space=vmem, size = 0x4000, scoped, tag = 'output window, operand 3, single buffered']
    #allocation8 [shape = 's32[1]{0}', space=sflag, size = 0x4, scoped, tag = 'scoped memory for tpu_custom_call.1']
    #allocation9 [shape = 'u8[8192]{0}', space=vmem, size = 0x2000, scoped, tag = 'output window, operand 4, single buffered']
    %27 = vsyncpa [#allocation3], 0
    %28 = vsyncpa [#allocation5], 0
    %29 = vsyncpa [#allocation8], 0
    // Predicated region
    $region2: #{tpu_custom_call.1} parent=1 // pred_check
      _
    $region3: #{tpu_custom_call.1} parent=1 // pred_check_branch
      %31 = sbr.rel (0) target = $region5
    $region4: #{tpu_custom_call.1} parent=1 // pred_region
      _
    $region5: #{tpu_custom_call.1} parent=1 // pred_fallthru
      _
    // Predicated region
    $region6: #{tpu_custom_call.1} parent=1 // pred_check
      _
    $region7: #{tpu_custom_call.1} parent=1 // pred_check_branch
      %33 = sbr.rel (0) target = $region9
    $region8: #{tpu_custom_call.1} parent=1 // pred_region
      _
    $region9: #{tpu_custom_call.1} parent=1 // pred_fallthru
      _
    // Predicated region
    $region10: #{tpu_custom_call.1} parent=1 // pred_check
      _
    $region11: #{tpu_custom_call.1} parent=1 // pred_check_branch
      %35 = sbr.rel (0) target = $region13
    $region12: #{tpu_custom_call.1} parent=1 // pred_region
      _
    $region13: #{tpu_custom_call.1} parent=1 // pred_fallthru
      _
    // Predicated region
    $region14: #{tpu_custom_call.1} parent=1 // pred_check
      _
    $region15: #{tpu_custom_call.1} parent=1 // pred_check_branch
      %37 = sbr.rel (0) target = $region17
    $region16: #{tpu_custom_call.1} parent=1 // pred_region
      _
    $region17: #{tpu_custom_call.1} parent=1 // pred_fallthru
      _
    // Predicated region
    $region18: #{tpu_custom_call.1} parent=1 // pred_check
      _
    $region19: #{tpu_custom_call.1} parent=1 // pred_check_branch
      %39 = sbr.rel (0) target = $region21
    $region20: #{tpu_custom_call.1} parent=1 // pred_region
      _
    $region21: #{tpu_custom_call.1} parent=1 // pred_fallthru
      _
    // Predicated region
    $region22: #{tpu_custom_call.1} parent=1 // pred_check
      _
    $region23: #{tpu_custom_call.1} parent=1 // pred_check_branch
      %41 = sbr.rel (0) target = $region25
    $region24: #{tpu_custom_call.1} parent=1 // pred_region
      _
    $region25: #{tpu_custom_call.1} parent=1 // pred_fallthru
      _
    // Predicated region
    $region26: #{tpu_custom_call.1} parent=1 // pred_check
      _
    $region27: #{tpu_custom_call.1} parent=1 // pred_check_branch
      %43 = sbr.rel (0) target = $region29
    $region28: #{tpu_custom_call.1} parent=1 // pred_region
      _
    $region29: #{tpu_custom_call.1} parent=1 // pred_fallthru
      _
    // Predicated region
    $region30: #{tpu_custom_call.1} parent=1 // pred_check
      _
    $region31: #{tpu_custom_call.1} parent=1 // pred_check_branch
      %45 = sbr.rel (0) target = $region33
    $region32: #{tpu_custom_call.1} parent=1 // pred_region
      _
    $region33: #{tpu_custom_call.1} parent=1 // pred_fallthru
      _
    // Predicated region
    $region34: #{tpu_custom_call.1} parent=1 // pred_check
      _
    $region35: #{tpu_custom_call.1} parent=1 // pred_check_branch
      %47 = sbr.rel (0) target = $region37
    $region36: #{tpu_custom_call.1} parent=1 // pred_region
      _
    $region37: #{tpu_custom_call.1} parent=1 // pred_fallthru
      _
    // Predicated region
    $region38: #{tpu_custom_call.1} parent=1 // pred_check
      _
    $region39: #{tpu_custom_call.1} parent=1 // pred_check_branch
      %49 = sbr.rel (0) target = $region41
    $region40: #{tpu_custom_call.1} parent=1 // pred_region
      _
    $region41: #{tpu_custom_call.1} parent=1 // pred_fallthru
      _
    // Predicated region
    $region42: #{tpu_custom_call.1} parent=1 // pred_check
      _
    $region43: #{tpu_custom_call.1} parent=1 // pred_check_branch
      %51 = sbr.rel (0) target = $region45
    $region44: #{tpu_custom_call.1} parent=1 // pred_region
      _
    $region45: #{tpu_custom_call.1} parent=1 // pred_fallthru
      _
    // Predicated region
    $region46: #{tpu_custom_call.1} parent=1 // pred_check
      _
    $region47: #{tpu_custom_call.1} parent=1 // pred_check_branch
      %53 = sbr.rel (0) target = $region49
    $region48: #{tpu_custom_call.1} parent=1 // pred_region
      _
    $region49: #{tpu_custom_call.1} parent=1 // pred_fallthru
      _
    // Predicated region
    $region50: #{tpu_custom_call.1} parent=1 // pred_check
      _
    $region51: #{tpu_custom_call.1} parent=1 // pred_check_branch
      %55 = sbr.rel (0) target = $region53
    $region52: #{tpu_custom_call.1} parent=1 // pred_region
      _
    $region53: #{tpu_custom_call.1} parent=1 // pred_fallthru
      _
    // Predicated region
    $region54: #{tpu_custom_call.1} parent=1 // pred_check
      _
    $region55: #{tpu_custom_call.1} parent=1 // pred_check_branch
      %57 = sbr.rel (0) target = $region57
    $region56: #{tpu_custom_call.1} parent=1 // pred_region
      _
    $region57: #{tpu_custom_call.1} parent=1 // pred_fallthru
      _
    // Predicated region
    $region58: #{tpu_custom_call.1} parent=1 // pred_check
      _
    $region59: #{tpu_custom_call.1} parent=1 // pred_check_branch
      %59 = sbr.rel (0) target = $region61
    $region60: #{tpu_custom_call.1} parent=1 // pred_region
      _
    $region61: #{tpu_custom_call.1} parent=1 // pred_fallthru
      _
    // Predicated region
    $region62: #{tpu_custom_call.1} parent=1 // pred_check
      _
    $region63: #{tpu_custom_call.1} parent=1 // pred_check_branch
      %61 = sbr.rel (0) target = $region65
    $region64: #{tpu_custom_call.1} parent=1 // pred_region
      _
    $region65: #{tpu_custom_call.1} parent=1 // pred_fallthru
      _
    // Predicated region
    $region66: #{tpu_custom_call.1} parent=1 // pred_check
      _
    $region67: #{tpu_custom_call.1} parent=1 // pred_check_branch
      %63 = sbr.rel (0) target = $region69
    $region68: #{tpu_custom_call.1} parent=1 // pred_region
      _
    $region69: #{tpu_custom_call.1} parent=1 // pred_fallthru
      _
    %v65 = vld [vmem:[%s0] sm:$0xff]
    %v66 = vld [vmem:[%s0 + $0x8] sm:$0xff]
    %v67 = vld [vmem:[%s0 + $0x10] sm:$0xff]
    %v68 = vld [vmem:[%s0 + $0x18] sm:$0xff]
    %v69 = vld [vmem:[%s0 + $0x20] sm:$0xff]
    %v70 = vld [vmem:[%s0 + $0x28] sm:$0xff]
    %v71 = vld [vmem:[%s0 + $0x30] sm:$0xff]
    %v72 = vld [vmem:[%s0 + $0x38] sm:$0xff]
    %v73 = vld [vmem:[%s0 + $0x40] sm:$0xff]
    %v74 = vld [vmem:[%s0 + $0x48] sm:$0xff]
    %v75 = vld [vmem:[%s0 + $0x50] sm:$0xff]
    %v76 = vld [vmem:[%s0 + $0x58] sm:$0xff]
    %v77 = vld [vmem:[%s0 + $0x60] sm:$0xff]
    %v78 = vld [vmem:[%s0 + $0x68] sm:$0xff]
    %v79 = vld [vmem:[%s0 + $0x70] sm:$0xff]
    %v80 = vld [vmem:[%s0 + $0x78] sm:$0xff]
    %v81 = vld [vmem:[%s0 + $0x80] sm:$0xff]
    %v82 = vld [vmem:[%s0 + $0x88] sm:$0xff]
    %v83 = vld [vmem:[%s0 + $0x90] sm:$0xff]
    %v84 = vld [vmem:[%s0 + $0x98] sm:$0xff]
    %v85 = vld [vmem:[%s0 + $0xa0] sm:$0xff]
    %v86 = vld [vmem:[%s0 + $0xa8] sm:$0xff]
    %v87 = vld [vmem:[%s0 + $0xb0] sm:$0xff]
    %v88 = vld [vmem:[%s0 + $0xb8] sm:$0xff]
    %v89 = vld [vmem:[%s0 + $0xc0] sm:$0xff]
    %v90 = vld [vmem:[%s0 + $0xc8] sm:$0xff]
    %v91 = vld [vmem:[%s0 + $0xd0] sm:$0xff]
    %v92 = vld [vmem:[%s0 + $0xd8] sm:$0xff]
    %v93 = vld [vmem:[%s0 + $0xe0] sm:$0xff]
    %v94 = vld [vmem:[%s0 + $0xe8] sm:$0xff]
    %v95 = vld [vmem:[%s0 + $0xf0] sm:$0xff]
    %v96 = vld [vmem:[%s0 + $0xf8] sm:$0xff]
    %v97 = vld [vmem:[%s1] sm:$0xf]
    %v98 = vld [vmem:[%s1 + $0x4] sm:$0xf]
    %v99 = vld [vmem:[%s1 + $0x8] sm:$0xf]
    %v100 = vld [vmem:[%s1 + $0xc] sm:$0xf]
    %v101 = vld [vmem:[%s1 + $0x10] sm:$0xf]
    %v102 = vld [vmem:[%s1 + $0x14] sm:$0xf]
    %v103 = vld [vmem:[%s1 + $0x18] sm:$0xf]
    %v104 = vld [vmem:[%s1 + $0x1c] sm:$0xf]
    %v105 = vld [vmem:[%s1 + $0x20] sm:$0xf]
    %v106 = vld [vmem:[%s1 + $0x24] sm:$0xf]
    %v107 = vld [vmem:[%s1 + $0x28] sm:$0xf]
    %v108 = vld [vmem:[%s1 + $0x2c] sm:$0xf]
    %v109 = vld [vmem:[%s1 + $0x30] sm:$0xf]
    %v110 = vld [vmem:[%s1 + $0x34] sm:$0xf]
    %v111 = vld [vmem:[%s1 + $0x38] sm:$0xf]
    %v112 = vld [vmem:[%s1 + $0x3c] sm:$0xf]
    %v113 = vld [vmem:[%s1 + $0x40] sm:$0xf]
    %v114 = vld [vmem:[%s1 + $0x44] sm:$0xf]
    %v115 = vld [vmem:[%s1 + $0x48] sm:$0xf]
    %v116 = vld [vmem:[%s1 + $0x4c] sm:$0xf]
    %v117 = vld [vmem:[%s1 + $0x50] sm:$0xf]
    %v118 = vld [vmem:[%s1 + $0x54] sm:$0xf]
    %v119 = vld [vmem:[%s1 + $0x58] sm:$0xf]
    %v120 = vld [vmem:[%s1 + $0x5c] sm:$0xf]
    %v121 = vld [vmem:[%s1 + $0x60] sm:$0xf]
    %v122 = vld [vmem:[%s1 + $0x64] sm:$0xf]
    %v123 = vld [vmem:[%s1 + $0x68] sm:$0xf]
    %v124 = vld [vmem:[%s1 + $0x6c] sm:$0xf]
    %v125 = vld [vmem:[%s1 + $0x70] sm:$0xf]
    %v126 = vld [vmem:[%s1 + $0x74] sm:$0xf]
    %v127 = vld [vmem:[%s1 + $0x78] sm:$0xf]
    %v128 = vld [vmem:[%s1 + $0x7c] sm:$0xf]
    %v129 = vld [vmem:[%s1 + $0x80] sm:$0xf]
    %v130 = vld [vmem:[%s1 + $0x84] sm:$0xf]
    %v131 = vld [vmem:[%s1 + $0x88] sm:$0xf]
    %v132 = vld [vmem:[%s1 + $0x8c] sm:$0xf]
    %v133 = vld [vmem:[%s1 + $0x90] sm:$0xf]
    %v134 = vld [vmem:[%s1 + $0x94] sm:$0xf]
    %v135 = vld [vmem:[%s1 + $0x98] sm:$0xf]
    %v136 = vld [vmem:[%s1 + $0x9c] sm:$0xf]
    %v137 = vld [vmem:[%s1 + $0xa0] sm:$0xf]
    %v138 = vld [vmem:[%s1 + $0xa4] sm:$0xf]
    %v139 = vld [vmem:[%s1 + $0xa8] sm:$0xf]
    %v140 = vld [vmem:[%s1 + $0xac] sm:$0xf]
    %v141 = vld [vmem:[%s1 + $0xb0] sm:$0xf]
    %v142 = vld [vmem:[%s1 + $0xb4] sm:$0xf]
    %v143 = vld [vmem:[%s1 + $0xb8] sm:$0xf]
    %v144 = vld [vmem:[%s1 + $0xbc] sm:$0xf]
    %v145 = vld [vmem:[%s1 + $0xc0] sm:$0xf]
    %v146 = vld [vmem:[%s1 + $0xc4] sm:$0xf]
    %v147 = vld [vmem:[%s1 + $0xc8] sm:$0xf]
    %v148 = vld [vmem:[%s1 + $0xcc] sm:$0xf]
    %v149 = vld [vmem:[%s1 + $0xd0] sm:$0xf]
    %v150 = vld [vmem:[%s1 + $0xd4] sm:$0xf]
    %v151 = vld [vmem:[%s1 + $0xd8] sm:$0xf]
    %v152 = vld [vmem:[%s1 + $0xdc] sm:$0xf]
    %v153 = vld [vmem:[%s1 + $0xe0] sm:$0xf]
    %v154 = vld [vmem:[%s1 + $0xe4] sm:$0xf]
    %v155 = vld [vmem:[%s1 + $0xe8] sm:$0xf]
    %v156 = vld [vmem:[%s1 + $0xec] sm:$0xf]
    %v157 = vld [vmem:[%s1 + $0xf0] sm:$0xf]
    %v158 = vld [vmem:[%s1 + $0xf4] sm:$0xf]
    %v159 = vld [vmem:[%s1 + $0xf8] sm:$0xf]
    %v160 = vld [vmem:[%s1 + $0xfc] sm:$0xf]
    %v161 = vld [vmem:[%s1 + $0x100] sm:$0xf]
    %v162 = vld [vmem:[%s1 + $0x104] sm:$0xf]
    %v163 = vld [vmem:[%s1 + $0x108] sm:$0xf]
    %v164 = vld [vmem:[%s1 + $0x10c] sm:$0xf]
    %v165 = vld [vmem:[%s1 + $0x110] sm:$0xf]
    %v166 = vld [vmem:[%s1 + $0x114] sm:$0xf]
    %v167 = vld [vmem:[%s1 + $0x118] sm:$0xf]
    %v168 = vld [vmem:[%s1 + $0x11c] sm:$0xf]
    %v169 = vld [vmem:[%s1 + $0x120] sm:$0xf]
    %v170 = vld [vmem:[%s1 + $0x124] sm:$0xf]
    %v171 = vld [vmem:[%s1 + $0x128] sm:$0xf]
    %v172 = vld [vmem:[%s1 + $0x12c] sm:$0xf]
    %v173 = vld [vmem:[%s1 + $0x130] sm:$0xf]
    %v174 = vld [vmem:[%s1 + $0x134] sm:$0xf]
    %v175 = vld [vmem:[%s1 + $0x138] sm:$0xf]
    %v176 = vld [vmem:[%s1 + $0x13c] sm:$0xf]
    %v177 = vld [vmem:[%s1 + $0x140] sm:$0xf]
    %v178 = vld [vmem:[%s1 + $0x144] sm:$0xf]
    %v179 = vld [vmem:[%s1 + $0x148] sm:$0xf]
    %v180 = vld [vmem:[%s1 + $0x14c] sm:$0xf]
    %v181 = vld [vmem:[%s1 + $0x150] sm:$0xf]
    %v182 = vld [vmem:[%s1 + $0x154] sm:$0xf]
    %v183 = vld [vmem:[%s1 + $0x158] sm:$0xf]
    %v184 = vld [vmem:[%s1 + $0x15c] sm:$0xf]
    %v185 = vld [vmem:[%s1 + $0x160] sm:$0xf]
    %v186 = vld [vmem:[%s1 + $0x164] sm:$0xf]
    %v187 = vld [vmem:[%s1 + $0x168] sm:$0xf]
    %v188 = vld [vmem:[%s1 + $0x16c] sm:$0xf]
    %v189 = vld [vmem:[%s1 + $0x170] sm:$0xf]
    %v190 = vld [vmem:[%s1 + $0x174] sm:$0xf]
    %v191 = vld [vmem:[%s1 + $0x178] sm:$0xf]
    %v192 = vld [vmem:[%s1 + $0x17c] sm:$0xf]
    %v193 = vld [vmem:[%s1 + $0x180] sm:$0xf]
    %v194 = vld [vmem:[%s1 + $0x184] sm:$0xf]
    %v195 = vld [vmem:[%s1 + $0x188] sm:$0xf]
    %v196 = vld [vmem:[%s1 + $0x18c] sm:$0xf]
    %v197 = vld [vmem:[%s1 + $0x190] sm:$0xf]
    %v198 = vld [vmem:[%s1 + $0x194] sm:$0xf]
    %v199 = vld [vmem:[%s1 + $0x198] sm:$0xf]
    %v200 = vld [vmem:[%s1 + $0x19c] sm:$0xf]
    %v201 = vld [vmem:[%s1 + $0x1a0] sm:$0xf]
    %v202 = vld [vmem:[%s1 + $0x1a4] sm:$0xf]
    %v203 = vld [vmem:[%s1 + $0x1a8] sm:$0xf]
    %v204 = vld [vmem:[%s1 + $0x1ac] sm:$0xf]
    %v205 = vld [vmem:[%s1 + $0x1b0] sm:$0xf]
    %v206 = vld [vmem:[%s1 + $0x1b4] sm:$0xf]
    %v207 = vld [vmem:[%s1 + $0x1b8] sm:$0xf]
    %v208 = vld [vmem:[%s1 + $0x1bc] sm:$0xf]
    %v209 = vld [vmem:[%s1 + $0x1c0] sm:$0xf]
    %v210 = vld [vmem:[%s1 + $0x1c4] sm:$0xf]
    %v211 = vld [vmem:[%s1 + $0x1c8] sm:$0xf]
    %v212 = vld [vmem:[%s1 + $0x1cc] sm:$0xf]
    %v213 = vld [vmem:[%s1 + $0x1d0] sm:$0xf]
    %v214 = vld [vmem:[%s1 + $0x1d4] sm:$0xf]
    %v215 = vld [vmem:[%s1 + $0x1d8] sm:$0xf]
    %v216 = vld [vmem:[%s1 + $0x1dc] sm:$0xf]
    %v217 = vld [vmem:[%s1 + $0x1e0] sm:$0xf]
    %v218 = vld [vmem:[%s1 + $0x1e4] sm:$0xf]
    %v219 = vld [vmem:[%s1 + $0x1e8] sm:$0xf]
    %v220 = vld [vmem:[%s1 + $0x1ec] sm:$0xf]
    %v221 = vld [vmem:[%s1 + $0x1f0] sm:$0xf]
    %v222 = vld [vmem:[%s1 + $0x1f4] sm:$0xf]
    %v223 = vld [vmem:[%s1 + $0x1f8] sm:$0xf]
    %v224 = vld [vmem:[%s1 + $0x1fc] sm:$0xf]
    %v225 = vld [vmem:[%s1 + $0x200] sm:$0xf]
    %v226 = vld [vmem:[%s1 + $0x204] sm:$0xf]
    %v227 = vld [vmem:[%s1 + $0x208] sm:$0xf]
    %v228 = vld [vmem:[%s1 + $0x20c] sm:$0xf]
    %v229 = vld [vmem:[%s1 + $0x210] sm:$0xf]
    %v230 = vld [vmem:[%s1 + $0x214] sm:$0xf]
    %v231 = vld [vmem:[%s1 + $0x218] sm:$0xf]
    %v232 = vld [vmem:[%s1 + $0x21c] sm:$0xf]
    %v233 = vld [vmem:[%s1 + $0x220] sm:$0xf]
    %v234 = vld [vmem:[%s1 + $0x224] sm:$0xf]
    %v235 = vld [vmem:[%s1 + $0x228] sm:$0xf]
    %v236 = vld [vmem:[%s1 + $0x22c] sm:$0xf]
    %v237 = vld [vmem:[%s1 + $0x230] sm:$0xf]
    %v238 = vld [vmem:[%s1 + $0x234] sm:$0xf]
    %v239 = vld [vmem:[%s1 + $0x238] sm:$0xf]
    %v240 = vld [vmem:[%s1 + $0x23c] sm:$0xf]
    %v241 = vld [vmem:[%s1 + $0x240] sm:$0xf]
    %v242 = vld [vmem:[%s1 + $0x244] sm:$0xf]
    %v243 = vld [vmem:[%s1 + $0x248] sm:$0xf]
    %v244 = vld [vmem:[%s1 + $0x24c] sm:$0xf]
    %v245 = vld [vmem:[%s1 + $0x250] sm:$0xf]
    %v246 = vld [vmem:[%s1 + $0x254] sm:$0xf]
    %v247 = vld [vmem:[%s1 + $0x258] sm:$0xf]
    %v248 = vld [vmem:[%s1 + $0x25c] sm:$0xf]
    %v249 = vld [vmem:[%s1 + $0x260] sm:$0xf]
    %v250 = vld [vmem:[%s1 + $0x264] sm:$0xf]
    %v251 = vld [vmem:[%s1 + $0x268] sm:$0xf]
    %v252 = vld [vmem:[%s1 + $0x26c] sm:$0xf]
    %v253 = vld [vmem:[%s1 + $0x270] sm:$0xf]
    %v254 = vld [vmem:[%s1 + $0x274] sm:$0xf]
    %v255 = vld [vmem:[%s1 + $0x278] sm:$0xf]
    %v256 = vld [vmem:[%s1 + $0x27c] sm:$0xf]
    %v257 = vld [vmem:[%s1 + $0x280] sm:$0xf]
    %v258 = vld [vmem:[%s1 + $0x284] sm:$0xf]
    %v259 = vld [vmem:[%s1 + $0x288] sm:$0xf]
    %v260 = vld [vmem:[%s1 + $0x28c] sm:$0xf]
    %v261 = vld [vmem:[%s1 + $0x290] sm:$0xf]
    %v262 = vld [vmem:[%s1 + $0x294] sm:$0xf]
    %v263 = vld [vmem:[%s1 + $0x298] sm:$0xf]
    %v264 = vld [vmem:[%s1 + $0x29c] sm:$0xf]
    %v265 = vld [vmem:[%s1 + $0x2a0] sm:$0xf]
    %v266 = vld [vmem:[%s1 + $0x2a4] sm:$0xf]
    %v267 = vld [vmem:[%s1 + $0x2a8] sm:$0xf]
    %v268 = vld [vmem:[%s1 + $0x2ac] sm:$0xf]
    %v269 = vld [vmem:[%s1 + $0x2b0] sm:$0xf]
    %v270 = vld [vmem:[%s1 + $0x2b4] sm:$0xf]
    %v271 = vld [vmem:[%s1 + $0x2b8] sm:$0xf]
    %v272 = vld [vmem:[%s1 + $0x2bc] sm:$0xf]
    %v273 = vld [vmem:[%s1 + $0x2c0] sm:$0xf]
    %v274 = vld [vmem:[%s1 + $0x2c4] sm:$0xf]
    %v275 = vld [vmem:[%s1 + $0x2c8] sm:$0xf]
    %v276 = vld [vmem:[%s1 + $0x2cc] sm:$0xf]
    %v277 = vld [vmem:[%s1 + $0x2d0] sm:$0xf]
    %v278 = vld [vmem:[%s1 + $0x2d4] sm:$0xf]
    %v279 = vld [vmem:[%s1 + $0x2d8] sm:$0xf]
    %v280 = vld [vmem:[%s1 + $0x2dc] sm:$0xf]
    %v281 = vld [vmem:[%s1 + $0x2e0] sm:$0xf]
    %v282 = vld [vmem:[%s1 + $0x2e4] sm:$0xf]
    %v283 = vld [vmem:[%s1 + $0x2e8] sm:$0xf]
    %v284 = vld [vmem:[%s1 + $0x2ec] sm:$0xf]
    %v285 = vld [vmem:[%s1 + $0x2f0] sm:$0xf]
    %v286 = vld [vmem:[%s1 + $0x2f4] sm:$0xf]
    %v287 = vld [vmem:[%s1 + $0x2f8] sm:$0xf]
    %v288 = vld [vmem:[%s1 + $0x2fc] sm:$0xf]
    %v289 = vld [vmem:[%s1 + $0x300] sm:$0xf]
    %v290 = vld [vmem:[%s1 + $0x304] sm:$0xf]
    %v291 = vld [vmem:[%s1 + $0x308] sm:$0xf]
    %v292 = vld [vmem:[%s1 + $0x30c] sm:$0xf]
    %v293 = vld [vmem:[%s1 + $0x310] sm:$0xf]
    %v294 = vld [vmem:[%s1 + $0x314] sm:$0xf]
    %v295 = vld [vmem:[%s1 + $0x318] sm:$0xf]
    %v296 = vld [vmem:[%s1 + $0x31c] sm:$0xf]
    %v297 = vld [vmem:[%s1 + $0x320] sm:$0xf]
    %v298 = vld [vmem:[%s1 + $0x324] sm:$0xf]
    %v299 = vld [vmem:[%s1 + $0x328] sm:$0xf]
    %v300 = vld [vmem:[%s1 + $0x32c] sm:$0xf]
    %v301 = vld [vmem:[%s1 + $0x330] sm:$0xf]
    %v302 = vld [vmem:[%s1 + $0x334] sm:$0xf]
    %v303 = vld [vmem:[%s1 + $0x338] sm:$0xf]
    %v304 = vld [vmem:[%s1 + $0x33c] sm:$0xf]
    %v305 = vld [vmem:[%s1 + $0x340] sm:$0xf]
    %v306 = vld [vmem:[%s1 + $0x344] sm:$0xf]
    %v307 = vld [vmem:[%s1 + $0x348] sm:$0xf]
    %v308 = vld [vmem:[%s1 + $0x34c] sm:$0xf]
    %v309 = vld [vmem:[%s1 + $0x350] sm:$0xf]
    %v310 = vld [vmem:[%s1 + $0x354] sm:$0xf]
    %v311 = vld [vmem:[%s1 + $0x358] sm:$0xf]
    %v312 = vld [vmem:[%s1 + $0x35c] sm:$0xf]
    %v313 = vld [vmem:[%s1 + $0x360] sm:$0xf]
    %v314 = vld [vmem:[%s1 + $0x364] sm:$0xf]
    %v315 = vld [vmem:[%s1 + $0x368] sm:$0xf]
    %v316 = vld [vmem:[%s1 + $0x36c] sm:$0xf]
    %v317 = vld [vmem:[%s1 + $0x370] sm:$0xf]
    %v318 = vld [vmem:[%s1 + $0x374] sm:$0xf]
    %v319 = vld [vmem:[%s1 + $0x378] sm:$0xf]
    %v320 = vld [vmem:[%s1 + $0x37c] sm:$0xf]
    %v321 = vld [vmem:[%s1 + $0x380] sm:$0xf]
    %v322 = vld [vmem:[%s1 + $0x384] sm:$0xf]
    %v323 = vld [vmem:[%s1 + $0x388] sm:$0xf]
    %v324 = vld [vmem:[%s1 + $0x38c] sm:$0xf]
    %v325 = vld [vmem:[%s1 + $0x390] sm:$0xf]
    %v326 = vld [vmem:[%s1 + $0x394] sm:$0xf]
    %v327 = vld [vmem:[%s1 + $0x398] sm:$0xf]
    %v328 = vld [vmem:[%s1 + $0x39c] sm:$0xf]
    %v329 = vld [vmem:[%s1 + $0x3a0] sm:$0xf]
    %v330 = vld [vmem:[%s1 + $0x3a4] sm:$0xf]
    %v331 = vld [vmem:[%s1 + $0x3a8] sm:$0xf]
    %v332 = vld [vmem:[%s1 + $0x3ac] sm:$0xf]
    %v333 = vld [vmem:[%s1 + $0x3b0] sm:$0xf]
    %v334 = vld [vmem:[%s1 + $0x3b4] sm:$0xf]
    %v335 = vld [vmem:[%s1 + $0x3b8] sm:$0xf]
    %v336 = vld [vmem:[%s1 + $0x3bc] sm:$0xf]
    %v337 = vld [vmem:[%s1 + $0x3c0] sm:$0xf]
    %v338 = vld [vmem:[%s1 + $0x3c4] sm:$0xf]
    %v339 = vld [vmem:[%s1 + $0x3c8] sm:$0xf]
    %v340 = vld [vmem:[%s1 + $0x3cc] sm:$0xf]
    %v341 = vld [vmem:[%s1 + $0x3d0] sm:$0xf]
    %v342 = vld [vmem:[%s1 + $0x3d4] sm:$0xf]
    %v343 = vld [vmem:[%s1 + $0x3d8] sm:$0xf]
    %v344 = vld [vmem:[%s1 + $0x3dc] sm:$0xf]
    %v345 = vld [vmem:[%s1 + $0x3e0] sm:$0xf]
    %v346 = vld [vmem:[%s1 + $0x3e4] sm:$0xf]
    %v347 = vld [vmem:[%s1 + $0x3e8] sm:$0xf]
    %v348 = vld [vmem:[%s1 + $0x3ec] sm:$0xf]
    %v349 = vld [vmem:[%s1 + $0x3f0] sm:$0xf]
    %v350 = vld [vmem:[%s1 + $0x3f4] sm:$0xf]
    %v351 = vld [vmem:[%s1 + $0x3f8] sm:$0xf]
    %v352 = vld [vmem:[%s1 + $0x3fc] sm:$0xf]
    %v353 = vld [vmem:[%s2] sm:$0x1]
    %v355 = vlaneseq
    %v356 = vshrl.u32 %v355, 7
    %v357 = vsub.s32 0, %v356
    %v358 = vrot.slane %v353, %v357
    %v392 = vunpack.c.l.b16 %v65
    %v393 = vunpack.c.h.b16 %v65
    %v394 = vunpack.c.l.b16 %v66
    %v395 = vunpack.c.h.b16 %v66
    %v396 = vunpack.c.l.b16 %v67
    %v397 = vunpack.c.h.b16 %v67
    %v398 = vunpack.c.l.b16 %v68
    %v399 = vunpack.c.h.b16 %v68
    %v400 = vunpack.c.l.b16 %v69
    %v401 = vunpack.c.h.b16 %v69
    %v402 = vunpack.c.l.b16 %v70
    %v403 = vunpack.c.h.b16 %v70
    %v404 = vunpack.c.l.b16 %v71
    %v405 = vunpack.c.h.b16 %v71
    %v406 = vunpack.c.l.b16 %v72
    %v407 = vunpack.c.h.b16 %v72
    %v408 = vunpack.c.l.b16 %v73
    %v409 = vunpack.c.h.b16 %v73
    %v410 = vunpack.c.l.b16 %v74
    %v411 = vunpack.c.h.b16 %v74
    %v412 = vunpack.c.l.b16 %v75
    %v413 = vunpack.c.h.b16 %v75
    %v414 = vunpack.c.l.b16 %v76
    %v415 = vunpack.c.h.b16 %v76
    %v416 = vunpack.c.l.b16 %v77
    %v417 = vunpack.c.h.b16 %v77
    %v418 = vunpack.c.l.b16 %v78
    %v419 = vunpack.c.h.b16 %v78
    %v420 = vunpack.c.l.b16 %v79
    %v421 = vunpack.c.h.b16 %v79
    %v422 = vunpack.c.l.b16 %v80
    %v423 = vunpack.c.h.b16 %v80
    %v424 = vunpack.c.l.b16 %v81
    %v425 = vunpack.c.h.b16 %v81
    %v426 = vunpack.c.l.b16 %v82
    %v427 = vunpack.c.h.b16 %v82
    %v428 = vunpack.c.l.b16 %v83
    %v429 = vunpack.c.h.b16 %v83
    %v430 = vunpack.c.l.b16 %v84
    %v431 = vunpack.c.h.b16 %v84
    %v432 = vunpack.c.l.b16 %v85
    %v433 = vunpack.c.h.b16 %v85
    %v434 = vunpack.c.l.b16 %v86
    %v435 = vunpack.c.h.b16 %v86
    %v436 = vunpack.c.l.b16 %v87
    %v437 = vunpack.c.h.b16 %v87
    %v438 = vunpack.c.l.b16 %v88
    %v439 = vunpack.c.h.b16 %v88
    %v440 = vunpack.c.l.b16 %v89
    %v441 = vunpack.c.h.b16 %v89
    %v442 = vunpack.c.l.b16 %v90
    %v443 = vunpack.c.h.b16 %v90
    %v444 = vunpack.c.l.b16 %v91
    %v445 = vunpack.c.h.b16 %v91
    %v446 = vunpack.c.l.b16 %v92
    %v447 = vunpack.c.h.b16 %v92
    %v448 = vunpack.c.l.b16 %v93
    %v449 = vunpack.c.h.b16 %v93
    %v450 = vunpack.c.l.b16 %v94
    %v451 = vunpack.c.h.b16 %v94
    %v452 = vunpack.c.l.b16 %v95
    %v453 = vunpack.c.h.b16 %v95
    %v454 = vunpack.c.l.b16 %v96
    %v455 = vunpack.c.h.b16 %v96
    %v456 = vpack.c.b16 %v408, %v392
    %v457 = vpack.c.b16 %v409, %v393
    %v458 = vpack.c.b16 %v410, %v394
    %v459 = vpack.c.b16 %v411, %v395
    %v460 = vpack.c.b16 %v412, %v396
    %v461 = vpack.c.b16 %v413, %v397
    %v462 = vpack.c.b16 %v414, %v398
    %v463 = vpack.c.b16 %v415, %v399
    %v464 = vpack.c.b16 %v416, %v400
    %v465 = vpack.c.b16 %v417, %v401
    %v466 = vpack.c.b16 %v418, %v402
    %v467 = vpack.c.b16 %v419, %v403
    %v468 = vpack.c.b16 %v420, %v404
    %v469 = vpack.c.b16 %v421, %v405
    %v470 = vpack.c.b16 %v422, %v406
    %v471 = vpack.c.b16 %v423, %v407
    %v472 = vpack.c.b16 %v440, %v424
    %v473 = vpack.c.b16 %v441, %v425
    %v474 = vpack.c.b16 %v442, %v426
    %v475 = vpack.c.b16 %v443, %v427
    %v476 = vpack.c.b16 %v444, %v428
    %v477 = vpack.c.b16 %v445, %v429
    %v478 = vpack.c.b16 %v446, %v430
    %v479 = vpack.c.b16 %v447, %v431
    %v480 = vpack.c.b16 %v448, %v432
    %v481 = vpack.c.b16 %v449, %v433
    %v482 = vpack.c.b16 %v450, %v434
    %v483 = vpack.c.b16 %v451, %v435
    %v484 = vpack.c.b16 %v452, %v436
    %v485 = vpack.c.b16 %v453, %v437
    %v486 = vpack.c.b16 %v454, %v438
    %v487 = vpack.c.b16 %v455, %v439
    %v776 = vunpack.c.l.b16 %v97
    %v777 = vunpack.c.l.b16 %v98
    %v778 = vunpack.c.l.b16 %v99
    %v779 = vunpack.c.l.b16 %v100
    %v780 = vunpack.c.l.b16 %v101
    %v781 = vunpack.c.l.b16 %v102
    %v782 = vunpack.c.l.b16 %v103
    %v783 = vunpack.c.l.b16 %v104
    %v784 = vunpack.c.l.b16 %v105
    %v785 = vunpack.c.l.b16 %v106
    %v786 = vunpack.c.l.b16 %v107
    %v787 = vunpack.c.l.b16 %v108
    %v788 = vunpack.c.l.b16 %v109
    %v789 = vunpack.c.l.b16 %v110
    %v790 = vunpack.c.l.b16 %v111
    %v791 = vunpack.c.l.b16 %v112
    %v792 = vunpack.c.l.b16 %v113
    %v793 = vunpack.c.l.b16 %v114
    %v794 = vunpack.c.l.b16 %v115
    %v795 = vunpack.c.l.b16 %v116
    %v796 = vunpack.c.l.b16 %v117
    %v797 = vunpack.c.l.b16 %v118
    %v798 = vunpack.c.l.b16 %v119
    %v799 = vunpack.c.l.b16 %v120
    %v800 = vunpack.c.l.b16 %v121
    %v801 = vunpack.c.l.b16 %v122
    %v802 = vunpack.c.l.b16 %v123
    %v803 = vunpack.c.l.b16 %v124
    %v804 = vunpack.c.l.b16 %v125
    %v805 = vunpack.c.l.b16 %v126
    %v806 = vunpack.c.l.b16 %v127
    %v807 = vunpack.c.l.b16 %v128
    %v808 = vunpack.c.l.b16 %v129
    %v809 = vunpack.c.l.b16 %v130
    %v810 = vunpack.c.l.b16 %v131
    %v811 = vunpack.c.l.b16 %v132
    %v812 = vunpack.c.l.b16 %v133
    %v813 = vunpack.c.l.b16 %v134
    %v814 = vunpack.c.l.b16 %v135
    %v815 = vunpack.c.l.b16 %v136
    %v816 = vunpack.c.l.b16 %v137
    %v817 = vunpack.c.l.b16 %v138
    %v818 = vunpack.c.l.b16 %v139
    %v819 = vunpack.c.l.b16 %v140
    %v820 = vunpack.c.l.b16 %v141
    %v821 = vunpack.c.l.b16 %v142
    %v822 = vunpack.c.l.b16 %v143
    %v823 = vunpack.c.l.b16 %v144
    %v824 = vunpack.c.l.b16 %v145
    %v825 = vunpack.c.l.b16 %v146
    %v826 = vunpack.c.l.b16 %v147
    %v827 = vunpack.c.l.b16 %v148
    %v828 = vunpack.c.l.b16 %v149
    %v829 = vunpack.c.l.b16 %v150
    %v830 = vunpack.c.l.b16 %v151
    %v831 = vunpack.c.l.b16 %v152
    %v832 = vunpack.c.l.b16 %v153
    %v833 = vunpack.c.l.b16 %v154
    %v834 = vunpack.c.l.b16 %v155
    %v835 = vunpack.c.l.b16 %v156
    %v836 = vunpack.c.l.b16 %v157
    %v837 = vunpack.c.l.b16 %v158
    %v838 = vunpack.c.l.b16 %v159
    %v839 = vunpack.c.l.b16 %v160
    %v840 = vunpack.c.l.b16 %v161
    %v841 = vunpack.c.l.b16 %v162
    %v842 = vunpack.c.l.b16 %v163
    %v843 = vunpack.c.l.b16 %v164
    %v844 = vunpack.c.l.b16 %v165
    %v845 = vunpack.c.l.b16 %v166
    %v846 = vunpack.c.l.b16 %v167
    %v847 = vunpack.c.l.b16 %v168
    %v848 = vunpack.c.l.b16 %v169
    %v849 = vunpack.c.l.b16 %v170
    %v850 = vunpack.c.l.b16 %v171
    %v851 = vunpack.c.l.b16 %v172
    %v852 = vunpack.c.l.b16 %v173
    %v853 = vunpack.c.l.b16 %v174
    %v854 = vunpack.c.l.b16 %v175
    %v855 = vunpack.c.l.b16 %v176
    %v856 = vunpack.c.l.b16 %v177
    %v857 = vunpack.c.l.b16 %v178
    %v858 = vunpack.c.l.b16 %v179
    %v859 = vunpack.c.l.b16 %v180
    %v860 = vunpack.c.l.b16 %v181
    %v861 = vunpack.c.l.b16 %v182
    %v862 = vunpack.c.l.b16 %v183
    %v863 = vunpack.c.l.b16 %v184
    %v864 = vunpack.c.l.b16 %v185
    %v865 = vunpack.c.l.b16 %v186
    %v866 = vunpack.c.l.b16 %v187
    %v867 = vunpack.c.l.b16 %v188
    %v868 = vunpack.c.l.b16 %v189
    %v869 = vunpack.c.l.b16 %v190
    %v870 = vunpack.c.l.b16 %v191
    %v871 = vunpack.c.l.b16 %v192
    %v872 = vunpack.c.l.b16 %v193
    %v873 = vunpack.c.l.b16 %v194
    %v874 = vunpack.c.l.b16 %v195
    %v875 = vunpack.c.l.b16 %v196
    %v876 = vunpack.c.l.b16 %v197
    %v877 = vunpack.c.l.b16 %v198
    %v878 = vunpack.c.l.b16 %v199
    %v879 = vunpack.c.l.b16 %v200
    %v880 = vunpack.c.l.b16 %v201
    %v881 = vunpack.c.l.b16 %v202
    %v882 = vunpack.c.l.b16 %v203
    %v883 = vunpack.c.l.b16 %v204
    %v884 = vunpack.c.l.b16 %v205
    %v885 = vunpack.c.l.b16 %v206
    %v886 = vunpack.c.l.b16 %v207
    %v887 = vunpack.c.l.b16 %v208
    %v888 = vunpack.c.l.b16 %v209
    %v889 = vunpack.c.l.b16 %v210
    %v890 = vunpack.c.l.b16 %v211
    %v891 = vunpack.c.l.b16 %v212
    %v892 = vunpack.c.l.b16 %v213
    %v893 = vunpack.c.l.b16 %v214
    %v894 = vunpack.c.l.b16 %v215
    %v895 = vunpack.c.l.b16 %v216
    %v896 = vunpack.c.l.b16 %v217
    %v897 = vunpack.c.l.b16 %v218
    %v898 = vunpack.c.l.b16 %v219
    %v899 = vunpack.c.l.b16 %v220
    %v900 = vunpack.c.l.b16 %v221
    %v901 = vunpack.c.l.b16 %v222
    %v902 = vunpack.c.l.b16 %v223
    %v903 = vunpack.c.l.b16 %v224
    %v904 = vunpack.c.l.b16 %v225
    %v905 = vunpack.c.l.b16 %v226
    %v906 = vunpack.c.l.b16 %v227
    %v907 = vunpack.c.l.b16 %v228
    %v908 = vunpack.c.l.b16 %v229
    %v909 = vunpack.c.l.b16 %v230
    %v910 = vunpack.c.l.b16 %v231
    %v911 = vunpack.c.l.b16 %v232
    %v912 = vunpack.c.l.b16 %v233
    %v913 = vunpack.c.l.b16 %v234
    %v914 = vunpack.c.l.b16 %v235
    %v915 = vunpack.c.l.b16 %v236
    %v916 = vunpack.c.l.b16 %v237
    %v917 = vunpack.c.l.b16 %v238
    %v918 = vunpack.c.l.b16 %v239
    %v919 = vunpack.c.l.b16 %v240
    %v920 = vunpack.c.l.b16 %v241
    %v921 = vunpack.c.l.b16 %v242
    %v922 = vunpack.c.l.b16 %v243
    %v923 = vunpack.c.l.b16 %v244
    %v924 = vunpack.c.l.b16 %v245
    %v925 = vunpack.c.l.b16 %v246
    %v926 = vunpack.c.l.b16 %v247
    %v927 = vunpack.c.l.b16 %v248
    %v928 = vunpack.c.l.b16 %v249
    %v929 = vunpack.c.l.b16 %v250
    %v930 = vunpack.c.l.b16 %v251
    %v931 = vunpack.c.l.b16 %v252
    %v932 = vunpack.c.l.b16 %v253
    %v933 = vunpack.c.l.b16 %v254
    %v934 = vunpack.c.l.b16 %v255
    %v935 = vunpack.c.l.b16 %v256
    %v936 = vunpack.c.l.b16 %v257
    %v937 = vunpack.c.l.b16 %v258
    %v938 = vunpack.c.l.b16 %v259
    %v939 = vunpack.c.l.b16 %v260
    %v940 = vunpack.c.l.b16 %v261
    %v941 = vunpack.c.l.b16 %v262
    %v942 = vunpack.c.l.b16 %v263
    %v943 = vunpack.c.l.b16 %v264
    %v944 = vunpack.c.l.b16 %v265
    %v945 = vunpack.c.l.b16 %v266
    %v946 = vunpack.c.l.b16 %v267
    %v947 = vunpack.c.l.b16 %v268
    %v948 = vunpack.c.l.b16 %v269
    %v949 = vunpack.c.l.b16 %v270
    %v950 = vunpack.c.l.b16 %v271
    %v951 = vunpack.c.l.b16 %v272
    %v952 = vunpack.c.l.b16 %v273
    %v953 = vunpack.c.l.b16 %v274
    %v954 = vunpack.c.l.b16 %v275
    %v955 = vunpack.c.l.b16 %v276
    %v956 = vunpack.c.l.b16 %v277
    %v957 = vunpack.c.l.b16 %v278
    %v958 = vunpack.c.l.b16 %v279
    %v959 = vunpack.c.l.b16 %v280
    %v960 = vunpack.c.l.b16 %v281
    %v961 = vunpack.c.l.b16 %v282
    %v962 = vunpack.c.l.b16 %v283
    %v963 = vunpack.c.l.b16 %v284
    %v964 = vunpack.c.l.b16 %v285
    %v965 = vunpack.c.l.b16 %v286
    %v966 = vunpack.c.l.b16 %v287
    %v967 = vunpack.c.l.b16 %v288
    %v968 = vunpack.c.l.b16 %v289
    %v969 = vunpack.c.l.b16 %v290
    %v970 = vunpack.c.l.b16 %v291
    %v971 = vunpack.c.l.b16 %v292
    %v972 = vunpack.c.l.b16 %v293
    %v973 = vunpack.c.l.b16 %v294
    %v974 = vunpack.c.l.b16 %v295
    %v975 = vunpack.c.l.b16 %v296
    %v976 = vunpack.c.l.b16 %v297
    %v977 = vunpack.c.l.b16 %v298
    %v978 = vunpack.c.l.b16 %v299
    %v979 = vunpack.c.l.b16 %v300
    %v980 = vunpack.c.l.b16 %v301
    %v981 = vunpack.c.l.b16 %v302
    %v982 = vunpack.c.l.b16 %v303
    %v983 = vunpack.c.l.b16 %v304
    %v984 = vunpack.c.l.b16 %v305
    %v985 = vunpack.c.l.b16 %v306
    %v986 = vunpack.c.l.b16 %v307
    %v987 = vunpack.c.l.b16 %v308
    %v988 = vunpack.c.l.b16 %v309
    %v989 = vunpack.c.l.b16 %v310
    %v990 = vunpack.c.l.b16 %v311
    %v991 = vunpack.c.l.b16 %v312
    %v992 = vunpack.c.l.b16 %v313
    %v993 = vunpack.c.l.b16 %v314
    %v994 = vunpack.c.l.b16 %v315
    %v995 = vunpack.c.l.b16 %v316
    %v996 = vunpack.c.l.b16 %v317
    %v997 = vunpack.c.l.b16 %v318
    %v998 = vunpack.c.l.b16 %v319
    %v999 = vunpack.c.l.b16 %v320
    %v1000 = vunpack.c.l.b16 %v321
    %v1001 = vunpack.c.l.b16 %v322
    %v1002 = vunpack.c.l.b16 %v323
    %v1003 = vunpack.c.l.b16 %v324
    %v1004 = vunpack.c.l.b16 %v325
    %v1005 = vunpack.c.l.b16 %v326
    %v1006 = vunpack.c.l.b16 %v327
    %v1007 = vunpack.c.l.b16 %v328
    %v1008 = vunpack.c.l.b16 %v329
    %v1009 = vunpack.c.l.b16 %v330
    %v1010 = vunpack.c.l.b16 %v331
    %v1011 = vunpack.c.l.b16 %v332
    %v1012 = vunpack.c.l.b16 %v333
    %v1013 = vunpack.c.l.b16 %v334
    %v1014 = vunpack.c.l.b16 %v335
    %v1015 = vunpack.c.l.b16 %v336
    %v1016 = vunpack.c.l.b16 %v337
    %v1017 = vunpack.c.l.b16 %v338
    %v1018 = vunpack.c.l.b16 %v339
    %v1019 = vunpack.c.l.b16 %v340
    %v1020 = vunpack.c.l.b16 %v341
    %v1021 = vunpack.c.l.b16 %v342
    %v1022 = vunpack.c.l.b16 %v343
    %v1023 = vunpack.c.l.b16 %v344
    %v1024 = vunpack.c.l.b16 %v345
    %v1025 = vunpack.c.l.b16 %v346
    %v1026 = vunpack.c.l.b16 %v347
    %v1027 = vunpack.c.l.b16 %v348
    %v1028 = vunpack.c.l.b16 %v349
    %v1029 = vunpack.c.l.b16 %v350
    %v1030 = vunpack.c.l.b16 %v351
    %v1031 = vunpack.c.l.b16 %v352
    %v1032 = vpack.c.b16 %v777, %v776
    %v1033 = vpack.c.b16 %v779, %v778
    %v1034 = vpack.c.b16 %v781, %v780
    %v1035 = vpack.c.b16 %v783, %v782
    %v1036 = vpack.c.b16 %v785, %v784
    %v1037 = vpack.c.b16 %v787, %v786
    %v1038 = vpack.c.b16 %v789, %v788
    %v1039 = vpack.c.b16 %v791, %v790
    %v1040 = vpack.c.b16 %v793, %v792
    %v1041 = vpack.c.b16 %v795, %v794
    %v1042 = vpack.c.b16 %v797, %v796
    %v1043 = vpack.c.b16 %v799, %v798
    %v1044 = vpack.c.b16 %v801, %v800
    %v1045 = vpack.c.b16 %v803, %v802
    %v1046 = vpack.c.b16 %v805, %v804
    %v1047 = vpack.c.b16 %v807, %v806
    %v1048 = vpack.c.b16 %v809, %v808
    %v1049 = vpack.c.b16 %v811, %v810
    %v1050 = vpack.c.b16 %v813, %v812
    %v1051 = vpack.c.b16 %v815, %v814
    %v1052 = vpack.c.b16 %v817, %v816
    %v1053 = vpack.c.b16 %v819, %v818
    %v1054 = vpack.c.b16 %v821, %v820
    %v1055 = vpack.c.b16 %v823, %v822
    %v1056 = vpack.c.b16 %v825, %v824
    %v1057 = vpack.c.b16 %v827, %v826
    %v1058 = vpack.c.b16 %v829, %v828
    %v1059 = vpack.c.b16 %v831, %v830
    %v1060 = vpack.c.b16 %v833, %v832
    %v1061 = vpack.c.b16 %v835, %v834
    %v1062 = vpack.c.b16 %v837, %v836
    %v1063 = vpack.c.b16 %v839, %v838
    %v1064 = vpack.c.b16 %v841, %v840
    %v1065 = vpack.c.b16 %v843, %v842
    %v1066 = vpack.c.b16 %v845, %v844
    %v1067 = vpack.c.b16 %v847, %v846
    %v1068 = vpack.c.b16 %v849, %v848
    %v1069 = vpack.c.b16 %v851, %v850
    %v1070 = vpack.c.b16 %v853, %v852
    %v1071 = vpack.c.b16 %v855, %v854
    %v1072 = vpack.c.b16 %v857, %v856
    %v1073 = vpack.c.b16 %v859, %v858
    %v1074 = vpack.c.b16 %v861, %v860
    %v1075 = vpack.c.b16 %v863, %v862
    %v1076 = vpack.c.b16 %v865, %v864
    %v1077 = vpack.c.b16 %v867, %v866
    %v1078 = vpack.c.b16 %v869, %v868
    %v1079 = vpack.c.b16 %v871, %v870
    %v1080 = vpack.c.b16 %v873, %v872
    %v1081 = vpack.c.b16 %v875, %v874
    %v1082 = vpack.c.b16 %v877, %v876
    %v1083 = vpack.c.b16 %v879, %v878
    %v1084 = vpack.c.b16 %v881, %v880
    %v1085 = vpack.c.b16 %v883, %v882
    %v1086 = vpack.c.b16 %v885, %v884
    %v1087 = vpack.c.b16 %v887, %v886
    %v1088 = vpack.c.b16 %v889, %v888
    %v1089 = vpack.c.b16 %v891, %v890
    %v1090 = vpack.c.b16 %v893, %v892
    %v1091 = vpack.c.b16 %v895, %v894
    %v1092 = vpack.c.b16 %v897, %v896
    %v1093 = vpack.c.b16 %v899, %v898
    %v1094 = vpack.c.b16 %v901, %v900
    %v1095 = vpack.c.b16 %v903, %v902
    %v1096 = vpack.c.b16 %v905, %v904
    %v1097 = vpack.c.b16 %v907, %v906
    %v1098 = vpack.c.b16 %v909, %v908
    %v1099 = vpack.c.b16 %v911, %v910
    %v1100 = vpack.c.b16 %v913, %v912
    %v1101 = vpack.c.b16 %v915, %v914
    %v1102 = vpack.c.b16 %v917, %v916
    %v1103 = vpack.c.b16 %v919, %v918
    %v1104 = vpack.c.b16 %v921, %v920
    %v1105 = vpack.c.b16 %v923, %v922
    %v1106 = vpack.c.b16 %v925, %v924
    %v1107 = vpack.c.b16 %v927, %v926
    %v1108 = vpack.c.b16 %v929, %v928
    %v1109 = vpack.c.b16 %v931, %v930
    %v1110 = vpack.c.b16 %v933, %v932
    %v1111 = vpack.c.b16 %v935, %v934
    %v1112 = vpack.c.b16 %v937, %v936
    %v1113 = vpack.c.b16 %v939, %v938
    %v1114 = vpack.c.b16 %v941, %v940
    %v1115 = vpack.c.b16 %v943, %v942
    %v1116 = vpack.c.b16 %v945, %v944
    %v1117 = vpack.c.b16 %v947, %v946
    %v1118 = vpack.c.b16 %v949, %v948
    %v1119 = vpack.c.b16 %v951, %v950
    %v1120 = vpack.c.b16 %v953, %v952
    %v1121 = vpack.c.b16 %v955, %v954
    %v1122 = vpack.c.b16 %v957, %v956
    %v1123 = vpack.c.b16 %v959, %v958
    %v1124 = vpack.c.b16 %v961, %v960
    %v1125 = vpack.c.b16 %v963, %v962
    %v1126 = vpack.c.b16 %v965, %v964
    %v1127 = vpack.c.b16 %v967, %v966
    %v1128 = vpack.c.b16 %v969, %v968
    %v1129 = vpack.c.b16 %v971, %v970
    %v1130 = vpack.c.b16 %v973, %v972
    %v1131 = vpack.c.b16 %v975, %v974
    %v1132 = vpack.c.b16 %v977, %v976
    %v1133 = vpack.c.b16 %v979, %v978
    %v1134 = vpack.c.b16 %v981, %v980
    %v1135 = vpack.c.b16 %v983, %v982
    %v1136 = vpack.c.b16 %v985, %v984
    %v1137 = vpack.c.b16 %v987, %v986
    %v1138 = vpack.c.b16 %v989, %v988
    %v1139 = vpack.c.b16 %v991, %v990
    %v1140 = vpack.c.b16 %v993, %v992
    %v1141 = vpack.c.b16 %v995, %v994
    %v1142 = vpack.c.b16 %v997, %v996
    %v1143 = vpack.c.b16 %v999, %v998
    %v1144 = vpack.c.b16 %v1001, %v1000
    %v1145 = vpack.c.b16 %v1003, %v1002
    %v1146 = vpack.c.b16 %v1005, %v1004
    %v1147 = vpack.c.b16 %v1007, %v1006
    %v1148 = vpack.c.b16 %v1009, %v1008
    %v1149 = vpack.c.b16 %v1011, %v1010
    %v1150 = vpack.c.b16 %v1013, %v1012
    %v1151 = vpack.c.b16 %v1015, %v1014
    %v1152 = vpack.c.b16 %v1017, %v1016
    %v1153 = vpack.c.b16 %v1019, %v1018
    %v1154 = vpack.c.b16 %v1021, %v1020
    %v1155 = vpack.c.b16 %v1023, %v1022
    %v1156 = vpack.c.b16 %v1025, %v1024
    %v1157 = vpack.c.b16 %v1027, %v1026
    %v1158 = vpack.c.b16 %v1029, %v1028
    %v1159 = vpack.c.b16 %v1031, %v1030
    %1288 = vmatprep.subr.bf16.mxu0 0
    %1289 = vmatpush1.bf16.msra.mxu0 %v1032
    %1290 = vmatprep.subr.bf16.mxu0 0
    %1291 = vmatpush1.bf16.msra.mxu0 %v1033
    %1292 = vmatprep.subr.bf16.mxu0 0
    %1293 = vmatpush1.bf16.msra.mxu0 %v1034
    %1294 = vmatprep.subr.bf16.mxu0 0
    %1295 = vmatpush1.bf16.msra.mxu0 %v1035
    %1296 = vmatprep.subr.bf16.mxu0 0
    %1297 = vmatpush1.bf16.msra.mxu0 %v1036
    %1298 = vmatprep.subr.bf16.mxu0 0
    %1299 = vmatpush1.bf16.msra.mxu0 %v1037
    %1300 = vmatprep.subr.bf16.mxu0 0
    %1301 = vmatpush1.bf16.msra.mxu0 %v1038
    %1302 = vmatprep.subr.bf16.mxu0 0
    %1303 = vmatpush1.bf16.msra.mxu0 %v1039
    %1304 = vmatprep.subr.bf16.mxu0 0
    %1305 = vmatpush1.bf16.msra.mxu0 %v1040
    %1306 = vmatprep.subr.bf16.mxu0 0
    %1307 = vmatpush1.bf16.msra.mxu0 %v1041
    %1308 = vmatprep.subr.bf16.mxu0 0
    %1309 = vmatpush1.bf16.msra.mxu0 %v1042
    %1310 = vmatprep.subr.bf16.mxu0 0
    %1311 = vmatpush1.bf16.msra.mxu0 %v1043
    %1312 = vmatprep.subr.bf16.mxu0 0
    %1313 = vmatpush1.bf16.msra.mxu0 %v1044
    %1314 = vmatprep.subr.bf16.mxu0 0
    %1315 = vmatpush1.bf16.msra.mxu0 %v1045
    %1316 = vmatprep.subr.bf16.mxu0 0
    %1317 = vmatpush1.bf16.msra.mxu0 %v1046
    %1318 = vmatprep.subr.bf16.mxu0 0
    %1319 = vmatpush1.bf16.msra.mxu0 %v1047
    %1320 = vmatprep.mubr.bf16.mxu0 %v457
    %1321 = vmatmul.mubr.bf16.gmra.mrb[0].mxu0 %v456
    %v1322 = vpop.f32.mrb[0].mxu0
    %v1323 = vadd.f32 %v358, %v1322
    %v1324 = vpop.f32.mrb[0].mxu0
    %v1325 = vpop.f32.mrb[0].mxu0
    %v1326 = vadd.f32 %v358, %v1325
    %v1327 = vpop.f32.mrb[0].mxu0
    %1328 = vmatprep.mubr.bf16.mxu0 %v473
    %1329 = vmatmul.mubr.bf16.gmra.mrb[0].mxu0 %v472
    %v1330 = vpop.f32.mrb[0].mxu0
    %v1331 = vadd.f32 %v358, %v1330
    %v1332 = vpop.f32.mrb[0].mxu0
    %v1333 = vpop.f32.mrb[0].mxu0
    %v1334 = vadd.f32 %v358, %v1333
    %v1335 = vpop.f32.mrb[0].mxu0
    %1336 = vdwg.mxu0
    %1337 = vmatprep.subr.bf16.mxu0 0
    %1338 = vmatpush1.bf16.msra.mxu0 %v1048
    %1339 = vmatprep.subr.bf16.mxu0 0
    %1340 = vmatpush1.bf16.msra.mxu0 %v1049
    %1341 = vmatprep.subr.bf16.mxu0 0
    %1342 = vmatpush1.bf16.msra.mxu0 %v1050
    %1343 = vmatprep.subr.bf16.mxu0 0
    %1344 = vmatpush1.bf16.msra.mxu0 %v1051
    %1345 = vmatprep.subr.bf16.mxu0 0
    %1346 = vmatpush1.bf16.msra.mxu0 %v1052
    %1347 = vmatprep.subr.bf16.mxu0 0
    %1348 = vmatpush1.bf16.msra.mxu0 %v1053
    %1349 = vmatprep.subr.bf16.mxu0 0
    %1350 = vmatpush1.bf16.msra.mxu0 %v1054
    %1351 = vmatprep.subr.bf16.mxu0 0
    %1352 = vmatpush1.bf16.msra.mxu0 %v1055
    %1353 = vmatprep.subr.bf16.mxu0 0
    %1354 = vmatpush1.bf16.msra.mxu0 %v1056
    %1355 = vmatprep.subr.bf16.mxu0 0
    %1356 = vmatpush1.bf16.msra.mxu0 %v1057
    %1357 = vmatprep.subr.bf16.mxu0 0
    %1358 = vmatpush1.bf16.msra.mxu0 %v1058
    %1359 = vmatprep.subr.bf16.mxu0 0
    %1360 = vmatpush1.bf16.msra.mxu0 %v1059
    %1361 = vmatprep.subr.bf16.mxu0 0
    %1362 = vmatpush1.bf16.msra.mxu0 %v1060
    %1363 = vmatprep.subr.bf16.mxu0 0
    %1364 = vmatpush1.bf16.msra.mxu0 %v1061
    %1365 = vmatprep.subr.bf16.mxu0 0
    %1366 = vmatpush1.bf16.msra.mxu0 %v1062
    %1367 = vmatprep.subr.bf16.mxu0 0
    %1368 = vmatpush1.bf16.msra.mxu0 %v1063
    %1369 = vmatprep.mubr.bf16.mxu0 %v459
    %1370 = vmatmul.mubr.bf16.gmra.mrb[0].mxu0 %v458
    %v1371 = vpop.f32.mrb[0].mxu0
    %v1372 = vadd.f32 %v1323, %v1371
    %v1373 = vpop.f32.mrb[0].mxu0
    %v1374 = vpop.f32.mrb[0].mxu0
    %v1375 = vadd.f32 %v1326, %v1374
    %v1376 = vpop.f32.mrb[0].mxu0
    %1377 = vmatprep.mubr.bf16.mxu0 %v475
    %1378 = vmatmul.mubr.bf16.gmra.mrb[0].mxu0 %v474
    %v1379 = vpop.f32.mrb[0].mxu0
    %v1380 = vadd.f32 %v1331, %v1379
    %v1381 = vpop.f32.mrb[0].mxu0
    %v1382 = vpop.f32.mrb[0].mxu0
    %v1383 = vadd.f32 %v1334, %v1382
    %v1384 = vpop.f32.mrb[0].mxu0
    %1385 = vdwg.mxu0
    %1386 = vmatprep.subr.bf16.mxu0 0
    %1387 = vmatpush1.bf16.msra.mxu0 %v1064
    %1388 = vmatprep.subr.bf16.mxu0 0
    %1389 = vmatpush1.bf16.msra.mxu0 %v1065
    %1390 = vmatprep.subr.bf16.mxu0 0
    %1391 = vmatpush1.bf16.msra.mxu0 %v1066
    %1392 = vmatprep.subr.bf16.mxu0 0
    %1393 = vmatpush1.bf16.msra.mxu0 %v1067
    %1394 = vmatprep.subr.bf16.mxu0 0
    %1395 = vmatpush1.bf16.msra.mxu0 %v1068
    %1396 = vmatprep.subr.bf16.mxu0 0
    %1397 = vmatpush1.bf16.msra.mxu0 %v1069
    %1398 = vmatprep.subr.bf16.mxu0 0
    %1399 = vmatpush1.bf16.msra.mxu0 %v1070
    %1400 = vmatprep.subr.bf16.mxu0 0
    %1401 = vmatpush1.bf16.msra.mxu0 %v1071
    %1402 = vmatprep.subr.bf16.mxu0 0
    %1403 = vmatpush1.bf16.msra.mxu0 %v1072
    %1404 = vmatprep.subr.bf16.mxu0 0
    %1405 = vmatpush1.bf16.msra.mxu0 %v1073
    %1406 = vmatprep.subr.bf16.mxu0 0
    %1407 = vmatpush1.bf16.msra.mxu0 %v1074
    %1408 = vmatprep.subr.bf16.mxu0 0
    %1409 = vmatpush1.bf16.msra.mxu0 %v1075
    %1410 = vmatprep.subr.bf16.mxu0 0
    %1411 = vmatpush1.bf16.msra.mxu0 %v1076
    %1412 = vmatprep.subr.bf16.mxu0 0
    %1413 = vmatpush1.bf16.msra.mxu0 %v1077
    %1414 = vmatprep.subr.bf16.mxu0 0
    %1415 = vmatpush1.bf16.msra.mxu0 %v1078
    %1416 = vmatprep.subr.bf16.mxu0 0
    %1417 = vmatpush1.bf16.msra.mxu0 %v1079
    %1418 = vmatprep.mubr.bf16.mxu0 %v461
    %1419 = vmatmul.mubr.bf16.gmra.mrb[0].mxu0 %v460
    %v1420 = vpop.f32.mrb[0].mxu0
    %v1421 = vadd.f32 %v1372, %v1420
    %v1422 = vpop.f32.mrb[0].mxu0
    %v1423 = vpop.f32.mrb[0].mxu0
    %v1424 = vadd.f32 %v1375, %v1423
    %v1425 = vpop.f32.mrb[0].mxu0
    %1426 = vmatprep.mubr.bf16.mxu0 %v477
    %1427 = vmatmul.mubr.bf16.gmra.mrb[0].mxu0 %v476
    %v1428 = vpop.f32.mrb[0].mxu0
    %v1429 = vadd.f32 %v1380, %v1428
    %v1430 = vpop.f32.mrb[0].mxu0
    %v1431 = vpop.f32.mrb[0].mxu0
    %v1432 = vadd.f32 %v1383, %v1431
    %v1433 = vpop.f32.mrb[0].mxu0
    %1434 = vdwg.mxu0
    %1435 = vmatprep.subr.bf16.mxu0 0
    %1436 = vmatpush1.bf16.msra.mxu0 %v1080
    %1437 = vmatprep.subr.bf16.mxu0 0
    %1438 = vmatpush1.bf16.msra.mxu0 %v1081
    %1439 = vmatprep.subr.bf16.mxu0 0
    %1440 = vmatpush1.bf16.msra.mxu0 %v1082
    %1441 = vmatprep.subr.bf16.mxu0 0
    %1442 = vmatpush1.bf16.msra.mxu0 %v1083
    %1443 = vmatprep.subr.bf16.mxu0 0
    %1444 = vmatpush1.bf16.msra.mxu0 %v1084
    %1445 = vmatprep.subr.bf16.mxu0 0
    %1446 = vmatpush1.bf16.msra.mxu0 %v1085
    %1447 = vmatprep.subr.bf16.mxu0 0
    %1448 = vmatpush1.bf16.msra.mxu0 %v1086
    %1449 = vmatprep.subr.bf16.mxu0 0
    %1450 = vmatpush1.bf16.msra.mxu0 %v1087
    %1451 = vmatprep.subr.bf16.mxu0 0
    %1452 = vmatpush1.bf16.msra.mxu0 %v1088
    %1453 = vmatprep.subr.bf16.mxu0 0
    %1454 = vmatpush1.bf16.msra.mxu0 %v1089
    %1455 = vmatprep.subr.bf16.mxu0 0
    %1456 = vmatpush1.bf16.msra.mxu0 %v1090
    %1457 = vmatprep.subr.bf16.mxu0 0
    %1458 = vmatpush1.bf16.msra.mxu0 %v1091
    %1459 = vmatprep.subr.bf16.mxu0 0
    %1460 = vmatpush1.bf16.msra.mxu0 %v1092
    %1461 = vmatprep.subr.bf16.mxu0 0
    %1462 = vmatpush1.bf16.msra.mxu0 %v1093
    %1463 = vmatprep.subr.bf16.mxu0 0
    %1464 = vmatpush1.bf16.msra.mxu0 %v1094
    %1465 = vmatprep.subr.bf16.mxu0 0
    %1466 = vmatpush1.bf16.msra.mxu0 %v1095
    %1467 = vmatprep.mubr.bf16.mxu0 %v463
    %1468 = vmatmul.mubr.bf16.gmra.mrb[0].mxu0 %v462
    %v1469 = vpop.f32.mrb[0].mxu0
    %v1470 = vadd.f32 %v1421, %v1469
    %v1471 = vpop.f32.mrb[0].mxu0
    %v1472 = vpop.f32.mrb[0].mxu0
    %v1473 = vadd.f32 %v1424, %v1472
    %v1474 = vpop.f32.mrb[0].mxu0
    %1475 = vmatprep.mubr.bf16.mxu0 %v479
    %1476 = vmatmul.mubr.bf16.gmra.mrb[0].mxu0 %v478
    %v1477 = vpop.f32.mrb[0].mxu0
    %v1478 = vadd.f32 %v1429, %v1477
    %v1479 = vpop.f32.mrb[0].mxu0
    %v1480 = vpop.f32.mrb[0].mxu0
    %v1481 = vadd.f32 %v1432, %v1480
    %v1482 = vpop.f32.mrb[0].mxu0
    %1483 = vdwg.mxu0
    %1484 = vmatprep.subr.bf16.mxu0 0
    %1485 = vmatpush1.bf16.msra.mxu0 %v1096
    %1486 = vmatprep.subr.bf16.mxu0 0
    %1487 = vmatpush1.bf16.msra.mxu0 %v1097
    %1488 = vmatprep.subr.bf16.mxu0 0
    %1489 = vmatpush1.bf16.msra.mxu0 %v1098
    %1490 = vmatprep.subr.bf16.mxu0 0
    %1491 = vmatpush1.bf16.msra.mxu0 %v1099
    %1492 = vmatprep.subr.bf16.mxu0 0
    %1493 = vmatpush1.bf16.msra.mxu0 %v1100
    %1494 = vmatprep.subr.bf16.mxu0 0
    %1495 = vmatpush1.bf16.msra.mxu0 %v1101
    %1496 = vmatprep.subr.bf16.mxu0 0
    %1497 = vmatpush1.bf16.msra.mxu0 %v1102
    %1498 = vmatprep.subr.bf16.mxu0 0
    %1499 = vmatpush1.bf16.msra.mxu0 %v1103
    %1500 = vmatprep.subr.bf16.mxu0 0
    %1501 = vmatpush1.bf16.msra.mxu0 %v1104
    %1502 = vmatprep.subr.bf16.mxu0 0
    %1503 = vmatpush1.bf16.msra.mxu0 %v1105
    %1504 = vmatprep.subr.bf16.mxu0 0
    %1505 = vmatpush1.bf16.msra.mxu0 %v1106
    %1506 = vmatprep.subr.bf16.mxu0 0
    %1507 = vmatpush1.bf16.msra.mxu0 %v1107
    %1508 = vmatprep.subr.bf16.mxu0 0
    %1509 = vmatpush1.bf16.msra.mxu0 %v1108
    %1510 = vmatprep.subr.bf16.mxu0 0
    %1511 = vmatpush1.bf16.msra.mxu0 %v1109
    %1512 = vmatprep.subr.bf16.mxu0 0
    %1513 = vmatpush1.bf16.msra.mxu0 %v1110
    %1514 = vmatprep.subr.bf16.mxu0 0
    %1515 = vmatpush1.bf16.msra.mxu0 %v1111
    %1516 = vmatprep.mubr.bf16.mxu0 %v465
    %1517 = vmatmul.mubr.bf16.gmra.mrb[0].mxu0 %v464
    %v1518 = vpop.f32.mrb[0].mxu0
    %v1519 = vadd.f32 %v1470, %v1518
    %v1520 = vpop.f32.mrb[0].mxu0
    %v1521 = vpop.f32.mrb[0].mxu0
    %v1522 = vadd.f32 %v1473, %v1521
    %v1523 = vpop.f32.mrb[0].mxu0
    %1524 = vmatprep.mubr.bf16.mxu0 %v481
    %1525 = vmatmul.mubr.bf16.gmra.mrb[0].mxu0 %v480
    %v1526 = vpop.f32.mrb[0].mxu0
    %v1527 = vadd.f32 %v1478, %v1526
    %v1528 = vpop.f32.mrb[0].mxu0
    %v1529 = vpop.f32.mrb[0].mxu0
    %v1530 = vadd.f32 %v1481, %v1529
    %v1531 = vpop.f32.mrb[0].mxu0
    %1532 = vdwg.mxu0
    %1533 = vmatprep.subr.bf16.mxu0 0
    %1534 = vmatpush1.bf16.msra.mxu0 %v1112
    %1535 = vmatprep.subr.bf16.mxu0 0
    %1536 = vmatpush1.bf16.msra.mxu0 %v1113
    %1537 = vmatprep.subr.bf16.mxu0 0
    %1538 = vmatpush1.bf16.msra.mxu0 %v1114
    %1539 = vmatprep.subr.bf16.mxu0 0
    %1540 = vmatpush1.bf16.msra.mxu0 %v1115
    %1541 = vmatprep.subr.bf16.mxu0 0
    %1542 = vmatpush1.bf16.msra.mxu0 %v1116
    %1543 = vmatprep.subr.bf16.mxu0 0
    %1544 = vmatpush1.bf16.msra.mxu0 %v1117
    %1545 = vmatprep.subr.bf16.mxu0 0
    %1546 = vmatpush1.bf16.msra.mxu0 %v1118
    %1547 = vmatprep.subr.bf16.mxu0 0
    %1548 = vmatpush1.bf16.msra.mxu0 %v1119
    %1549 = vmatprep.subr.bf16.mxu0 0
    %1550 = vmatpush1.bf16.msra.mxu0 %v1120
    %1551 = vmatprep.subr.bf16.mxu0 0
    %1552 = vmatpush1.bf16.msra.mxu0 %v1121
    %1553 = vmatprep.subr.bf16.mxu0 0
    %1554 = vmatpush1.bf16.msra.mxu0 %v1122
    %1555 = vmatprep.subr.bf16.mxu0 0
    %1556 = vmatpush1.bf16.msra.mxu0 %v1123
    %1557 = vmatprep.subr.bf16.mxu0 0
    %1558 = vmatpush1.bf16.msra.mxu0 %v1124
    %1559 = vmatprep.subr.bf16.mxu0 0
    %1560 = vmatpush1.bf16.msra.mxu0 %v1125
    %1561 = vmatprep.subr.bf16.mxu0 0
    %1562 = vmatpush1.bf16.msra.mxu0 %v1126
    %1563 = vmatprep.subr.bf16.mxu0 0
    %1564 = vmatpush1.bf16.msra.mxu0 %v1127
    %1565 = vmatprep.mubr.bf16.mxu0 %v467
    %1566 = vmatmul.mubr.bf16.gmra.mrb[0].mxu0 %v466
    %v1567 = vpop.f32.mrb[0].mxu0
    %v1568 = vadd.f32 %v1519, %v1567
    %v1569 = vpop.f32.mrb[0].mxu0
    %v1570 = vpop.f32.mrb[0].mxu0
    %v1571 = vadd.f32 %v1522, %v1570
    %v1572 = vpop.f32.mrb[0].mxu0
    %1573 = vmatprep.mubr.bf16.mxu0 %v483
    %1574 = vmatmul.mubr.bf16.gmra.mrb[0].mxu0 %v482
    %v1575 = vpop.f32.mrb[0].mxu0
    %v1576 = vadd.f32 %v1527, %v1575
    %v1577 = vpop.f32.mrb[0].mxu0
    %v1578 = vpop.f32.mrb[0].mxu0
    %v1579 = vadd.f32 %v1530, %v1578
    %v1580 = vpop.f32.mrb[0].mxu0
    %1581 = vdwg.mxu0
    %1582 = vmatprep.subr.bf16.mxu0 0
    %1583 = vmatpush1.bf16.msra.mxu0 %v1128
    %1584 = vmatprep.subr.bf16.mxu0 0
    %1585 = vmatpush1.bf16.msra.mxu0 %v1129
    %1586 = vmatprep.subr.bf16.mxu0 0
    %1587 = vmatpush1.bf16.msra.mxu0 %v1130
    %1588 = vmatprep.subr.bf16.mxu0 0
    %1589 = vmatpush1.bf16.msra.mxu0 %v1131
    %1590 = vmatprep.subr.bf16.mxu0 0
    %1591 = vmatpush1.bf16.msra.mxu0 %v1132
    %1592 = vmatprep.subr.bf16.mxu0 0
    %1593 = vmatpush1.bf16.msra.mxu0 %v1133
    %1594 = vmatprep.subr.bf16.mxu0 0
    %1595 = vmatpush1.bf16.msra.mxu0 %v1134
    %1596 = vmatprep.subr.bf16.mxu0 0
    %1597 = vmatpush1.bf16.msra.mxu0 %v1135
    %1598 = vmatprep.subr.bf16.mxu0 0
    %1599 = vmatpush1.bf16.msra.mxu0 %v1136
    %1600 = vmatprep.subr.bf16.mxu0 0
    %1601 = vmatpush1.bf16.msra.mxu0 %v1137
    %1602 = vmatprep.subr.bf16.mxu0 0
    %1603 = vmatpush1.bf16.msra.mxu0 %v1138
    %1604 = vmatprep.subr.bf16.mxu0 0
    %1605 = vmatpush1.bf16.msra.mxu0 %v1139
    %1606 = vmatprep.subr.bf16.mxu0 0
    %1607 = vmatpush1.bf16.msra.mxu0 %v1140
    %1608 = vmatprep.subr.bf16.mxu0 0
    %1609 = vmatpush1.bf16.msra.mxu0 %v1141
    %1610 = vmatprep.subr.bf16.mxu0 0
    %1611 = vmatpush1.bf16.msra.mxu0 %v1142
    %1612 = vmatprep.subr.bf16.mxu0 0
    %1613 = vmatpush1.bf16.msra.mxu0 %v1143
    %1614 = vmatprep.mubr.bf16.mxu0 %v469
    %1615 = vmatmul.mubr.bf16.gmra.mrb[0].mxu0 %v468
    %v1616 = vpop.f32.mrb[0].mxu0
    %v1617 = vadd.f32 %v1568, %v1616
    %v1618 = vpop.f32.mrb[0].mxu0
    %v1619 = vpop.f32.mrb[0].mxu0
    %v1620 = vadd.f32 %v1571, %v1619
    %v1621 = vpop.f32.mrb[0].mxu0
    %1622 = vmatprep.mubr.bf16.mxu0 %v485
    %1623 = vmatmul.mubr.bf16.gmra.mrb[0].mxu0 %v484
    %v1624 = vpop.f32.mrb[0].mxu0
    %v1625 = vadd.f32 %v1576, %v1624
    %v1626 = vpop.f32.mrb[0].mxu0
    %v1627 = vpop.f32.mrb[0].mxu0
    %v1628 = vadd.f32 %v1579, %v1627
    %v1629 = vpop.f32.mrb[0].mxu0
    %1630 = vdwg.mxu0
    %1631 = vmatprep.subr.bf16.mxu0 0
    %1632 = vmatpush1.bf16.msra.mxu0 %v1144
    %1633 = vmatprep.subr.bf16.mxu0 0
    %1634 = vmatpush1.bf16.msra.mxu0 %v1145
    %1635 = vmatprep.subr.bf16.mxu0 0
    %1636 = vmatpush1.bf16.msra.mxu0 %v1146
    %1637 = vmatprep.subr.bf16.mxu0 0
    %1638 = vmatpush1.bf16.msra.mxu0 %v1147
    %1639 = vmatprep.subr.bf16.mxu0 0
    %1640 = vmatpush1.bf16.msra.mxu0 %v1148
    %1641 = vmatprep.subr.bf16.mxu0 0
    %1642 = vmatpush1.bf16.msra.mxu0 %v1149
    %1643 = vmatprep.subr.bf16.mxu0 0
    %1644 = vmatpush1.bf16.msra.mxu0 %v1150
    %1645 = vmatprep.subr.bf16.mxu0 0
    %1646 = vmatpush1.bf16.msra.mxu0 %v1151
    %1647 = vmatprep.subr.bf16.mxu0 0
    %1648 = vmatpush1.bf16.msra.mxu0 %v1152
    %1649 = vmatprep.subr.bf16.mxu0 0
    %1650 = vmatpush1.bf16.msra.mxu0 %v1153
    %1651 = vmatprep.subr.bf16.mxu0 0
    %1652 = vmatpush1.bf16.msra.mxu0 %v1154
    %1653 = vmatprep.subr.bf16.mxu0 0
    %1654 = vmatpush1.bf16.msra.mxu0 %v1155
    %1655 = vmatprep.subr.bf16.mxu0 0
    %1656 = vmatpush1.bf16.msra.mxu0 %v1156
    %1657 = vmatprep.subr.bf16.mxu0 0
    %1658 = vmatpush1.bf16.msra.mxu0 %v1157
    %1659 = vmatprep.subr.bf16.mxu0 0
    %1660 = vmatpush1.bf16.msra.mxu0 %v1158
    %1661 = vmatprep.subr.bf16.mxu0 0
    %1662 = vmatpush1.bf16.msra.mxu0 %v1159
    %1663 = vmatprep.mubr.bf16.mxu0 %v471
    %1664 = vmatmul.mubr.bf16.gmra.mrb[0].mxu0 %v470
    %v1665 = vpop.f32.mrb[0].mxu0
    %v1666 = vadd.f32 %v1617, %v1665
    %v1667 = vpop.f32.mrb[0].mxu0
    %v1668 = vpop.f32.mrb[0].mxu0
    %v1669 = vadd.f32 %v1620, %v1668
    %v1670 = vpop.f32.mrb[0].mxu0
    %1671 = vmatprep.mubr.bf16.mxu0 %v487
    %1672 = vmatmul.mubr.bf16.gmra.mrb[0].mxu0 %v486
    %v1673 = vpop.f32.mrb[0].mxu0
    %v1674 = vadd.f32 %v1625, %v1673
    %v1675 = vpop.f32.mrb[0].mxu0
    %v1676 = vpop.f32.mrb[0].mxu0
    %v1677 = vadd.f32 %v1628, %v1676
    %v1678 = vpop.f32.mrb[0].mxu0
    %1679 = vdwg.mxu0
    %v1680 = vld [vmem:[%s3] sm:$0x1]
    %v1681 = vld [vmem:[%s4] sm:$0x1]
    %v1682 = vld [vmem:[%s5] sm:$0xff]
    %v1683 = vld [vmem:[%s5 + $0x8] sm:$0xff]
    %v1684 = vld [vmem:[%s5 + $0x10] sm:$0xff]
    %v1685 = vld [vmem:[%s5 + $0x18] sm:$0xff]
    %v1686 = vld [vmem:[%s5 + $0x20] sm:$0xff]
    %v1687 = vld [vmem:[%s5 + $0x28] sm:$0xff]
    %v1688 = vld [vmem:[%s5 + $0x30] sm:$0xff]
    %v1689 = vld [vmem:[%s5 + $0x38] sm:$0xff]
    %v1690 = vld [vmem:[%s6] sm:$0xff]
    %v1691 = vld [vmem:[%s6 + $0x8] sm:$0xff]
    %v1692 = vld [vmem:[%s6 + $0x10] sm:$0xff]
    %v1693 = vld [vmem:[%s6 + $0x18] sm:$0xff]
    %v1694 = vld [vmem:[%s7] sm:$0xff]
    %v1695 = vld [vmem:[%s8] sm:$0xff]
    %v1696 = vld [vmem:[%s8 + $0x8] sm:$0xff]
    %v1697 = vld [vmem:[%s8 + $0x10] sm:$0xff]
    %v1698 = vld [vmem:[%s8 + $0x18] sm:$0xff]
    %v1699 = vld [vmem:[%s8 + $0x20] sm:$0xff]
    %v1700 = vld [vmem:[%s8 + $0x28] sm:$0xff]
    %v1701 = vld [vmem:[%s8 + $0x30] sm:$0xff]
    %v1702 = vld [vmem:[%s8 + $0x38] sm:$0xff]
    %v1703 = vld [vmem:[%s8 + $0x40] sm:$0xff]
    %v1704 = vld [vmem:[%s8 + $0x48] sm:$0xff]
    %v1705 = vld [vmem:[%s8 + $0x50] sm:$0xff]
    %v1706 = vld [vmem:[%s8 + $0x58] sm:$0xff]
    %v1707 = vld [vmem:[%s8 + $0x60] sm:$0xff]
    %v1708 = vld [vmem:[%s8 + $0x68] sm:$0xff]
    %v1709 = vld [vmem:[%s8 + $0x70] sm:$0xff]
    %v1710 = vld [vmem:[%s8 + $0x78] sm:$0xff]
    %1711 = vmatprep.subr.mxu0 0.0
    %1712 = vmatpush1.msra.mxu0 %v1695
    %1713 = vmatprep.subr.mxu0 0.0
    %1714 = vmatpush1.msra.mxu0 %v1696
    %1715 = vmatprep.subr.mxu0 0.0
    %1716 = vmatpush1.msra.mxu0 %v1697
    %1717 = vmatprep.subr.mxu0 0.0
    %1718 = vmatpush1.msra.mxu0 %v1698
    %1719 = vmatprep.subr.mxu0 0.0
    %1720 = vmatpush1.msra.mxu0 %v1699
    %1721 = vmatprep.subr.mxu0 0.0
    %1722 = vmatpush1.msra.mxu0 %v1700
    %1723 = vmatprep.subr.mxu0 0.0
    %1724 = vmatpush1.msra.mxu0 %v1701
    %1725 = vmatprep.subr.mxu0 0.0
    %1726 = vmatpush1.msra.mxu0 %v1702
    %1727 = vmatprep.subr.mxu0 0.0
    %1728 = vmatpush1.msra.mxu0 %v1703
    %1729 = vmatprep.subr.mxu0 0.0
    %1730 = vmatpush1.msra.mxu0 %v1704
    %1731 = vmatprep.subr.mxu0 0.0
    %1732 = vmatpush1.msra.mxu0 %v1705
    %1733 = vmatprep.subr.mxu0 0.0
    %1734 = vmatpush1.msra.mxu0 %v1706
    %1735 = vmatprep.subr.mxu0 0.0
    %1736 = vmatpush1.msra.mxu0 %v1707
    %1737 = vmatprep.subr.mxu0 0.0
    %1738 = vmatpush1.msra.mxu0 %v1708
    %1739 = vmatprep.subr.mxu0 0.0
    %1740 = vmatpush1.msra.mxu0 %v1709
    %1741 = vmatprep.subr.mxu0 0.0
    %1742 = vmatpush1.msra.mxu0 %v1710
    %1743 = vmatprep.subr.mxu0 0.0
    %1744 = vmatpush1.msra.mxu0 0.0
    %1745 = vmatprep.subr.mxu0 0.0
    %1746 = vmatpush1.msra.mxu0 0.0
    %1747 = vmatprep.subr.mxu0 0.0
    %1748 = vmatpush1.msra.mxu0 0.0
    %1749 = vmatprep.subr.mxu0 0.0
    %1750 = vmatpush1.msra.mxu0 0.0
    %1751 = vmatprep.subr.mxu0 0.0
    %1752 = vmatpush1.msra.mxu0 0.0
    %1753 = vmatprep.subr.mxu0 0.0
    %1754 = vmatpush1.msra.mxu0 0.0
    %1755 = vmatprep.subr.mxu0 0.0
    %1756 = vmatpush1.msra.mxu0 0.0
    %1757 = vmatprep.subr.mxu0 0.0
    %1758 = vmatpush1.msra.mxu0 0.0
    %1759 = vmatprep.subr.mxu0 0.0
    %1760 = vmatpush1.msra.mxu0 0.0
    %1761 = vmatprep.subr.mxu0 0.0
    %1762 = vmatpush1.msra.mxu0 0.0
    %1763 = vmatprep.subr.mxu0 0.0
    %1764 = vmatpush1.msra.mxu0 0.0
    %1765 = vmatprep.subr.mxu0 0.0
    %1766 = vmatpush1.msra.mxu0 0.0
    %1767 = vmatprep.subr.mxu0 0.0
    %1768 = vmatpush1.msra.mxu0 0.0
    %1769 = vmatprep.subr.mxu0 0.0
    %1770 = vmatpush1.msra.mxu0 0.0
    %1771 = vmatprep.subr.mxu0 0.0
    %1772 = vmatpush1.msra.mxu0 0.0
    %1773 = vmatprep.subr.mxu0 0.0
    %1774 = vmatpush1.msra.mxu0 0.0
    %1775 = vmatprep.mubr.f32.mxu0 0.0
    %1776 = vmatmul.mubr.f32.gmra.mrb[0].mxu0 %v1694
    %v1777 = vpop.f32.mrb[0].mxu0
    %v1778 = vadd.f32 0.0, %v1777
    %v1779 = vpop.f32.mrb[0].mxu0
    %1780 = vdwg.mxu0
    %vm1781 = vcmask 523264
    %v1783 = vsel %vm1781, %v1778, 0
    %1785 = vmatprep.subr.mxu0 0.0
    %1786 = vmatpush1.xpose.msra.mxu0 %v1783
    %1787 = vmatprep.subr.mxu0 0.0
    %1788 = vmatpush1.xpose.msra.mxu0 0.0
    %1789 = vmatprep.subr.mxu0 0.0
    %1790 = vmatpush1.xpose.msra.mxu0 0.0
    %1791 = vmatprep.subr.mxu0 0.0
    %1792 = vmatpush1.xpose.msra.mxu0 0.0
    %1793 = vmatprep.subr.mxu0 0.0
    %1794 = vmatpush1.xpose.msra.mxu0 0.0
    %1795 = vmatprep.subr.mxu0 0.0
    %1796 = vmatpush1.xpose.msra.mxu0 0.0
    %1797 = vmatprep.subr.mxu0 0.0
    %1798 = vmatpush1.xpose.msra.mxu0 0.0
    %1799 = vmatprep.subr.mxu0 0.0
    %1800 = vmatpush1.xpose.msra.mxu0 0.0
    %1801 = vmatprep.subr.mxu0 0.0
    %1802 = vmatpush1.xpose.msra.mxu0 0.0
    %1803 = vmatprep.subr.mxu0 0.0
    %1804 = vmatpush1.xpose.msra.mxu0 0.0
    %1805 = vmatprep.subr.mxu0 0.0
    %1806 = vmatpush1.xpose.msra.mxu0 0.0
    %1807 = vmatprep.subr.mxu0 0.0
    %1808 = vmatpush1.xpose.msra.mxu0 0.0
    %1809 = vmatprep.subr.mxu0 0.0
    %1810 = vmatpush1.xpose.msra.mxu0 0.0
    %1811 = vmatprep.subr.mxu0 0.0
    %1812 = vmatpush1.xpose.msra.mxu0 0.0
    %1813 = vmatprep.subr.mxu0 0.0
    %1814 = vmatpush1.xpose.msra.mxu0 0.0
    %1815 = vmatprep.subr.mxu0 0.0
    %1816 = vmatpush1.xpose.msra.mxu0 0.0
    %1817 = vmatprep.subr.mxu0 0.0
    %1818 = vmatpush1.xpose.msra.mxu0 0.0
    %1819 = vmatprep.subr.mxu0 0.0
    %1820 = vmatpush1.xpose.msra.mxu0 0.0
    %1821 = vmatprep.subr.mxu0 0.0
    %1822 = vmatpush1.xpose.msra.mxu0 0.0
    %1823 = vmatprep.subr.mxu0 0.0
    %1824 = vmatpush1.xpose.msra.mxu0 0.0
    %1825 = vmatprep.subr.mxu0 0.0
    %1826 = vmatpush1.xpose.msra.mxu0 0.0
    %1827 = vmatprep.subr.mxu0 0.0
    %1828 = vmatpush1.xpose.msra.mxu0 0.0
    %1829 = vmatprep.subr.mxu0 0.0
    %1830 = vmatpush1.xpose.msra.mxu0 0.0
    %1831 = vmatprep.subr.mxu0 0.0
    %1832 = vmatpush1.xpose.msra.mxu0 0.0
    %1833 = vmatprep.subr.mxu0 0.0
    %1834 = vmatpush1.xpose.msra.mxu0 0.0
    %1835 = vmatprep.subr.mxu0 0.0
    %1836 = vmatpush1.xpose.msra.mxu0 0.0
    %1837 = vmatprep.subr.mxu0 0.0
    %1838 = vmatpush1.xpose.msra.mxu0 0.0
    %1839 = vmatprep.subr.mxu0 0.0
    %1840 = vmatpush1.xpose.msra.mxu0 0.0
    %1841 = vmatprep.subr.mxu0 0.0
    %1842 = vmatpush1.xpose.msra.mxu0 0.0
    %1843 = vmatprep.subr.mxu0 0.0
    %1844 = vmatpush1.xpose.msra.mxu0 0.0
    %1845 = vmatprep.subr.mxu0 0.0
    %1846 = vmatpush1.xpose.msra.mxu0 0.0
    %1847 = vmatprep.subr.mxu0 0.0
    %1848 = vmatpush1.xpose.msra.mxu0 0.0
    %1849 = vmatprep.mubr.f32.mxu0 0.0
    %1850 = vmatmul.mubr.f32.gmra.mrb[0].mxu0 %v1783
    %v1851 = vpop.f32.mrb[0].mxu0
    %v1852 = vadd.f32 0.0, %v1851
    %v1853 = vpop.f32.mrb[0].mxu0
    %1854 = vdwg.mxu0
    %v1855 = vmul.f32 %v1852, 0.125
    %vm1856 = vcmask 64512
    %v1857 = vsel %vm1856, %v1855, -inf
    %1858 = vmax.xlane.f32.xlu0 %v1857
    %v1859 = vpop.xlane.xlu0 %1858
    %v1860 = vsub.f32 %v1855, %v1859
    %v1861 = vmul.f32 %v1860, 1.442695
    %v1862 = vpow.pop %v1861
    %v1863 = vsel %vm1856, %v1862, 0.0
    %1864 = vadd.xlane.f32.xlu0 %v1863
    %v1865 = vpop.xlane.xlu0 %1864
    %v1866 = vrcp.pop %v1865
    %v1867 = vmul.f32 %v1862, %v1866
    %1868 = vst.msk [vmem:[#allocation6] sm:$0xff] %vm1856, %v1867
    %v1869 = vsel %vm1781, %v1666, 0.0
    %v1870 = vsel %vm1781, %v1669, 0.0
    %v1871 = vadd.f32 %v1869, %v1870
    %v1872 = vrot.slane %v1871, 4
    %v1873 = vadd.f32 %v1871, %v1872
    %v1874 = vrot.slane %v1873, 2
    %v1875 = vadd.f32 %v1873, %v1874
    %v1876 = vrot.slane %v1875, 1
    %v1877 = vadd.f32 %v1875, %v1876
    %v1878 = vrcp.pop 16.0
    %v1879 = vmul.f32 %v1877, %v1878
    %v1880 = vmul.f32 %v1666, %v1666
    %v1881 = vmul.f32 %v1669, %v1669
    %v1882 = vsel %vm1781, %v1880, 0.0
    %v1883 = vsel %vm1781, %v1881, 0.0
    %v1884 = vadd.f32 %v1882, %v1883
    %v1885 = vrot.slane %v1884, 4
    %v1886 = vadd.f32 %v1884, %v1885
    %v1887 = vrot.slane %v1886, 2
    %v1888 = vadd.f32 %v1886, %v1887
    %v1889 = vrot.slane %v1888, 1
    %v1890 = vadd.f32 %v1888, %v1889
    %v1891 = vmul.f32 %v1890, %v1878
    %v1893 = vsel %vm1781, %v1879, 0
    %1895 = vmatprep.subr.mxu0 0.0
    %1896 = vmatpush1.msra.mxu0 %v1682
    %1897 = vmatprep.subr.mxu0 0.0
    %1898 = vmatpush1.msra.mxu0 %v1683
    %1899 = vmatprep.subr.mxu0 0.0
    %1900 = vmatpush1.msra.mxu0 %v1684
    %1901 = vmatprep.subr.mxu0 0.0
    %1902 = vmatpush1.msra.mxu0 %v1685
    %1903 = vmatprep.subr.mxu0 0.0
    %1904 = vmatpush1.msra.mxu0 %v1686
    %1905 = vmatprep.subr.mxu0 0.0
    %1906 = vmatpush1.msra.mxu0 %v1687
    %1907 = vmatprep.subr.mxu0 0.0
    %1908 = vmatpush1.msra.mxu0 %v1688
    %1909 = vmatprep.subr.mxu0 0.0
    %1910 = vmatpush1.msra.mxu0 %v1689
    %1911 = vmatprep.subr.mxu0 0.0
    %1912 = vmatpush1.msra.mxu0 0.0
    %1913 = vmatprep.subr.mxu0 0.0
    %1914 = vmatpush1.msra.mxu0 0.0
    %1915 = vmatprep.subr.mxu0 0.0
    %1916 = vmatpush1.msra.mxu0 0.0
    %1917 = vmatprep.subr.mxu0 0.0
    %1918 = vmatpush1.msra.mxu0 0.0
    %1919 = vmatprep.subr.mxu0 0.0
    %1920 = vmatpush1.msra.mxu0 0.0
    %1921 = vmatprep.subr.mxu0 0.0
    %1922 = vmatpush1.msra.mxu0 0.0
    %1923 = vmatprep.subr.mxu0 0.0
    %1924 = vmatpush1.msra.mxu0 0.0
    %1925 = vmatprep.subr.mxu0 0.0
    %1926 = vmatpush1.msra.mxu0 0.0
    %1927 = vmatprep.subr.mxu0 0.0
    %1928 = vmatpush1.msra.mxu0 0.0
    %1929 = vmatprep.subr.mxu0 0.0
    %1930 = vmatpush1.msra.mxu0 0.0
    %1931 = vmatprep.subr.mxu0 0.0
    %1932 = vmatpush1.msra.mxu0 0.0
    %1933 = vmatprep.subr.mxu0 0.0
    %1934 = vmatpush1.msra.mxu0 0.0
    %1935 = vmatprep.subr.mxu0 0.0
    %1936 = vmatpush1.msra.mxu0 0.0
    %1937 = vmatprep.subr.mxu0 0.0
    %1938 = vmatpush1.msra.mxu0 0.0
    %1939 = vmatprep.subr.mxu0 0.0
    %1940 = vmatpush1.msra.mxu0 0.0
    %1941 = vmatprep.subr.mxu0 0.0
    %1942 = vmatpush1.msra.mxu0 0.0
    %1943 = vmatprep.subr.mxu0 0.0
    %1944 = vmatpush1.msra.mxu0 0.0
    %1945 = vmatprep.subr.mxu0 0.0
    %1946 = vmatpush1.msra.mxu0 0.0
    %1947 = vmatprep.subr.mxu0 0.0
    %1948 = vmatpush1.msra.mxu0 0.0
    %1949 = vmatprep.subr.mxu0 0.0
    %1950 = vmatpush1.msra.mxu0 0.0
    %1951 = vmatprep.subr.mxu0 0.0
    %1952 = vmatpush1.msra.mxu0 0.0
    %1953 = vmatprep.subr.mxu0 0.0
    %1954 = vmatpush1.msra.mxu0 0.0
    %1955 = vmatprep.subr.mxu0 0.0
    %1956 = vmatpush1.msra.mxu0 0.0
    %1957 = vmatprep.subr.mxu0 0.0
    %1958 = vmatpush1.msra.mxu0 0.0
    %1959 = vmatprep.mubr.f32.mxu0 0.0
    %1960 = vmatmul.mubr.f32.gmra.mrb[0].mxu0 %v1893
    %v1961 = vpop.f32.mrb[0].mxu0
    %v1962 = vadd.f32 0.0, %v1961
    %v1963 = vpop.f32.mrb[0].mxu0
    %1964 = vdwg.mxu0
    %v1966 = vsel %vm1781, %v1891, 0
    %1968 = vmatprep.subr.mxu0 0.0
    %1969 = vmatpush1.msra.mxu0 %v1682
    %1970 = vmatprep.subr.mxu0 0.0
    %1971 = vmatpush1.msra.mxu0 %v1683
    %1972 = vmatprep.subr.mxu0 0.0
    %1973 = vmatpush1.msra.mxu0 %v1684
    %1974 = vmatprep.subr.mxu0 0.0
    %1975 = vmatpush1.msra.mxu0 %v1685
    %1976 = vmatprep.subr.mxu0 0.0
    %1977 = vmatpush1.msra.mxu0 %v1686
    %1978 = vmatprep.subr.mxu0 0.0
    %1979 = vmatpush1.msra.mxu0 %v1687
    %1980 = vmatprep.subr.mxu0 0.0
    %1981 = vmatpush1.msra.mxu0 %v1688
    %1982 = vmatprep.subr.mxu0 0.0
    %1983 = vmatpush1.msra.mxu0 %v1689
    %1984 = vmatprep.subr.mxu0 0.0
    %1985 = vmatpush1.msra.mxu0 0.0
    %1986 = vmatprep.subr.mxu0 0.0
    %1987 = vmatpush1.msra.mxu0 0.0
    %1988 = vmatprep.subr.mxu0 0.0
    %1989 = vmatpush1.msra.mxu0 0.0
    %1990 = vmatprep.subr.mxu0 0.0
    %1991 = vmatpush1.msra.mxu0 0.0
    %1992 = vmatprep.subr.mxu0 0.0
    %1993 = vmatpush1.msra.mxu0 0.0
    %1994 = vmatprep.subr.mxu0 0.0
    %1995 = vmatpush1.msra.mxu0 0.0
    %1996 = vmatprep.subr.mxu0 0.0
    %1997 = vmatpush1.msra.mxu0 0.0
    %1998 = vmatprep.subr.mxu0 0.0
    %1999 = vmatpush1.msra.mxu0 0.0
    %2000 = vmatprep.subr.mxu0 0.0
    %2001 = vmatpush1.msra.mxu0 0.0
    %2002 = vmatprep.subr.mxu0 0.0
    %2003 = vmatpush1.msra.mxu0 0.0
    %2004 = vmatprep.subr.mxu0 0.0
    %2005 = vmatpush1.msra.mxu0 0.0
    %2006 = vmatprep.subr.mxu0 0.0
    %2007 = vmatpush1.msra.mxu0 0.0
    %2008 = vmatprep.subr.mxu0 0.0
    %2009 = vmatpush1.msra.mxu0 0.0
    %2010 = vmatprep.subr.mxu0 0.0
    %2011 = vmatpush1.msra.mxu0 0.0
    %2012 = vmatprep.subr.mxu0 0.0
    %2013 = vmatpush1.msra.mxu0 0.0
    %2014 = vmatprep.subr.mxu0 0.0
    %2015 = vmatpush1.msra.mxu0 0.0
    %2016 = vmatprep.subr.mxu0 0.0
    %2017 = vmatpush1.msra.mxu0 0.0
    %2018 = vmatprep.subr.mxu0 0.0
    %2019 = vmatpush1.msra.mxu0 0.0
    %2020 = vmatprep.subr.mxu0 0.0
    %2021 = vmatpush1.msra.mxu0 0.0
    %2022 = vmatprep.subr.mxu0 0.0
    %2023 = vmatpush1.msra.mxu0 0.0
    %2024 = vmatprep.subr.mxu0 0.0
    %2025 = vmatpush1.msra.mxu0 0.0
    %2026 = vmatprep.subr.mxu0 0.0
    %2027 = vmatpush1.msra.mxu0 0.0
    %2028 = vmatprep.subr.mxu0 0.0
    %2029 = vmatpush1.msra.mxu0 0.0
    %2030 = vmatprep.subr.mxu0 0.0
    %2031 = vmatpush1.msra.mxu0 0.0
    %2032 = vmatprep.mubr.f32.mxu0 0.0
    %2033 = vmatmul.mubr.f32.gmra.mrb[0].mxu0 %v1966
    %v2034 = vpop.f32.mrb[0].mxu0
    %v2035 = vadd.f32 0.0, %v2034
    %v2036 = vpop.f32.mrb[0].mxu0
    %2037 = vdwg.mxu0
    %v2038 = vmul.f32 %v1962, %v1962
    %v2039 = vsub.f32 %v2035, %v2038
    %v2040 = vlaneseq
    %v2041 = vshrl.u32 %v2040, 7
    %v2042 = vsub.s32 0, %v2041
    %v2043 = vrot.slane %v1962, %v2042
    %v2044 = vsub.f32 %v1666, %v2043
    %v2045 = vsub.f32 %v1669, %v2043
    %v2046 = vadd.f32 %v2039, 1e-05
    %v2047 = vrsqrt.pop %v2046
    %v2048 = vlaneseq
    %v2049 = vshrl.u32 %v2048, 7
    %v2050 = vsub.s32 0, %v2049
    %v2051 = vrot.slane %v2047, %v2050
    %v2052 = vmul.f32 %v2044, %v2051
    %v2053 = vmul.f32 %v2045, %v2051
    %v2055 = vlaneseq
    %v2056 = vshrl.u32 %v2055, 7
    %v2057 = vsub.s32 0, %v2056
    %v2058 = vrot.slane %v1680, %v2057
    %v2060 = vmul.f32 %v2052, %v2058
    %v2061 = vmul.f32 %v2053, %v2058
    %v2063 = vlaneseq
    %v2064 = vshrl.u32 %v2063, 7
    %v2065 = vsub.s32 0, %v2064
    %v2066 = vrot.slane %v1681, %v2065
    %v2068 = vadd.f32 %v2060, %v2066
    %v2069 = vadd.f32 %v2061, %v2066
    %v2070 = vadd.f32 %v2068, %v1690
    %v2071 = vadd.f32 %v2069, %v1691
    %v2073 = vsel %vm1781, %v2070, 0
    %v2076 = vsel %vm1781, %v2071, 0
    %2078 = vmatprep.subr.mxu0 0.0
    %2079 = vmatpush1.xpose.msra.mxu0 %v2073
    %2080 = vmatprep.subr.mxu0 0.0
    %2081 = vmatpush1.xpose.msra.mxu0 %v2076
    %2082 = vmatprep.subr.mxu0 0.0
    %2083 = vmatpush1.xpose.msra.mxu0 0.0
    %2084 = vmatprep.subr.mxu0 0.0
    %2085 = vmatpush1.xpose.msra.mxu0 0.0
    %2086 = vmatprep.subr.mxu0 0.0
    %2087 = vmatpush1.xpose.msra.mxu0 0.0
    %2088 = vmatprep.subr.mxu0 0.0
    %2089 = vmatpush1.xpose.msra.mxu0 0.0
    %2090 = vmatprep.subr.mxu0 0.0
    %2091 = vmatpush1.xpose.msra.mxu0 0.0
    %2092 = vmatprep.subr.mxu0 0.0
    %2093 = vmatpush1.xpose.msra.mxu0 0.0
    %2094 = vmatprep.subr.mxu0 0.0
    %2095 = vmatpush1.xpose.msra.mxu0 0.0
    %2096 = vmatprep.subr.mxu0 0.0
    %2097 = vmatpush1.xpose.msra.mxu0 0.0
    %2098 = vmatprep.subr.mxu0 0.0
    %2099 = vmatpush1.xpose.msra.mxu0 0.0
    %2100 = vmatprep.subr.mxu0 0.0
    %2101 = vmatpush1.xpose.msra.mxu0 0.0
    %2102 = vmatprep.subr.mxu0 0.0
    %2103 = vmatpush1.xpose.msra.mxu0 0.0
    %2104 = vmatprep.subr.mxu0 0.0
    %2105 = vmatpush1.xpose.msra.mxu0 0.0
    %2106 = vmatprep.subr.mxu0 0.0
    %2107 = vmatpush1.xpose.msra.mxu0 0.0
    %2108 = vmatprep.subr.mxu0 0.0
    %2109 = vmatpush1.xpose.msra.mxu0 0.0
    %2110 = vmatprep.subr.mxu0 0.0
    %2111 = vmatpush1.xpose.msra.mxu0 0.0
    %2112 = vmatprep.subr.mxu0 0.0
    %2113 = vmatpush1.xpose.msra.mxu0 0.0
    %2114 = vmatprep.subr.mxu0 0.0
    %2115 = vmatpush1.xpose.msra.mxu0 0.0
    %2116 = vmatprep.subr.mxu0 0.0
    %2117 = vmatpush1.xpose.msra.mxu0 0.0
    %2118 = vmatprep.subr.mxu0 0.0
    %2119 = vmatpush1.xpose.msra.mxu0 0.0
    %2120 = vmatprep.subr.mxu0 0.0
    %2121 = vmatpush1.xpose.msra.mxu0 0.0
    %2122 = vmatprep.subr.mxu0 0.0
    %2123 = vmatpush1.xpose.msra.mxu0 0.0
    %2124 = vmatprep.subr.mxu0 0.0
    %2125 = vmatpush1.xpose.msra.mxu0 0.0
    %2126 = vmatprep.subr.mxu0 0.0
    %2127 = vmatpush1.xpose.msra.mxu0 0.0
    %2128 = vmatprep.subr.mxu0 0.0
    %2129 = vmatpush1.xpose.msra.mxu0 0.0
    %2130 = vmatprep.subr.mxu0 0.0
    %2131 = vmatpush1.xpose.msra.mxu0 0.0
    %2132 = vmatprep.subr.mxu0 0.0
    %2133 = vmatpush1.xpose.msra.mxu0 0.0
    %2134 = vmatprep.subr.mxu0 0.0
    %2135 = vmatpush1.xpose.msra.mxu0 0.0
    %2136 = vmatprep.subr.mxu0 0.0
    %2137 = vmatpush1.xpose.msra.mxu0 0.0
    %2138 = vmatprep.subr.mxu0 0.0
    %2139 = vmatpush1.xpose.msra.mxu0 0.0
    %2140 = vmatprep.subr.mxu0 0.0
    %2141 = vmatpush1.xpose.msra.mxu0 0.0
    %2142 = vmatprep.mubr.f32.mxu0 0.0
    %2143 = vmatmul.mubr.f32.gmra.mrb[0].mxu0 %v2073
    %v2144 = vpop.f32.mrb[0].mxu0
    %v2145 = vadd.f32 0.0, %v2144
    %v2146 = vpop.f32.mrb[0].mxu0
    %2147 = vmatprep.mubr.f32.mxu0 0.0
    %2148 = vmatmul.mubr.f32.gmra.mrb[0].mxu0 %v2076
    %v2149 = vpop.f32.mrb[0].mxu0
    %v2150 = vadd.f32 0.0, %v2149
    %v2151 = vpop.f32.mrb[0].mxu0
    %2152 = vdwg.mxu0
    %v2153 = vmul.f32 %v2145, 0.125
    %v2154 = vmul.f32 %v2150, 0.125
    %vm2155 = vcmask 130048
    %v2156 = vsel %vm2155, %v2153, -inf
    %2157 = vmax.xlane.f32.xlu0 %v2156
    %v2158 = vpop.xlane.xlu0 %2157
    %v2159 = vsel %vm2155, %v2154, -inf
    %2160 = vmax.xlane.f32.xlu0 %v2159
    %v2161 = vpop.xlane.xlu0 %2160
    %v2162 = vsub.f32 %v2153, %v2158
    %v2163 = vsub.f32 %v2154, %v2161
    %v2164 = vmul.f32 %v2162, 1.442695
    %v2165 = vpow.pop %v2164
    %v2166 = vmul.f32 %v2163, 1.442695
    %v2167 = vpow.pop %v2166
    %v2168 = vsel %vm2155, %v2165, 0.0
    %2169 = vadd.xlane.f32.xlu0 %v2168
    %v2170 = vpop.xlane.xlu0 %2169
    %v2171 = vsel %vm2155, %v2167, 0.0
    %2172 = vadd.xlane.f32.xlu0 %v2171
    %v2173 = vpop.xlane.xlu0 %2172
    %v2174 = vrcp.pop %v2170
    %v2175 = vrcp.pop %v2173
    %v2176 = vmul.f32 %v2165, %v2174
    %v2177 = vmul.f32 %v2167, %v2175
    %2178 = vst.msk [vmem:[#allocation7] sm:$0xff] %vm2155, %v2176
    %2179 = vst.msk [vmem:[#allocation7 + $0x8] sm:$0xff] %vm2155, %v2177
    %2180 = vmatprep.subr.mxu0 0.0
    %2181 = vmatpush1.xpose.msra.mxu0 %v2073
    %2182 = vmatprep.subr.mxu0 0.0
    %2183 = vmatpush1.xpose.msra.mxu0 %v2076
    %2184 = vmatprep.subr.mxu0 0.0
    %2185 = vmatpush1.xpose.msra.mxu0 0.0
    %2186 = vmatprep.subr.mxu0 0.0
    %2187 = vmatpush1.xpose.msra.mxu0 0.0
    %2188 = vmatprep.subr.mxu0 0.0
    %2189 = vmatpush1.xpose.msra.mxu0 0.0
    %2190 = vmatprep.subr.mxu0 0.0
    %2191 = vmatpush1.xpose.msra.mxu0 0.0
    %2192 = vmatprep.subr.mxu0 0.0
    %2193 = vmatpush1.xpose.msra.mxu0 0.0
    %2194 = vmatprep.subr.mxu0 0.0
    %2195 = vmatpush1.xpose.msra.mxu0 0.0
    %2196 = vmatprep.subr.mxu0 0.0
    %2197 = vmatpush1.xpose.msra.mxu0 0.0
    %2198 = vmatprep.subr.mxu0 0.0
    %2199 = vmatpush1.xpose.msra.mxu0 0.0
    %2200 = vmatprep.subr.mxu0 0.0
    %2201 = vmatpush1.xpose.msra.mxu0 0.0
    %2202 = vmatprep.subr.mxu0 0.0
    %2203 = vmatpush1.xpose.msra.mxu0 0.0
    %2204 = vmatprep.subr.mxu0 0.0
    %2205 = vmatpush1.xpose.msra.mxu0 0.0
    %2206 = vmatprep.subr.mxu0 0.0
    %2207 = vmatpush1.xpose.msra.mxu0 0.0
    %2208 = vmatprep.subr.mxu0 0.0
    %2209 = vmatpush1.xpose.msra.mxu0 0.0
    %2210 = vmatprep.subr.mxu0 0.0
    %2211 = vmatpush1.xpose.msra.mxu0 0.0
    %2212 = vmatprep.subr.mxu0 0.0
    %2213 = vmatpush1.xpose.msra.mxu0 0.0
    %2214 = vmatprep.subr.mxu0 0.0
    %2215 = vmatpush1.xpose.msra.mxu0 0.0
    %2216 = vmatprep.subr.mxu0 0.0
    %2217 = vmatpush1.xpose.msra.mxu0 0.0
    %2218 = vmatprep.subr.mxu0 0.0
    %2219 = vmatpush1.xpose.msra.mxu0 0.0
    %2220 = vmatprep.subr.mxu0 0.0
    %2221 = vmatpush1.xpose.msra.mxu0 0.0
    %2222 = vmatprep.subr.mxu0 0.0
    %2223 = vmatpush1.xpose.msra.mxu0 0.0
    %2224 = vmatprep.subr.mxu0 0.0
    %2225 = vmatpush1.xpose.msra.mxu0 0.0
    %2226 = vmatprep.subr.mxu0 0.0
    %2227 = vmatpush1.xpose.msra.mxu0 0.0
    %2228 = vmatprep.subr.mxu0 0.0
    %2229 = vmatpush1.xpose.msra.mxu0 0.0
    %2230 = vmatprep.subr.mxu0 0.0
    %2231 = vmatpush1.xpose.msra.mxu0 0.0
    %2232 = vmatprep.subr.mxu0 0.0
    %2233 = vmatpush1.xpose.msra.mxu0 0.0
    %2234 = vmatprep.subr.mxu0 0.0
    %2235 = vmatpush1.xpose.msra.mxu0 0.0
    %2236 = vmatprep.subr.mxu0 0.0
    %2237 = vmatpush1.xpose.msra.mxu0 0.0
    %2238 = vmatprep.subr.mxu0 0.0
    %2239 = vmatpush1.xpose.msra.mxu0 0.0
    %2240 = vmatprep.subr.mxu0 0.0
    %2241 = vmatpush1.xpose.msra.mxu0 0.0
    %2242 = vmatprep.subr.mxu0 0.0
    %2243 = vmatpush1.xpose.msra.mxu0 0.0
    %2244 = vmatprep.mubr.f32.mxu0 0.0
    %2245 = vmatmul.mubr.f32.gmra.mrb[0].mxu0 %v1783
    %v2246 = vpop.f32.mrb[0].mxu0
    %v2247 = vadd.f32 0.0, %v2246
    %v2248 = vpop.f32.mrb[0].mxu0
    %2249 = vdwg.mxu0
    %v2250 = vmul.f32 %v2247, 0.125
    %v2251 = vsel %vm2155, %v2250, -inf
    %2252 = vmax.xlane.f32.xlu0 %v2251
    %v2253 = vpop.xlane.xlu0 %2252
    %v2254 = vsub.f32 %v2250, %v2253
    %v2255 = vmul.f32 %v2254, 1.442695
    %v2256 = vpow.pop %v2255
    %v2257 = vsel %vm2155, %v2256, 0.0
    %2258 = vadd.xlane.f32.xlu0 %v2257
    %v2259 = vpop.xlane.xlu0 %2258
    %v2260 = vrcp.pop %v2259
    %v2261 = vmul.f32 %v2256, %v2260
    %v2263 = vsel %vm2155, %v2261, 0
    %2265 = vmatprep.subr.mxu0 0.0
    %2266 = vmatpush1.msra.mxu0 %v2070
    %2267 = vmatprep.subr.mxu0 0.0
    %2268 = vmatpush1.msra.mxu0 %v2071
    %2269 = vmatprep.subr.mxu0 0.0
    %2270 = vmatpush1.msra.mxu0 0.0
    %2271 = vmatprep.subr.mxu0 0.0
    %2272 = vmatpush1.msra.mxu0 0.0
    %2273 = vmatprep.subr.mxu0 0.0
    %2274 = vmatpush1.msra.mxu0 0.0
    %2275 = vmatprep.subr.mxu0 0.0
    %2276 = vmatpush1.msra.mxu0 0.0
    %2277 = vmatprep.subr.mxu0 0.0
    %2278 = vmatpush1.msra.mxu0 0.0
    %2279 = vmatprep.subr.mxu0 0.0
    %2280 = vmatpush1.msra.mxu0 0.0
    %2281 = vmatprep.subr.mxu0 0.0
    %2282 = vmatpush1.msra.mxu0 0.0
    %2283 = vmatprep.subr.mxu0 0.0
    %2284 = vmatpush1.msra.mxu0 0.0
    %2285 = vmatprep.subr.mxu0 0.0
    %2286 = vmatpush1.msra.mxu0 0.0
    %2287 = vmatprep.subr.mxu0 0.0
    %2288 = vmatpush1.msra.mxu0 0.0
    %2289 = vmatprep.subr.mxu0 0.0
    %2290 = vmatpush1.msra.mxu0 0.0
    %2291 = vmatprep.subr.mxu0 0.0
    %2292 = vmatpush1.msra.mxu0 0.0
    %2293 = vmatprep.subr.mxu0 0.0
    %2294 = vmatpush1.msra.mxu0 0.0
    %2295 = vmatprep.subr.mxu0 0.0
    %2296 = vmatpush1.msra.mxu0 0.0
    %2297 = vmatprep.subr.mxu0 0.0
    %2298 = vmatpush1.msra.mxu0 0.0
    %2299 = vmatprep.subr.mxu0 0.0
    %2300 = vmatpush1.msra.mxu0 0.0
    %2301 = vmatprep.subr.mxu0 0.0
    %2302 = vmatpush1.msra.mxu0 0.0
    %2303 = vmatprep.subr.mxu0 0.0
    %2304 = vmatpush1.msra.mxu0 0.0
    %2305 = vmatprep.subr.mxu0 0.0
    %2306 = vmatpush1.msra.mxu0 0.0
    %2307 = vmatprep.subr.mxu0 0.0
    %2308 = vmatpush1.msra.mxu0 0.0
    %2309 = vmatprep.subr.mxu0 0.0
    %2310 = vmatpush1.msra.mxu0 0.0
    %2311 = vmatprep.subr.mxu0 0.0
    %2312 = vmatpush1.msra.mxu0 0.0
    %2313 = vmatprep.subr.mxu0 0.0
    %2314 = vmatpush1.msra.mxu0 0.0
    %2315 = vmatprep.subr.mxu0 0.0
    %2316 = vmatpush1.msra.mxu0 0.0
    %2317 = vmatprep.subr.mxu0 0.0
    %2318 = vmatpush1.msra.mxu0 0.0
    %2319 = vmatprep.subr.mxu0 0.0
    %2320 = vmatpush1.msra.mxu0 0.0
    %2321 = vmatprep.subr.mxu0 0.0
    %2322 = vmatpush1.msra.mxu0 0.0
    %2323 = vmatprep.subr.mxu0 0.0
    %2324 = vmatpush1.msra.mxu0 0.0
    %2325 = vmatprep.subr.mxu0 0.0
    %2326 = vmatpush1.msra.mxu0 0.0
    %2327 = vmatprep.subr.mxu0 0.0
    %2328 = vmatpush1.msra.mxu0 0.0
    %2329 = vmatprep.mubr.f32.mxu0 0.0
    %2330 = vmatmul.mubr.f32.gmra.mrb[0].mxu0 %v2263
    %v2331 = vpop.f32.mrb[0].mxu0
    %v2332 = vadd.f32 0.0, %v2331
    %v2333 = vpop.f32.mrb[0].mxu0
    %2334 = vdwg.mxu0
    %v2336 = vsel %vm1781, %v2332, 0
    %2338 = vmatprep.subr.mxu0 0.0
    %2339 = vmatpush1.xpose.msra.mxu0 %v2073
    %2340 = vmatprep.subr.mxu0 0.0
    %2341 = vmatpush1.xpose.msra.mxu0 %v2076
    %2342 = vmatprep.subr.mxu0 0.0
    %2343 = vmatpush1.xpose.msra.mxu0 0.0
    %2344 = vmatprep.subr.mxu0 0.0
    %2345 = vmatpush1.xpose.msra.mxu0 0.0
    %2346 = vmatprep.subr.mxu0 0.0
    %2347 = vmatpush1.xpose.msra.mxu0 0.0
    %2348 = vmatprep.subr.mxu0 0.0
    %2349 = vmatpush1.xpose.msra.mxu0 0.0
    %2350 = vmatprep.subr.mxu0 0.0
    %2351 = vmatpush1.xpose.msra.mxu0 0.0
    %2352 = vmatprep.subr.mxu0 0.0
    %2353 = vmatpush1.xpose.msra.mxu0 0.0
    %2354 = vmatprep.subr.mxu0 0.0
    %2355 = vmatpush1.xpose.msra.mxu0 0.0
    %2356 = vmatprep.subr.mxu0 0.0
    %2357 = vmatpush1.xpose.msra.mxu0 0.0
    %2358 = vmatprep.subr.mxu0 0.0
    %2359 = vmatpush1.xpose.msra.mxu0 0.0
    %2360 = vmatprep.subr.mxu0 0.0
    %2361 = vmatpush1.xpose.msra.mxu0 0.0
    %2362 = vmatprep.subr.mxu0 0.0
    %2363 = vmatpush1.xpose.msra.mxu0 0.0
    %2364 = vmatprep.subr.mxu0 0.0
    %2365 = vmatpush1.xpose.msra.mxu0 0.0
    %2366 = vmatprep.subr.mxu0 0.0
    %2367 = vmatpush1.xpose.msra.mxu0 0.0
    %2368 = vmatprep.subr.mxu0 0.0
    %2369 = vmatpush1.xpose.msra.mxu0 0.0
    %2370 = vmatprep.subr.mxu0 0.0
    %2371 = vmatpush1.xpose.msra.mxu0 0.0
    %2372 = vmatprep.subr.mxu0 0.0
    %2373 = vmatpush1.xpose.msra.mxu0 0.0
    %2374 = vmatprep.subr.mxu0 0.0
    %2375 = vmatpush1.xpose.msra.mxu0 0.0
    %2376 = vmatprep.subr.mxu0 0.0
    %2377 = vmatpush1.xpose.msra.mxu0 0.0
    %2378 = vmatprep.subr.mxu0 0.0
    %2379 = vmatpush1.xpose.msra.mxu0 0.0
    %2380 = vmatprep.subr.mxu0 0.0
    %2381 = vmatpush1.xpose.msra.mxu0 0.0
    %2382 = vmatprep.subr.mxu0 0.0
    %2383 = vmatpush1.xpose.msra.mxu0 0.0
    %2384 = vmatprep.subr.mxu0 0.0
    %2385 = vmatpush1.xpose.msra.mxu0 0.0
    %2386 = vmatprep.subr.mxu0 0.0
    %2387 = vmatpush1.xpose.msra.mxu0 0.0
    %2388 = vmatprep.subr.mxu0 0.0
    %2389 = vmatpush1.xpose.msra.mxu0 0.0
    %2390 = vmatprep.subr.mxu0 0.0
    %2391 = vmatpush1.xpose.msra.mxu0 0.0
    %2392 = vmatprep.subr.mxu0 0.0
    %2393 = vmatpush1.xpose.msra.mxu0 0.0
    %2394 = vmatprep.subr.mxu0 0.0
    %2395 = vmatpush1.xpose.msra.mxu0 0.0
    %2396 = vmatprep.subr.mxu0 0.0
    %2397 = vmatpush1.xpose.msra.mxu0 0.0
    %2398 = vmatprep.subr.mxu0 0.0
    %2399 = vmatpush1.xpose.msra.mxu0 0.0
    %2400 = vmatprep.subr.mxu0 0.0
    %2401 = vmatpush1.xpose.msra.mxu0 0.0
    %2402 = vmatprep.mubr.f32.mxu0 0.0
    %2403 = vmatmul.mubr.f32.gmra.mrb[0].mxu0 %v2336
    %v2404 = vpop.f32.mrb[0].mxu0
    %v2405 = vadd.f32 0.0, %v2404
    %v2406 = vpop.f32.mrb[0].mxu0
    %2407 = vdwg.mxu0
    %v2408 = vmul.f32 %v2405, 0.125
    %v2409 = vsel %vm2155, %v2408, -inf
    %2410 = vmax.xlane.f32.xlu0 %v2409
    %v2411 = vpop.xlane.xlu0 %2410
    %v2412 = vsub.f32 %v2408, %v2411
    %v2413 = vmul.f32 %v2412, 1.442695
    %v2414 = vpow.pop %v2413
    %v2415 = vsel %vm2155, %v2414, 0.0
    %2416 = vadd.xlane.f32.xlu0 %v2415
    %v2417 = vpop.xlane.xlu0 %2416
    %v2418 = vrcp.pop %v2417
    %v2419 = vmul.f32 %v2414, %v2418
    %v2421 = vsel %vm2155, %v2419, 0
    %2423 = vmatprep.subr.mxu0 0.0
    %2424 = vmatpush1.msra.mxu0 %v2070
    %2425 = vmatprep.subr.mxu0 0.0
    %2426 = vmatpush1.msra.mxu0 %v2071
    %2427 = vmatprep.subr.mxu0 0.0
    %2428 = vmatpush1.msra.mxu0 0.0
    %2429 = vmatprep.subr.mxu0 0.0
    %2430 = vmatpush1.msra.mxu0 0.0
    %2431 = vmatprep.subr.mxu0 0.0
    %2432 = vmatpush1.msra.mxu0 0.0
    %2433 = vmatprep.subr.mxu0 0.0
    %2434 = vmatpush1.msra.mxu0 0.0
    %2435 = vmatprep.subr.mxu0 0.0
    %2436 = vmatpush1.msra.mxu0 0.0
    %2437 = vmatprep.subr.mxu0 0.0
    %2438 = vmatpush1.msra.mxu0 0.0
    %2439 = vmatprep.subr.mxu0 0.0
    %2440 = vmatpush1.msra.mxu0 0.0
    %2441 = vmatprep.subr.mxu0 0.0
    %2442 = vmatpush1.msra.mxu0 0.0
    %2443 = vmatprep.subr.mxu0 0.0
    %2444 = vmatpush1.msra.mxu0 0.0
    %2445 = vmatprep.subr.mxu0 0.0
    %2446 = vmatpush1.msra.mxu0 0.0
    %2447 = vmatprep.subr.mxu0 0.0
    %2448 = vmatpush1.msra.mxu0 0.0
    %2449 = vmatprep.subr.mxu0 0.0
    %2450 = vmatpush1.msra.mxu0 0.0
    %2451 = vmatprep.subr.mxu0 0.0
    %2452 = vmatpush1.msra.mxu0 0.0
    %2453 = vmatprep.subr.mxu0 0.0
    %2454 = vmatpush1.msra.mxu0 0.0
    %2455 = vmatprep.subr.mxu0 0.0
    %2456 = vmatpush1.msra.mxu0 0.0
    %2457 = vmatprep.subr.mxu0 0.0
    %2458 = vmatpush1.msra.mxu0 0.0
    %2459 = vmatprep.subr.mxu0 0.0
    %2460 = vmatpush1.msra.mxu0 0.0
    %2461 = vmatprep.subr.mxu0 0.0
    %2462 = vmatpush1.msra.mxu0 0.0
    %2463 = vmatprep.subr.mxu0 0.0
    %2464 = vmatpush1.msra.mxu0 0.0
    %2465 = vmatprep.subr.mxu0 0.0
    %2466 = vmatpush1.msra.mxu0 0.0
    %2467 = vmatprep.subr.mxu0 0.0
    %2468 = vmatpush1.msra.mxu0 0.0
    %2469 = vmatprep.subr.mxu0 0.0
    %2470 = vmatpush1.msra.mxu0 0.0
    %2471 = vmatprep.subr.mxu0 0.0
    %2472 = vmatpush1.msra.mxu0 0.0
    %2473 = vmatprep.subr.mxu0 0.0
    %2474 = vmatpush1.msra.mxu0 0.0
    %2475 = vmatprep.subr.mxu0 0.0
    %2476 = vmatpush1.msra.mxu0 0.0
    %2477 = vmatprep.subr.mxu0 0.0
    %2478 = vmatpush1.msra.mxu0 0.0
    %2479 = vmatprep.subr.mxu0 0.0
    %2480 = vmatpush1.msra.mxu0 0.0
    %2481 = vmatprep.subr.mxu0 0.0
    %2482 = vmatpush1.msra.mxu0 0.0
    %2483 = vmatprep.subr.mxu0 0.0
    %2484 = vmatpush1.msra.mxu0 0.0
    %2485 = vmatprep.subr.mxu0 0.0
    %2486 = vmatpush1.msra.mxu0 0.0
    %2487 = vmatprep.mubr.f32.mxu0 0.0
    %2488 = vmatmul.mubr.f32.gmra.mrb[0].mxu0 %v2421
    %v2489 = vpop.f32.mrb[0].mxu0
    %v2490 = vadd.f32 0.0, %v2489
    %v2491 = vpop.f32.mrb[0].mxu0
    %2492 = vdwg.mxu0
    %v2494 = vsel %vm1781, %v2490, 0
    %2496 = vmatprep.subr.mxu0 0.0
    %2497 = vmatpush1.xpose.msra.mxu0 %v2073
    %2498 = vmatprep.subr.mxu0 0.0
    %2499 = vmatpush1.xpose.msra.mxu0 %v2076
    %2500 = vmatprep.subr.mxu0 0.0
    %2501 = vmatpush1.xpose.msra.mxu0 0.0
    %2502 = vmatprep.subr.mxu0 0.0
    %2503 = vmatpush1.xpose.msra.mxu0 0.0
    %2504 = vmatprep.subr.mxu0 0.0
    %2505 = vmatpush1.xpose.msra.mxu0 0.0
    %2506 = vmatprep.subr.mxu0 0.0
    %2507 = vmatpush1.xpose.msra.mxu0 0.0
    %2508 = vmatprep.subr.mxu0 0.0
    %2509 = vmatpush1.xpose.msra.mxu0 0.0
    %2510 = vmatprep.subr.mxu0 0.0
    %2511 = vmatpush1.xpose.msra.mxu0 0.0
    %2512 = vmatprep.subr.mxu0 0.0
    %2513 = vmatpush1.xpose.msra.mxu0 0.0
    %2514 = vmatprep.subr.mxu0 0.0
    %2515 = vmatpush1.xpose.msra.mxu0 0.0
    %2516 = vmatprep.subr.mxu0 0.0
    %2517 = vmatpush1.xpose.msra.mxu0 0.0
    %2518 = vmatprep.subr.mxu0 0.0
    %2519 = vmatpush1.xpose.msra.mxu0 0.0
    %2520 = vmatprep.subr.mxu0 0.0
    %2521 = vmatpush1.xpose.msra.mxu0 0.0
    %2522 = vmatprep.subr.mxu0 0.0
    %2523 = vmatpush1.xpose.msra.mxu0 0.0
    %2524 = vmatprep.subr.mxu0 0.0
    %2525 = vmatpush1.xpose.msra.mxu0 0.0
    %2526 = vmatprep.subr.mxu0 0.0
    %2527 = vmatpush1.xpose.msra.mxu0 0.0
    %2528 = vmatprep.subr.mxu0 0.0
    %2529 = vmatpush1.xpose.msra.mxu0 0.0
    %2530 = vmatprep.subr.mxu0 0.0
    %2531 = vmatpush1.xpose.msra.mxu0 0.0
    %2532 = vmatprep.subr.mxu0 0.0
    %2533 = vmatpush1.xpose.msra.mxu0 0.0
    %2534 = vmatprep.subr.mxu0 0.0
    %2535 = vmatpush1.xpose.msra.mxu0 0.0
    %2536 = vmatprep.subr.mxu0 0.0
    %2537 = vmatpush1.xpose.msra.mxu0 0.0
    %2538 = vmatprep.subr.mxu0 0.0
    %2539 = vmatpush1.xpose.msra.mxu0 0.0
    %2540 = vmatprep.subr.mxu0 0.0
    %2541 = vmatpush1.xpose.msra.mxu0 0.0
    %2542 = vmatprep.subr.mxu0 0.0
    %2543 = vmatpush1.xpose.msra.mxu0 0.0
    %2544 = vmatprep.subr.mxu0 0.0
    %2545 = vmatpush1.xpose.msra.mxu0 0.0
    %2546 = vmatprep.subr.mxu0 0.0
    %2547 = vmatpush1.xpose.msra.mxu0 0.0
    %2548 = vmatprep.subr.mxu0 0.0
    %2549 = vmatpush1.xpose.msra.mxu0 0.0
    %2550 = vmatprep.subr.mxu0 0.0
    %2551 = vmatpush1.xpose.msra.mxu0 0.0
    %2552 = vmatprep.subr.mxu0 0.0
    %2553 = vmatpush1.xpose.msra.mxu0 0.0
    %2554 = vmatprep.subr.mxu0 0.0
    %2555 = vmatpush1.xpose.msra.mxu0 0.0
    %2556 = vmatprep.subr.mxu0 0.0
    %2557 = vmatpush1.xpose.msra.mxu0 0.0
    %2558 = vmatprep.subr.mxu0 0.0
    %2559 = vmatpush1.xpose.msra.mxu0 0.0
    %2560 = vmatprep.mubr.f32.mxu0 0.0
    %2561 = vmatmul.mubr.f32.gmra.mrb[0].mxu0 %v2494
    %v2562 = vpop.f32.mrb[0].mxu0
    %v2563 = vadd.f32 0.0, %v2562
    %v2564 = vpop.f32.mrb[0].mxu0
    %2565 = vdwg.mxu0
    %v2566 = vmul.f32 %v2563, 0.125
    %v2567 = vsel %vm2155, %v2566, -inf
    %2568 = vmax.xlane.f32.xlu0 %v2567
    %v2569 = vpop.xlane.xlu0 %2568
    %v2570 = vsub.f32 %v2566, %v2569
    %v2571 = vmul.f32 %v2570, 1.442695
    %v2572 = vpow.pop %v2571
    %v2573 = vsel %vm2155, %v2572, 0.0
    %2574 = vadd.xlane.f32.xlu0 %v2573
    %v2575 = vpop.xlane.xlu0 %2574
    %v2576 = vrcp.pop %v2575
    %v2577 = vmul.f32 %v2572, %v2576
    %v2579 = vsel %vm2155, %v2577, 0
    %2581 = vmatprep.subr.mxu0 0.0
    %2582 = vmatpush1.msra.mxu0 %v2070
    %2583 = vmatprep.subr.mxu0 0.0
    %2584 = vmatpush1.msra.mxu0 %v2071
    %2585 = vmatprep.subr.mxu0 0.0
    %2586 = vmatpush1.msra.mxu0 0.0
    %2587 = vmatprep.subr.mxu0 0.0
    %2588 = vmatpush1.msra.mxu0 0.0
    %2589 = vmatprep.subr.mxu0 0.0
    %2590 = vmatpush1.msra.mxu0 0.0
    %2591 = vmatprep.subr.mxu0 0.0
    %2592 = vmatpush1.msra.mxu0 0.0
    %2593 = vmatprep.subr.mxu0 0.0
    %2594 = vmatpush1.msra.mxu0 0.0
    %2595 = vmatprep.subr.mxu0 0.0
    %2596 = vmatpush1.msra.mxu0 0.0
    %2597 = vmatprep.subr.mxu0 0.0
    %2598 = vmatpush1.msra.mxu0 0.0
    %2599 = vmatprep.subr.mxu0 0.0
    %2600 = vmatpush1.msra.mxu0 0.0
    %2601 = vmatprep.subr.mxu0 0.0
    %2602 = vmatpush1.msra.mxu0 0.0
    %2603 = vmatprep.subr.mxu0 0.0
    %2604 = vmatpush1.msra.mxu0 0.0
    %2605 = vmatprep.subr.mxu0 0.0
    %2606 = vmatpush1.msra.mxu0 0.0
    %2607 = vmatprep.subr.mxu0 0.0
    %2608 = vmatpush1.msra.mxu0 0.0
    %2609 = vmatprep.subr.mxu0 0.0
    %2610 = vmatpush1.msra.mxu0 0.0
    %2611 = vmatprep.subr.mxu0 0.0
    %2612 = vmatpush1.msra.mxu0 0.0
    %2613 = vmatprep.subr.mxu0 0.0
    %2614 = vmatpush1.msra.mxu0 0.0
    %2615 = vmatprep.subr.mxu0 0.0
    %2616 = vmatpush1.msra.mxu0 0.0
    %2617 = vmatprep.subr.mxu0 0.0
    %2618 = vmatpush1.msra.mxu0 0.0
    %2619 = vmatprep.subr.mxu0 0.0
    %2620 = vmatpush1.msra.mxu0 0.0
    %2621 = vmatprep.subr.mxu0 0.0
    %2622 = vmatpush1.msra.mxu0 0.0
    %2623 = vmatprep.subr.mxu0 0.0
    %2624 = vmatpush1.msra.mxu0 0.0
    %2625 = vmatprep.subr.mxu0 0.0
    %2626 = vmatpush1.msra.mxu0 0.0
    %2627 = vmatprep.subr.mxu0 0.0
    %2628 = vmatpush1.msra.mxu0 0.0
    %2629 = vmatprep.subr.mxu0 0.0
    %2630 = vmatpush1.msra.mxu0 0.0
    %2631 = vmatprep.subr.mxu0 0.0
    %2632 = vmatpush1.msra.mxu0 0.0
    %2633 = vmatprep.subr.mxu0 0.0
    %2634 = vmatpush1.msra.mxu0 0.0
    %2635 = vmatprep.subr.mxu0 0.0
    %2636 = vmatpush1.msra.mxu0 0.0
    %2637 = vmatprep.subr.mxu0 0.0
    %2638 = vmatpush1.msra.mxu0 0.0
    %2639 = vmatprep.subr.mxu0 0.0
    %2640 = vmatpush1.msra.mxu0 0.0
    %2641 = vmatprep.subr.mxu0 0.0
    %2642 = vmatpush1.msra.mxu0 0.0
    %2643 = vmatprep.subr.mxu0 0.0
    %2644 = vmatpush1.msra.mxu0 0.0
    %2645 = vmatprep.mubr.f32.mxu0 0.0
    %2646 = vmatmul.mubr.f32.gmra.mrb[0].mxu0 %v2579
    %v2647 = vpop.f32.mrb[0].mxu0
    %v2648 = vadd.f32 0.0, %v2647
    %v2649 = vpop.f32.mrb[0].mxu0
    %2650 = vdwg.mxu0
    %2651 = vst.msk [vmem:[#allocation9] sm:$0xff] %vm2155, %v2577
    %v2652 = vsel %vm1781, %v1674, 0.0
    %v2653 = vsel %vm1781, %v1677, 0.0
    %v2654 = vadd.f32 %v2652, %v2653
    %v2655 = vrot.slane %v2654, 4
    %v2656 = vadd.f32 %v2654, %v2655
    %v2657 = vrot.slane %v2656, 2
    %v2658 = vadd.f32 %v2656, %v2657
    %v2659 = vrot.slane %v2658, 1
    %v2660 = vadd.f32 %v2658, %v2659
    %v2661 = vmul.f32 %v2660, %v1878
    %v2662 = vmul.f32 %v1674, %v1674
    %v2663 = vmul.f32 %v1677, %v1677
    %v2664 = vsel %vm1781, %v2662, 0.0
    %v2665 = vsel %vm1781, %v2663, 0.0
    %v2666 = vadd.f32 %v2664, %v2665
    %v2667 = vrot.slane %v2666, 4
    %v2668 = vadd.f32 %v2666, %v2667
    %v2669 = vrot.slane %v2668, 2
    %v2670 = vadd.f32 %v2668, %v2669
    %v2671 = vrot.slane %v2670, 1
    %v2672 = vadd.f32 %v2670, %v2671
    %v2673 = vmul.f32 %v2672, %v1878
    %v2675 = vsel %vm1781, %v2661, 0
    %2677 = vmatprep.subr.mxu0 0.0
    %2678 = vmatpush1.msra.mxu0 %v1682
    %2679 = vmatprep.subr.mxu0 0.0
    %2680 = vmatpush1.msra.mxu0 %v1683
    %2681 = vmatprep.subr.mxu0 0.0
    %2682 = vmatpush1.msra.mxu0 %v1684
    %2683 = vmatprep.subr.mxu0 0.0
    %2684 = vmatpush1.msra.mxu0 %v1685
    %2685 = vmatprep.subr.mxu0 0.0
    %2686 = vmatpush1.msra.mxu0 %v1686
    %2687 = vmatprep.subr.mxu0 0.0
    %2688 = vmatpush1.msra.mxu0 %v1687
    %2689 = vmatprep.subr.mxu0 0.0
    %2690 = vmatpush1.msra.mxu0 %v1688
    %2691 = vmatprep.subr.mxu0 0.0
    %2692 = vmatpush1.msra.mxu0 %v1689
    %2693 = vmatprep.subr.mxu0 0.0
    %2694 = vmatpush1.msra.mxu0 0.0
    %2695 = vmatprep.subr.mxu0 0.0
    %2696 = vmatpush1.msra.mxu0 0.0
    %2697 = vmatprep.subr.mxu0 0.0
    %2698 = vmatpush1.msra.mxu0 0.0
    %2699 = vmatprep.subr.mxu0 0.0
    %2700 = vmatpush1.msra.mxu0 0.0
    %2701 = vmatprep.subr.mxu0 0.0
    %2702 = vmatpush1.msra.mxu0 0.0
    %2703 = vmatprep.subr.mxu0 0.0
    %2704 = vmatpush1.msra.mxu0 0.0
    %2705 = vmatprep.subr.mxu0 0.0
    %2706 = vmatpush1.msra.mxu0 0.0
    %2707 = vmatprep.subr.mxu0 0.0
    %2708 = vmatpush1.msra.mxu0 0.0
    %2709 = vmatprep.subr.mxu0 0.0
    %2710 = vmatpush1.msra.mxu0 0.0
    %2711 = vmatprep.subr.mxu0 0.0
    %2712 = vmatpush1.msra.mxu0 0.0
    %2713 = vmatprep.subr.mxu0 0.0
    %2714 = vmatpush1.msra.mxu0 0.0
    %2715 = vmatprep.subr.mxu0 0.0
    %2716 = vmatpush1.msra.mxu0 0.0
    %2717 = vmatprep.subr.mxu0 0.0
    %2718 = vmatpush1.msra.mxu0 0.0
    %2719 = vmatprep.subr.mxu0 0.0
    %2720 = vmatpush1.msra.mxu0 0.0
    %2721 = vmatprep.subr.mxu0 0.0
    %2722 = vmatpush1.msra.mxu0 0.0
    %2723 = vmatprep.subr.mxu0 0.0
    %2724 = vmatpush1.msra.mxu0 0.0
    %2725 = vmatprep.subr.mxu0 0.0
    %2726 = vmatpush1.msra.mxu0 0.0
    %2727 = vmatprep.subr.mxu0 0.0
    %2728 = vmatpush1.msra.mxu0 0.0
    %2729 = vmatprep.subr.mxu0 0.0
    %2730 = vmatpush1.msra.mxu0 0.0
    %2731 = vmatprep.subr.mxu0 0.0
    %2732 = vmatpush1.msra.mxu0 0.0
    %2733 = vmatprep.subr.mxu0 0.0
    %2734 = vmatpush1.msra.mxu0 0.0
    %2735 = vmatprep.subr.mxu0 0.0
    %2736 = vmatpush1.msra.mxu0 0.0
    %2737 = vmatprep.subr.mxu0 0.0
    %2738 = vmatpush1.msra.mxu0 0.0
    %2739 = vmatprep.subr.mxu0 0.0
    %2740 = vmatpush1.msra.mxu0 0.0
    %2741 = vmatprep.mubr.f32.mxu0 0.0
    %2742 = vmatmul.mubr.f32.gmra.mrb[0].mxu0 %v2675
    %v2743 = vpop.f32.mrb[0].mxu0
    %v2744 = vadd.f32 0.0, %v2743
    %v2745 = vpop.f32.mrb[0].mxu0
    %2746 = vdwg.mxu0
    %v2748 = vsel %vm1781, %v2673, 0
    %2750 = vmatprep.subr.mxu0 0.0
    %2751 = vmatpush1.msra.mxu0 %v1682
    %2752 = vmatprep.subr.mxu0 0.0
    %2753 = vmatpush1.msra.mxu0 %v1683
    %2754 = vmatprep.subr.mxu0 0.0
    %2755 = vmatpush1.msra.mxu0 %v1684
    %2756 = vmatprep.subr.mxu0 0.0
    %2757 = vmatpush1.msra.mxu0 %v1685
    %2758 = vmatprep.subr.mxu0 0.0
    %2759 = vmatpush1.msra.mxu0 %v1686
    %2760 = vmatprep.subr.mxu0 0.0
    %2761 = vmatpush1.msra.mxu0 %v1687
    %2762 = vmatprep.subr.mxu0 0.0
    %2763 = vmatpush1.msra.mxu0 %v1688
    %2764 = vmatprep.subr.mxu0 0.0
    %2765 = vmatpush1.msra.mxu0 %v1689
    %2766 = vmatprep.subr.mxu0 0.0
    %2767 = vmatpush1.msra.mxu0 0.0
    %2768 = vmatprep.subr.mxu0 0.0
    %2769 = vmatpush1.msra.mxu0 0.0
    %2770 = vmatprep.subr.mxu0 0.0
    %2771 = vmatpush1.msra.mxu0 0.0
    %2772 = vmatprep.subr.mxu0 0.0
    %2773 = vmatpush1.msra.mxu0 0.0
    %2774 = vmatprep.subr.mxu0 0.0
    %2775 = vmatpush1.msra.mxu0 0.0
    %2776 = vmatprep.subr.mxu0 0.0
    %2777 = vmatpush1.msra.mxu0 0.0
    %2778 = vmatprep.subr.mxu0 0.0
    %2779 = vmatpush1.msra.mxu0 0.0
    %2780 = vmatprep.subr.mxu0 0.0
    %2781 = vmatpush1.msra.mxu0 0.0
    %2782 = vmatprep.subr.mxu0 0.0
    %2783 = vmatpush1.msra.mxu0 0.0
    %2784 = vmatprep.subr.mxu0 0.0
    %2785 = vmatpush1.msra.mxu0 0.0
    %2786 = vmatprep.subr.mxu0 0.0
    %2787 = vmatpush1.msra.mxu0 0.0
    %2788 = vmatprep.subr.mxu0 0.0
    %2789 = vmatpush1.msra.mxu0 0.0
    %2790 = vmatprep.subr.mxu0 0.0
    %2791 = vmatpush1.msra.mxu0 0.0
    %2792 = vmatprep.subr.mxu0 0.0
    %2793 = vmatpush1.msra.mxu0 0.0
    %2794 = vmatprep.subr.mxu0 0.0
    %2795 = vmatpush1.msra.mxu0 0.0
    %2796 = vmatprep.subr.mxu0 0.0
    %2797 = vmatpush1.msra.mxu0 0.0
    %2798 = vmatprep.subr.mxu0 0.0
    %2799 = vmatpush1.msra.mxu0 0.0
    %2800 = vmatprep.subr.mxu0 0.0
    %2801 = vmatpush1.msra.mxu0 0.0
    %2802 = vmatprep.subr.mxu0 0.0
    %2803 = vmatpush1.msra.mxu0 0.0
    %2804 = vmatprep.subr.mxu0 0.0
    %2805 = vmatpush1.msra.mxu0 0.0
    %2806 = vmatprep.subr.mxu0 0.0
    %2807 = vmatpush1.msra.mxu0 0.0
    %2808 = vmatprep.subr.mxu0 0.0
    %2809 = vmatpush1.msra.mxu0 0.0
    %2810 = vmatprep.subr.mxu0 0.0
    %2811 = vmatpush1.msra.mxu0 0.0
    %2812 = vmatprep.subr.mxu0 0.0
    %2813 = vmatpush1.msra.mxu0 0.0
    %2814 = vmatprep.mubr.f32.mxu0 0.0
    %2815 = vmatmul.mubr.f32.gmra.mrb[0].mxu0 %v2748
    %v2816 = vpop.f32.mrb[0].mxu0
    %v2817 = vadd.f32 0.0, %v2816
    %v2818 = vpop.f32.mrb[0].mxu0
    %2819 = vdwg.mxu0
    %v2820 = vmul.f32 %v2744, %v2744
    %v2821 = vsub.f32 %v2817, %v2820
    %v2822 = vlaneseq
    %v2823 = vshrl.u32 %v2822, 7
    %v2824 = vsub.s32 0, %v2823
    %v2825 = vrot.slane %v2744, %v2824
    %v2826 = vsub.f32 %v1674, %v2825
    %v2827 = vsub.f32 %v1677, %v2825
    %v2828 = vadd.f32 %v2821, 1e-05
    %v2829 = vrsqrt.pop %v2828
    %v2830 = vlaneseq
    %v2831 = vshrl.u32 %v2830, 7
    %v2832 = vsub.s32 0, %v2831
    %v2833 = vrot.slane %v2829, %v2832
    %v2834 = vmul.f32 %v2826, %v2833
    %v2835 = vmul.f32 %v2827, %v2833
    %v2836 = vmul.f32 %v2834, %v2058
    %v2837 = vmul.f32 %v2835, %v2058
    %v2838 = vadd.f32 %v2836, %v2066
    %v2839 = vadd.f32 %v2837, %v2066
    %v2840 = vadd.f32 %v2838, %v1692
    %v2841 = vadd.f32 %v2839, %v1693
    %v2843 = vsel %vm1781, %v2840, 0
    %v2846 = vsel %vm1781, %v2841, 0
    %2848 = vmatprep.subr.mxu0 0.0
    %2849 = vmatpush1.xpose.msra.mxu0 %v2843
    %2850 = vmatprep.subr.mxu0 0.0
    %2851 = vmatpush1.xpose.msra.mxu0 %v2846
    %2852 = vmatprep.subr.mxu0 0.0
    %2853 = vmatpush1.xpose.msra.mxu0 0.0
    %2854 = vmatprep.subr.mxu0 0.0
    %2855 = vmatpush1.xpose.msra.mxu0 0.0
    %2856 = vmatprep.subr.mxu0 0.0
    %2857 = vmatpush1.xpose.msra.mxu0 0.0
    %2858 = vmatprep.subr.mxu0 0.0
    %2859 = vmatpush1.xpose.msra.mxu0 0.0
    %2860 = vmatprep.subr.mxu0 0.0
    %2861 = vmatpush1.xpose.msra.mxu0 0.0
    %2862 = vmatprep.subr.mxu0 0.0
    %2863 = vmatpush1.xpose.msra.mxu0 0.0
    %2864 = vmatprep.subr.mxu0 0.0
    %2865 = vmatpush1.xpose.msra.mxu0 0.0
    %2866 = vmatprep.subr.mxu0 0.0
    %2867 = vmatpush1.xpose.msra.mxu0 0.0
    %2868 = vmatprep.subr.mxu0 0.0
    %2869 = vmatpush1.xpose.msra.mxu0 0.0
    %2870 = vmatprep.subr.mxu0 0.0
    %2871 = vmatpush1.xpose.msra.mxu0 0.0
    %2872 = vmatprep.subr.mxu0 0.0
    %2873 = vmatpush1.xpose.msra.mxu0 0.0
    %2874 = vmatprep.subr.mxu0 0.0
    %2875 = vmatpush1.xpose.msra.mxu0 0.0
    %2876 = vmatprep.subr.mxu0 0.0
    %2877 = vmatpush1.xpose.msra.mxu0 0.0
    %2878 = vmatprep.subr.mxu0 0.0
    %2879 = vmatpush1.xpose.msra.mxu0 0.0
    %2880 = vmatprep.subr.mxu0 0.0
    %2881 = vmatpush1.xpose.msra.mxu0 0.0
    %2882 = vmatprep.subr.mxu0 0.0
    %2883 = vmatpush1.xpose.msra.mxu0 0.0
    %2884 = vmatprep.subr.mxu0 0.0
    %2885 = vmatpush1.xpose.msra.mxu0 0.0
    %2886 = vmatprep.subr.mxu0 0.0
    %2887 = vmatpush1.xpose.msra.mxu0 0.0
    %2888 = vmatprep.subr.mxu0 0.0
    %2889 = vmatpush1.xpose.msra.mxu0 0.0
    %2890 = vmatprep.subr.mxu0 0.0
    %2891 = vmatpush1.xpose.msra.mxu0 0.0
    %2892 = vmatprep.subr.mxu0 0.0
    %2893 = vmatpush1.xpose.msra.mxu0 0.0
    %2894 = vmatprep.subr.mxu0 0.0
    %2895 = vmatpush1.xpose.msra.mxu0 0.0
    %2896 = vmatprep.subr.mxu0 0.0
    %2897 = vmatpush1.xpose.msra.mxu0 0.0
    %2898 = vmatprep.subr.mxu0 0.0
    %2899 = vmatpush1.xpose.msra.mxu0 0.0
    %2900 = vmatprep.subr.mxu0 0.0
    %2901 = vmatpush1.xpose.msra.mxu0 0.0
    %2902 = vmatprep.subr.mxu0 0.0
    %2903 = vmatpush1.xpose.msra.mxu0 0.0
    %2904 = vmatprep.subr.mxu0 0.0
    %2905 = vmatpush1.xpose.msra.mxu0 0.0
    %2906 = vmatprep.subr.mxu0 0.0
    %2907 = vmatpush1.xpose.msra.mxu0 0.0
    %2908 = vmatprep.subr.mxu0 0.0
    %2909 = vmatpush1.xpose.msra.mxu0 0.0
    %2910 = vmatprep.subr.mxu0 0.0
    %2911 = vmatpush1.xpose.msra.mxu0 0.0
    %2912 = vmatprep.mubr.f32.mxu0 0.0
    %2913 = vmatmul.mubr.f32.gmra.mrb[0].mxu0 %v2843
    %v2914 = vpop.f32.mrb[0].mxu0
    %v2915 = vadd.f32 0.0, %v2914
    %v2916 = vpop.f32.mrb[0].mxu0
    %2917 = vmatprep.mubr.f32.mxu0 0.0
    %2918 = vmatmul.mubr.f32.gmra.mrb[0].mxu0 %v2846
    %v2919 = vpop.f32.mrb[0].mxu0
    %v2920 = vadd.f32 0.0, %v2919
    %v2921 = vpop.f32.mrb[0].mxu0
    %2922 = vdwg.mxu0
    %v2923 = vmul.f32 %v2915, 0.125
    %v2924 = vmul.f32 %v2920, 0.125
    %v2925 = vsel %vm2155, %v2923, -inf
    %2926 = vmax.xlane.f32.xlu0 %v2925
    %v2927 = vpop.xlane.xlu0 %2926
    %v2928 = vsel %vm2155, %v2924, -inf
    %2929 = vmax.xlane.f32.xlu0 %v2928
    %v2930 = vpop.xlane.xlu0 %2929
    %v2931 = vsub.f32 %v2923, %v2927
    %v2932 = vsub.f32 %v2924, %v2930
    %v2933 = vmul.f32 %v2931, 1.442695
    %v2934 = vpow.pop %v2933
    %v2935 = vmul.f32 %v2932, 1.442695
    %v2936 = vpow.pop %v2935
    %v2937 = vsel %vm2155, %v2934, 0.0
    %2938 = vadd.xlane.f32.xlu0 %v2937
    %v2939 = vpop.xlane.xlu0 %2938
    %v2940 = vsel %vm2155, %v2936, 0.0
    %2941 = vadd.xlane.f32.xlu0 %v2940
    %v2942 = vpop.xlane.xlu0 %2941
    %v2943 = vrcp.pop %v2939
    %v2944 = vrcp.pop %v2942
    %v2945 = vmul.f32 %v2934, %v2943
    %v2946 = vmul.f32 %v2936, %v2944
    %s2947 = scalar_lea.vmem [#allocation7], 16
    %2948 = vst.msk [vmem:[%s2947] sm:$0xff] %vm2155, %v2945
    %2949 = vst.msk [vmem:[%s2947 + $0x8] sm:$0xff] %vm2155, %v2946
    %2950 = vmatprep.subr.mxu0 0.0
    %2951 = vmatpush1.xpose.msra.mxu0 %v2843
    %2952 = vmatprep.subr.mxu0 0.0
    %2953 = vmatpush1.xpose.msra.mxu0 %v2846
    %2954 = vmatprep.subr.mxu0 0.0
    %2955 = vmatpush1.xpose.msra.mxu0 0.0
    %2956 = vmatprep.subr.mxu0 0.0
    %2957 = vmatpush1.xpose.msra.mxu0 0.0
    %2958 = vmatprep.subr.mxu0 0.0
    %2959 = vmatpush1.xpose.msra.mxu0 0.0
    %2960 = vmatprep.subr.mxu0 0.0
    %2961 = vmatpush1.xpose.msra.mxu0 0.0
    %2962 = vmatprep.subr.mxu0 0.0
    %2963 = vmatpush1.xpose.msra.mxu0 0.0
    %2964 = vmatprep.subr.mxu0 0.0
    %2965 = vmatpush1.xpose.msra.mxu0 0.0
    %2966 = vmatprep.subr.mxu0 0.0
    %2967 = vmatpush1.xpose.msra.mxu0 0.0
    %2968 = vmatprep.subr.mxu0 0.0
    %2969 = vmatpush1.xpose.msra.mxu0 0.0
    %2970 = vmatprep.subr.mxu0 0.0
    %2971 = vmatpush1.xpose.msra.mxu0 0.0
    %2972 = vmatprep.subr.mxu0 0.0
    %2973 = vmatpush1.xpose.msra.mxu0 0.0
    %2974 = vmatprep.subr.mxu0 0.0
    %2975 = vmatpush1.xpose.msra.mxu0 0.0
    %2976 = vmatprep.subr.mxu0 0.0
    %2977 = vmatpush1.xpose.msra.mxu0 0.0
    %2978 = vmatprep.subr.mxu0 0.0
    %2979 = vmatpush1.xpose.msra.mxu0 0.0
    %2980 = vmatprep.subr.mxu0 0.0
    %2981 = vmatpush1.xpose.msra.mxu0 0.0
    %2982 = vmatprep.subr.mxu0 0.0
    %2983 = vmatpush1.xpose.msra.mxu0 0.0
    %2984 = vmatprep.subr.mxu0 0.0
    %2985 = vmatpush1.xpose.msra.mxu0 0.0
    %2986 = vmatprep.subr.mxu0 0.0
    %2987 = vmatpush1.xpose.msra.mxu0 0.0
    %2988 = vmatprep.subr.mxu0 0.0
    %2989 = vmatpush1.xpose.msra.mxu0 0.0
    %2990 = vmatprep.subr.mxu0 0.0
    %2991 = vmatpush1.xpose.msra.mxu0 0.0
    %2992 = vmatprep.subr.mxu0 0.0
    %2993 = vmatpush1.xpose.msra.mxu0 0.0
    %2994 = vmatprep.subr.mxu0 0.0
    %2995 = vmatpush1.xpose.msra.mxu0 0.0
    %2996 = vmatprep.subr.mxu0 0.0
    %2997 = vmatpush1.xpose.msra.mxu0 0.0
    %2998 = vmatprep.subr.mxu0 0.0
    %2999 = vmatpush1.xpose.msra.mxu0 0.0
    %3000 = vmatprep.subr.mxu0 0.0
    %3001 = vmatpush1.xpose.msra.mxu0 0.0
    %3002 = vmatprep.subr.mxu0 0.0
    %3003 = vmatpush1.xpose.msra.mxu0 0.0
    %3004 = vmatprep.subr.mxu0 0.0
    %3005 = vmatpush1.xpose.msra.mxu0 0.0
    %3006 = vmatprep.subr.mxu0 0.0
    %3007 = vmatpush1.xpose.msra.mxu0 0.0
    %3008 = vmatprep.subr.mxu0 0.0
    %3009 = vmatpush1.xpose.msra.mxu0 0.0
    %3010 = vmatprep.subr.mxu0 0.0
    %3011 = vmatpush1.xpose.msra.mxu0 0.0
    %3012 = vmatprep.subr.mxu0 0.0
    %3013 = vmatpush1.xpose.msra.mxu0 0.0
    %3014 = vmatprep.mubr.f32.mxu0 0.0
    %3015 = vmatmul.mubr.f32.gmra.mrb[0].mxu0 %v1783
    %v3016 = vpop.f32.mrb[0].mxu0
    %v3017 = vadd.f32 0.0, %v3016
    %v3018 = vpop.f32.mrb[0].mxu0
    %3019 = vdwg.mxu0
    %v3020 = vmul.f32 %v3017, 0.125
    %v3021 = vsel %vm2155, %v3020, -inf
    %3022 = vmax.xlane.f32.xlu0 %v3021
    %v3023 = vpop.xlane.xlu0 %3022
    %v3024 = vsub.f32 %v3020, %v3023
    %v3025 = vmul.f32 %v3024, 1.442695
    %v3026 = vpow.pop %v3025
    %v3027 = vsel %vm2155, %v3026, 0.0
    %3028 = vadd.xlane.f32.xlu0 %v3027
    %v3029 = vpop.xlane.xlu0 %3028
    %v3030 = vrcp.pop %v3029
    %v3031 = vmul.f32 %v3026, %v3030
    %v3033 = vsel %vm2155, %v3031, 0
    %3035 = vmatprep.subr.mxu0 0.0
    %3036 = vmatpush1.msra.mxu0 %v2840
    %3037 = vmatprep.subr.mxu0 0.0
    %3038 = vmatpush1.msra.mxu0 %v2841
    %3039 = vmatprep.subr.mxu0 0.0
    %3040 = vmatpush1.msra.mxu0 0.0
    %3041 = vmatprep.subr.mxu0 0.0
    %3042 = vmatpush1.msra.mxu0 0.0
    %3043 = vmatprep.subr.mxu0 0.0
    %3044 = vmatpush1.msra.mxu0 0.0
    %3045 = vmatprep.subr.mxu0 0.0
    %3046 = vmatpush1.msra.mxu0 0.0
    %3047 = vmatprep.subr.mxu0 0.0
    %3048 = vmatpush1.msra.mxu0 0.0
    %3049 = vmatprep.subr.mxu0 0.0
    %3050 = vmatpush1.msra.mxu0 0.0
    %3051 = vmatprep.subr.mxu0 0.0
    %3052 = vmatpush1.msra.mxu0 0.0
    %3053 = vmatprep.subr.mxu0 0.0
    %3054 = vmatpush1.msra.mxu0 0.0
    %3055 = vmatprep.subr.mxu0 0.0
    %3056 = vmatpush1.msra.mxu0 0.0
    %3057 = vmatprep.subr.mxu0 0.0
    %3058 = vmatpush1.msra.mxu0 0.0
    %3059 = vmatprep.subr.mxu0 0.0
    %3060 = vmatpush1.msra.mxu0 0.0
    %3061 = vmatprep.subr.mxu0 0.0
    %3062 = vmatpush1.msra.mxu0 0.0
    %3063 = vmatprep.subr.mxu0 0.0
    %3064 = vmatpush1.msra.mxu0 0.0
    %3065 = vmatprep.subr.mxu0 0.0
    %3066 = vmatpush1.msra.mxu0 0.0
    %3067 = vmatprep.subr.mxu0 0.0
    %3068 = vmatpush1.msra.mxu0 0.0
    %3069 = vmatprep.subr.mxu0 0.0
    %3070 = vmatpush1.msra.mxu0 0.0
    %3071 = vmatprep.subr.mxu0 0.0
    %3072 = vmatpush1.msra.mxu0 0.0
    %3073 = vmatprep.subr.mxu0 0.0
    %3074 = vmatpush1.msra.mxu0 0.0
    %3075 = vmatprep.subr.mxu0 0.0
    %3076 = vmatpush1.msra.mxu0 0.0
    %3077 = vmatprep.subr.mxu0 0.0
    %3078 = vmatpush1.msra.mxu0 0.0
    %3079 = vmatprep.subr.mxu0 0.0
    %3080 = vmatpush1.msra.mxu0 0.0
    %3081 = vmatprep.subr.mxu0 0.0
    %3082 = vmatpush1.msra.mxu0 0.0
    %3083 = vmatprep.subr.mxu0 0.0
    %3084 = vmatpush1.msra.mxu0 0.0
    %3085 = vmatprep.subr.mxu0 0.0
    %3086 = vmatpush1.msra.mxu0 0.0
    %3087 = vmatprep.subr.mxu0 0.0
    %3088 = vmatpush1.msra.mxu0 0.0
    %3089 = vmatprep.subr.mxu0 0.0
    %3090 = vmatpush1.msra.mxu0 0.0
    %3091 = vmatprep.subr.mxu0 0.0
    %3092 = vmatpush1.msra.mxu0 0.0
    %3093 = vmatprep.subr.mxu0 0.0
    %3094 = vmatpush1.msra.mxu0 0.0
    %3095 = vmatprep.subr.mxu0 0.0
    %3096 = vmatpush1.msra.mxu0 0.0
    %3097 = vmatprep.subr.mxu0 0.0
    %3098 = vmatpush1.msra.mxu0 0.0
    %3099 = vmatprep.mubr.f32.mxu0 0.0
    %3100 = vmatmul.mubr.f32.gmra.mrb[0].mxu0 %v3033
    %v3101 = vpop.f32.mrb[0].mxu0
    %v3102 = vadd.f32 0.0, %v3101
    %v3103 = vpop.f32.mrb[0].mxu0
    %3104 = vdwg.mxu0
    %v3106 = vsel %vm1781, %v3102, 0
    %3108 = vmatprep.subr.mxu0 0.0
    %3109 = vmatpush1.xpose.msra.mxu0 %v2843
    %3110 = vmatprep.subr.mxu0 0.0
    %3111 = vmatpush1.xpose.msra.mxu0 %v2846
    %3112 = vmatprep.subr.mxu0 0.0
    %3113 = vmatpush1.xpose.msra.mxu0 0.0
    %3114 = vmatprep.subr.mxu0 0.0
    %3115 = vmatpush1.xpose.msra.mxu0 0.0
    %3116 = vmatprep.subr.mxu0 0.0
    %3117 = vmatpush1.xpose.msra.mxu0 0.0
    %3118 = vmatprep.subr.mxu0 0.0
    %3119 = vmatpush1.xpose.msra.mxu0 0.0
    %3120 = vmatprep.subr.mxu0 0.0
    %3121 = vmatpush1.xpose.msra.mxu0 0.0
    %3122 = vmatprep.subr.mxu0 0.0
    %3123 = vmatpush1.xpose.msra.mxu0 0.0
    %3124 = vmatprep.subr.mxu0 0.0
    %3125 = vmatpush1.xpose.msra.mxu0 0.0
    %3126 = vmatprep.subr.mxu0 0.0
    %3127 = vmatpush1.xpose.msra.mxu0 0.0
    %3128 = vmatprep.subr.mxu0 0.0
    %3129 = vmatpush1.xpose.msra.mxu0 0.0
    %3130 = vmatprep.subr.mxu0 0.0
    %3131 = vmatpush1.xpose.msra.mxu0 0.0
    %3132 = vmatprep.subr.mxu0 0.0
    %3133 = vmatpush1.xpose.msra.mxu0 0.0
    %3134 = vmatprep.subr.mxu0 0.0
    %3135 = vmatpush1.xpose.msra.mxu0 0.0
    %3136 = vmatprep.subr.mxu0 0.0
    %3137 = vmatpush1.xpose.msra.mxu0 0.0
    %3138 = vmatprep.subr.mxu0 0.0
    %3139 = vmatpush1.xpose.msra.mxu0 0.0
    %3140 = vmatprep.subr.mxu0 0.0
    %3141 = vmatpush1.xpose.msra.mxu0 0.0
    %3142 = vmatprep.subr.mxu0 0.0
    %3143 = vmatpush1.xpose.msra.mxu0 0.0
    %3144 = vmatprep.subr.mxu0 0.0
    %3145 = vmatpush1.xpose.msra.mxu0 0.0
    %3146 = vmatprep.subr.mxu0 0.0
    %3147 = vmatpush1.xpose.msra.mxu0 0.0
    %3148 = vmatprep.subr.mxu0 0.0
    %3149 = vmatpush1.xpose.msra.mxu0 0.0
    %3150 = vmatprep.subr.mxu0 0.0
    %3151 = vmatpush1.xpose.msra.mxu0 0.0
    %3152 = vmatprep.subr.mxu0 0.0
    %3153 = vmatpush1.xpose.msra.mxu0 0.0
    %3154 = vmatprep.subr.mxu0 0.0
    %3155 = vmatpush1.xpose.msra.mxu0 0.0
    %3156 = vmatprep.subr.mxu0 0.0
    %3157 = vmatpush1.xpose.msra.mxu0 0.0
    %3158 = vmatprep.subr.mxu0 0.0
    %3159 = vmatpush1.xpose.msra.mxu0 0.0
    %3160 = vmatprep.subr.mxu0 0.0
    %3161 = vmatpush1.xpose.msra.mxu0 0.0
    %3162 = vmatprep.subr.mxu0 0.0
    %3163 = vmatpush1.xpose.msra.mxu0 0.0
    %3164 = vmatprep.subr.mxu0 0.0
    %3165 = vmatpush1.xpose.msra.mxu0 0.0
    %3166 = vmatprep.subr.mxu0 0.0
    %3167 = vmatpush1.xpose.msra.mxu0 0.0
    %3168 = vmatprep.subr.mxu0 0.0
    %3169 = vmatpush1.xpose.msra.mxu0 0.0
    %3170 = vmatprep.subr.mxu0 0.0
    %3171 = vmatpush1.xpose.msra.mxu0 0.0
    %3172 = vmatprep.mubr.f32.mxu0 0.0
    %3173 = vmatmul.mubr.f32.gmra.mrb[0].mxu0 %v3106
    %v3174 = vpop.f32.mrb[0].mxu0
    %v3175 = vadd.f32 0.0, %v3174
    %v3176 = vpop.f32.mrb[0].mxu0
    %3177 = vdwg.mxu0
    %v3178 = vmul.f32 %v3175, 0.125
    %v3179 = vsel %vm2155, %v3178, -inf
    %3180 = vmax.xlane.f32.xlu0 %v3179
    %v3181 = vpop.xlane.xlu0 %3180
    %v3182 = vsub.f32 %v3178, %v3181
    %v3183 = vmul.f32 %v3182, 1.442695
    %v3184 = vpow.pop %v3183
    %v3185 = vsel %vm2155, %v3184, 0.0
    %3186 = vadd.xlane.f32.xlu0 %v3185
    %v3187 = vpop.xlane.xlu0 %3186
    %v3188 = vrcp.pop %v3187
    %v3189 = vmul.f32 %v3184, %v3188
    %v3191 = vsel %vm2155, %v3189, 0
    %3193 = vmatprep.subr.mxu0 0.0
    %3194 = vmatpush1.msra.mxu0 %v2840
    %3195 = vmatprep.subr.mxu0 0.0
    %3196 = vmatpush1.msra.mxu0 %v2841
    %3197 = vmatprep.subr.mxu0 0.0
    %3198 = vmatpush1.msra.mxu0 0.0
    %3199 = vmatprep.subr.mxu0 0.0
    %3200 = vmatpush1.msra.mxu0 0.0
    %3201 = vmatprep.subr.mxu0 0.0
    %3202 = vmatpush1.msra.mxu0 0.0
    %3203 = vmatprep.subr.mxu0 0.0
    %3204 = vmatpush1.msra.mxu0 0.0
    %3205 = vmatprep.subr.mxu0 0.0
    %3206 = vmatpush1.msra.mxu0 0.0
    %3207 = vmatprep.subr.mxu0 0.0
    %3208 = vmatpush1.msra.mxu0 0.0
    %3209 = vmatprep.subr.mxu0 0.0
    %3210 = vmatpush1.msra.mxu0 0.0
    %3211 = vmatprep.subr.mxu0 0.0
    %3212 = vmatpush1.msra.mxu0 0.0
    %3213 = vmatprep.subr.mxu0 0.0
    %3214 = vmatpush1.msra.mxu0 0.0
    %3215 = vmatprep.subr.mxu0 0.0
    %3216 = vmatpush1.msra.mxu0 0.0
    %3217 = vmatprep.subr.mxu0 0.0
    %3218 = vmatpush1.msra.mxu0 0.0
    %3219 = vmatprep.subr.mxu0 0.0
    %3220 = vmatpush1.msra.mxu0 0.0
    %3221 = vmatprep.subr.mxu0 0.0
    %3222 = vmatpush1.msra.mxu0 0.0
    %3223 = vmatprep.subr.mxu0 0.0
    %3224 = vmatpush1.msra.mxu0 0.0
    %3225 = vmatprep.subr.mxu0 0.0
    %3226 = vmatpush1.msra.mxu0 0.0
    %3227 = vmatprep.subr.mxu0 0.0
    %3228 = vmatpush1.msra.mxu0 0.0
    %3229 = vmatprep.subr.mxu0 0.0
    %3230 = vmatpush1.msra.mxu0 0.0
    %3231 = vmatprep.subr.mxu0 0.0
    %3232 = vmatpush1.msra.mxu0 0.0
    %3233 = vmatprep.subr.mxu0 0.0
    %3234 = vmatpush1.msra.mxu0 0.0
    %3235 = vmatprep.subr.mxu0 0.0
    %3236 = vmatpush1.msra.mxu0 0.0
    %3237 = vmatprep.subr.mxu0 0.0
    %3238 = vmatpush1.msra.mxu0 0.0
    %3239 = vmatprep.subr.mxu0 0.0
    %3240 = vmatpush1.msra.mxu0 0.0
    %3241 = vmatprep.subr.mxu0 0.0
    %3242 = vmatpush1.msra.mxu0 0.0
    %3243 = vmatprep.subr.mxu0 0.0
    %3244 = vmatpush1.msra.mxu0 0.0
    %3245 = vmatprep.subr.mxu0 0.0
    %3246 = vmatpush1.msra.mxu0 0.0
    %3247 = vmatprep.subr.mxu0 0.0
    %3248 = vmatpush1.msra.mxu0 0.0
    %3249 = vmatprep.subr.mxu0 0.0
    %3250 = vmatpush1.msra.mxu0 0.0
    %3251 = vmatprep.subr.mxu0 0.0
    %3252 = vmatpush1.msra.mxu0 0.0
    %3253 = vmatprep.subr.mxu0 0.0
    %3254 = vmatpush1.msra.mxu0 0.0
    %3255 = vmatprep.subr.mxu0 0.0
    %3256 = vmatpush1.msra.mxu0 0.0
    %3257 = vmatprep.mubr.f32.mxu0 0.0
    %3258 = vmatmul.mubr.f32.gmra.mrb[0].mxu0 %v3191
    %v3259 = vpop.f32.mrb[0].mxu0
    %v3260 = vadd.f32 0.0, %v3259
    %v3261 = vpop.f32.mrb[0].mxu0
    %3262 = vdwg.mxu0
    %v3264 = vsel %vm1781, %v3260, 0
    %3266 = vmatprep.subr.mxu0 0.0
    %3267 = vmatpush1.xpose.msra.mxu0 %v2843
    %3268 = vmatprep.subr.mxu0 0.0
    %3269 = vmatpush1.xpose.msra.mxu0 %v2846
    %3270 = vmatprep.subr.mxu0 0.0
    %3271 = vmatpush1.xpose.msra.mxu0 0.0
    %3272 = vmatprep.subr.mxu0 0.0
    %3273 = vmatpush1.xpose.msra.mxu0 0.0
    %3274 = vmatprep.subr.mxu0 0.0
    %3275 = vmatpush1.xpose.msra.mxu0 0.0
    %3276 = vmatprep.subr.mxu0 0.0
    %3277 = vmatpush1.xpose.msra.mxu0 0.0
    %3278 = vmatprep.subr.mxu0 0.0
    %3279 = vmatpush1.xpose.msra.mxu0 0.0
    %3280 = vmatprep.subr.mxu0 0.0
    %3281 = vmatpush1.xpose.msra.mxu0 0.0
    %3282 = vmatprep.subr.mxu0 0.0
    %3283 = vmatpush1.xpose.msra.mxu0 0.0
    %3284 = vmatprep.subr.mxu0 0.0
    %3285 = vmatpush1.xpose.msra.mxu0 0.0
    %3286 = vmatprep.subr.mxu0 0.0
    %3287 = vmatpush1.xpose.msra.mxu0 0.0
    %3288 = vmatprep.subr.mxu0 0.0
    %3289 = vmatpush1.xpose.msra.mxu0 0.0
    %3290 = vmatprep.subr.mxu0 0.0
    %3291 = vmatpush1.xpose.msra.mxu0 0.0
    %3292 = vmatprep.subr.mxu0 0.0
    %3293 = vmatpush1.xpose.msra.mxu0 0.0
    %3294 = vmatprep.subr.mxu0 0.0
    %3295 = vmatpush1.xpose.msra.mxu0 0.0
    %3296 = vmatprep.subr.mxu0 0.0
    %3297 = vmatpush1.xpose.msra.mxu0 0.0
    %3298 = vmatprep.subr.mxu0 0.0
    %3299 = vmatpush1.xpose.msra.mxu0 0.0
    %3300 = vmatprep.subr.mxu0 0.0
    %3301 = vmatpush1.xpose.msra.mxu0 0.0
    %3302 = vmatprep.subr.mxu0 0.0
    %3303 = vmatpush1.xpose.msra.mxu0 0.0
    %3304 = vmatprep.subr.mxu0 0.0
    %3305 = vmatpush1.xpose.msra.mxu0 0.0
    %3306 = vmatprep.subr.mxu0 0.0
    %3307 = vmatpush1.xpose.msra.mxu0 0.0
    %3308 = vmatprep.subr.mxu0 0.0
    %3309 = vmatpush1.xpose.msra.mxu0 0.0
    %3310 = vmatprep.subr.mxu0 0.0
    %3311 = vmatpush1.xpose.msra.mxu0 0.0
    %3312 = vmatprep.subr.mxu0 0.0
    %3313 = vmatpush1.xpose.msra.mxu0 0.0
    %3314 = vmatprep.subr.mxu0 0.0
    %3315 = vmatpush1.xpose.msra.mxu0 0.0
    %3316 = vmatprep.subr.mxu0 0.0
    %3317 = vmatpush1.xpose.msra.mxu0 0.0
    %3318 = vmatprep.subr.mxu0 0.0
    %3319 = vmatpush1.xpose.msra.mxu0 0.0
    %3320 = vmatprep.subr.mxu0 0.0
    %3321 = vmatpush1.xpose.msra.mxu0 0.0
    %3322 = vmatprep.subr.mxu0 0.0
    %3323 = vmatpush1.xpose.msra.mxu0 0.0
    %3324 = vmatprep.subr.mxu0 0.0
    %3325 = vmatpush1.xpose.msra.mxu0 0.0
    %3326 = vmatprep.subr.mxu0 0.0
    %3327 = vmatpush1.xpose.msra.mxu0 0.0
    %3328 = vmatprep.subr.mxu0 0.0
    %3329 = vmatpush1.xpose.msra.mxu0 0.0
    %3330 = vmatprep.mubr.f32.mxu0 0.0
    %3331 = vmatmul.mubr.f32.gmra.mrb[0].mxu0 %v3264
    %v3332 = vpop.f32.mrb[0].mxu0
    %v3333 = vadd.f32 0.0, %v3332
    %v3334 = vpop.f32.mrb[0].mxu0
    %3335 = vdwg.mxu0
    %v3336 = vmul.f32 %v3333, 0.125
    %v3337 = vsel %vm2155, %v3336, -inf
    %3338 = vmax.xlane.f32.xlu0 %v3337
    %v3339 = vpop.xlane.xlu0 %3338
    %v3340 = vsub.f32 %v3336, %v3339
    %v3341 = vmul.f32 %v3340, 1.442695
    %v3342 = vpow.pop %v3341
    %v3343 = vsel %vm2155, %v3342, 0.0
    %3344 = vadd.xlane.f32.xlu0 %v3343
    %v3345 = vpop.xlane.xlu0 %3344
    %v3346 = vrcp.pop %v3345
    %v3347 = vmul.f32 %v3342, %v3346
    %v3349 = vsel %vm2155, %v3347, 0
    %3351 = vmatprep.subr.mxu0 0.0
    %3352 = vmatpush1.msra.mxu0 %v2840
    %3353 = vmatprep.subr.mxu0 0.0
    %3354 = vmatpush1.msra.mxu0 %v2841
    %3355 = vmatprep.subr.mxu0 0.0
    %3356 = vmatpush1.msra.mxu0 0.0
    %3357 = vmatprep.subr.mxu0 0.0
    %3358 = vmatpush1.msra.mxu0 0.0
    %3359 = vmatprep.subr.mxu0 0.0
    %3360 = vmatpush1.msra.mxu0 0.0
    %3361 = vmatprep.subr.mxu0 0.0
    %3362 = vmatpush1.msra.mxu0 0.0
    %3363 = vmatprep.subr.mxu0 0.0
    %3364 = vmatpush1.msra.mxu0 0.0
    %3365 = vmatprep.subr.mxu0 0.0
    %3366 = vmatpush1.msra.mxu0 0.0
    %3367 = vmatprep.subr.mxu0 0.0
    %3368 = vmatpush1.msra.mxu0 0.0
    %3369 = vmatprep.subr.mxu0 0.0
    %3370 = vmatpush1.msra.mxu0 0.0
    %3371 = vmatprep.subr.mxu0 0.0
    %3372 = vmatpush1.msra.mxu0 0.0
    %3373 = vmatprep.subr.mxu0 0.0
    %3374 = vmatpush1.msra.mxu0 0.0
    %3375 = vmatprep.subr.mxu0 0.0
    %3376 = vmatpush1.msra.mxu0 0.0
    %3377 = vmatprep.subr.mxu0 0.0
    %3378 = vmatpush1.msra.mxu0 0.0
    %3379 = vmatprep.subr.mxu0 0.0
    %3380 = vmatpush1.msra.mxu0 0.0
    %3381 = vmatprep.subr.mxu0 0.0
    %3382 = vmatpush1.msra.mxu0 0.0
    %3383 = vmatprep.subr.mxu0 0.0
    %3384 = vmatpush1.msra.mxu0 0.0
    %3385 = vmatprep.subr.mxu0 0.0
    %3386 = vmatpush1.msra.mxu0 0.0
    %3387 = vmatprep.subr.mxu0 0.0
    %3388 = vmatpush1.msra.mxu0 0.0
    %3389 = vmatprep.subr.mxu0 0.0
    %3390 = vmatpush1.msra.mxu0 0.0
    %3391 = vmatprep.subr.mxu0 0.0
    %3392 = vmatpush1.msra.mxu0 0.0
    %3393 = vmatprep.subr.mxu0 0.0
    %3394 = vmatpush1.msra.mxu0 0.0
    %3395 = vmatprep.subr.mxu0 0.0
    %3396 = vmatpush1.msra.mxu0 0.0
    %3397 = vmatprep.subr.mxu0 0.0
    %3398 = vmatpush1.msra.mxu0 0.0
    %3399 = vmatprep.subr.mxu0 0.0
    %3400 = vmatpush1.msra.mxu0 0.0
    %3401 = vmatprep.subr.mxu0 0.0
    %3402 = vmatpush1.msra.mxu0 0.0
    %3403 = vmatprep.subr.mxu0 0.0
    %3404 = vmatpush1.msra.mxu0 0.0
    %3405 = vmatprep.subr.mxu0 0.0
    %3406 = vmatpush1.msra.mxu0 0.0
    %3407 = vmatprep.subr.mxu0 0.0
    %3408 = vmatpush1.msra.mxu0 0.0
    %3409 = vmatprep.subr.mxu0 0.0
    %3410 = vmatpush1.msra.mxu0 0.0
    %3411 = vmatprep.subr.mxu0 0.0
    %3412 = vmatpush1.msra.mxu0 0.0
    %3413 = vmatprep.subr.mxu0 0.0
    %3414 = vmatpush1.msra.mxu0 0.0
    %3415 = vmatprep.mubr.f32.mxu0 0.0
    %3416 = vmatmul.mubr.f32.gmra.mrb[0].mxu0 %v3349
    %v3417 = vpop.f32.mrb[0].mxu0
    %v3418 = vadd.f32 0.0, %v3417
    %v3419 = vpop.f32.mrb[0].mxu0
    %3420 = vdwg.mxu0
    %s3421 = scalar_lea.vmem [#allocation9], 8
    %3422 = vst.msk [vmem:[%s3421] sm:$0xff] %vm2155, %v3347
    %v3423 = vld [vmem:[%s9] sm:$0xff]
    %v3424 = vld [vmem:[%s9 + $0x8] sm:$0xff]
    %v3425 = vld [vmem:[%s9 + $0x10] sm:$0xff]
    %v3426 = vld [vmem:[%s9 + $0x18] sm:$0xff]
    %v3427 = vld [vmem:[%s9 + $0x20] sm:$0xff]
    %v3428 = vld [vmem:[%s9 + $0x28] sm:$0xff]
    %v3429 = vld [vmem:[%s9 + $0x30] sm:$0xff]
    %v3430 = vld [vmem:[%s9 + $0x38] sm:$0xff]
    %v3431 = vld [vmem:[%s10] sm:$0x1]
    %v3433 = vlaneseq
    %v3434 = vshrl.u32 %v3433, 7
    %v3435 = vsub.s32 0, %v3434
    %v3436 = vrot.slane %v3431, %v3435
    %v3439 = vsel %vm1781, %v2648, 0
    %v3442 = vsel %vm1781, %v3418, 0
    %3444 = vmatprep.subr.mxu0 0.0
    %3445 = vmatpush1.msra.mxu0 %v3423
    %3446 = vmatprep.subr.mxu0 0.0
    %3447 = vmatpush1.msra.mxu0 %v3424
    %3448 = vmatprep.subr.mxu0 0.0
    %3449 = vmatpush1.msra.mxu0 %v3425
    %3450 = vmatprep.subr.mxu0 0.0
    %3451 = vmatpush1.msra.mxu0 %v3426
    %3452 = vmatprep.subr.mxu0 0.0
    %3453 = vmatpush1.msra.mxu0 %v3427
    %3454 = vmatprep.subr.mxu0 0.0
    %3455 = vmatpush1.msra.mxu0 %v3428
    %3456 = vmatprep.subr.mxu0 0.0
    %3457 = vmatpush1.msra.mxu0 %v3429
    %3458 = vmatprep.subr.mxu0 0.0
    %3459 = vmatpush1.msra.mxu0 %v3430
    %3460 = vmatprep.subr.mxu0 0.0
    %3461 = vmatpush1.msra.mxu0 0.0
    %3462 = vmatprep.subr.mxu0 0.0
    %3463 = vmatpush1.msra.mxu0 0.0
    %3464 = vmatprep.subr.mxu0 0.0
    %3465 = vmatpush1.msra.mxu0 0.0
    %3466 = vmatprep.subr.mxu0 0.0
    %3467 = vmatpush1.msra.mxu0 0.0
    %3468 = vmatprep.subr.mxu0 0.0
    %3469 = vmatpush1.msra.mxu0 0.0
    %3470 = vmatprep.subr.mxu0 0.0
    %3471 = vmatpush1.msra.mxu0 0.0
    %3472 = vmatprep.subr.mxu0 0.0
    %3473 = vmatpush1.msra.mxu0 0.0
    %3474 = vmatprep.subr.mxu0 0.0
    %3475 = vmatpush1.msra.mxu0 0.0
    %3476 = vmatprep.subr.mxu0 0.0
    %3477 = vmatpush1.msra.mxu0 0.0
    %3478 = vmatprep.subr.mxu0 0.0
    %3479 = vmatpush1.msra.mxu0 0.0
    %3480 = vmatprep.subr.mxu0 0.0
    %3481 = vmatpush1.msra.mxu0 0.0
    %3482 = vmatprep.subr.mxu0 0.0
    %3483 = vmatpush1.msra.mxu0 0.0
    %3484 = vmatprep.subr.mxu0 0.0
    %3485 = vmatpush1.msra.mxu0 0.0
    %3486 = vmatprep.subr.mxu0 0.0
    %3487 = vmatpush1.msra.mxu0 0.0
    %3488 = vmatprep.subr.mxu0 0.0
    %3489 = vmatpush1.msra.mxu0 0.0
    %3490 = vmatprep.subr.mxu0 0.0
    %3491 = vmatpush1.msra.mxu0 0.0
    %3492 = vmatprep.subr.mxu0 0.0
    %3493 = vmatpush1.msra.mxu0 0.0
    %3494 = vmatprep.subr.mxu0 0.0
    %3495 = vmatpush1.msra.mxu0 0.0
    %3496 = vmatprep.subr.mxu0 0.0
    %3497 = vmatpush1.msra.mxu0 0.0
    %3498 = vmatprep.subr.mxu0 0.0
    %3499 = vmatpush1.msra.mxu0 0.0
    %3500 = vmatprep.subr.mxu0 0.0
    %3501 = vmatpush1.msra.mxu0 0.0
    %3502 = vmatprep.subr.mxu0 0.0
    %3503 = vmatpush1.msra.mxu0 0.0
    %3504 = vmatprep.subr.mxu0 0.0
    %3505 = vmatpush1.msra.mxu0 0.0
    %3506 = vmatprep.subr.mxu0 0.0
    %3507 = vmatpush1.msra.mxu0 0.0
    %3508 = vmatprep.mubr.f32.mxu0 0.0
    %3509 = vmatmul.mubr.f32.gmra.mrb[0].mxu0 %v2336
    %v3510 = vpop.f32.mrb[0].mxu0
    %v3511 = vadd.f32 %v3436, %v3510
    %v3512 = vpop.f32.mrb[0].mxu0
    %3513 = vmatprep.mubr.f32.mxu0 0.0
    %3514 = vmatmul.mubr.f32.gmra.mrb[0].mxu0 %v3106
    %v3515 = vpop.f32.mrb[0].mxu0
    %v3516 = vadd.f32 %v3436, %v3515
    %v3517 = vpop.f32.mrb[0].mxu0
    %3518 = vmatprep.mubr.f32.mxu0 0.0
    %3519 = vmatmul.mubr.f32.gmra.mrb[0].mxu0 %v2494
    %v3520 = vpop.f32.mrb[0].mxu0
    %v3521 = vadd.f32 %v3436, %v3520
    %v3522 = vpop.f32.mrb[0].mxu0
    %3523 = vmatprep.mubr.f32.mxu0 0.0
    %3524 = vmatmul.mubr.f32.gmra.mrb[0].mxu0 %v3264
    %v3525 = vpop.f32.mrb[0].mxu0
    %v3526 = vadd.f32 %v3436, %v3525
    %v3527 = vpop.f32.mrb[0].mxu0
    %3528 = vmatprep.mubr.f32.mxu0 0.0
    %3529 = vmatmul.mubr.f32.gmra.mrb[0].mxu0 %v3439
    %v3530 = vpop.f32.mrb[0].mxu0
    %v3531 = vadd.f32 %v3436, %v3530
    %v3532 = vpop.f32.mrb[0].mxu0
    %3533 = vmatprep.mubr.f32.mxu0 0.0
    %3534 = vmatmul.mubr.f32.gmra.mrb[0].mxu0 %v3442
    %v3535 = vpop.f32.mrb[0].mxu0
    %v3536 = vadd.f32 %v3436, %v3535
    %v3537 = vpop.f32.mrb[0].mxu0
    %3538 = vdwg.mxu0
    %3539 = vst [vmem:[#allocation2] sm:$0xff] %v3511
    %3540 = vst [vmem:[#allocation2 + $0x8] sm:$0xff] %v3516
    %3541 = vst [vmem:[#allocation2 + $0x10] sm:$0xff] %v3521
    %3542 = vst [vmem:[#allocation2 + $0x18] sm:$0xff] %v3526
    %3543 = vst [vmem:[#allocation2 + $0x20] sm:$0xff] %v3531
    %3544 = vst [vmem:[#allocation2 + $0x28] sm:$0xff] %v3536
    %v3545 = vld [vmem:[%s11] sm:$0xff]
    %v3546 = vld [vmem:[%s11 + $0x8] sm:$0xff]
    %v3547 = vld [vmem:[%s11 + $0x10] sm:$0xff]
    %v3548 = vld [vmem:[%s11 + $0x18] sm:$0xff]
    %v3549 = vld [vmem:[%s11 + $0x20] sm:$0xff]
    %v3550 = vld [vmem:[%s11 + $0x28] sm:$0xff]
    %v3551 = vld [vmem:[%s11 + $0x30] sm:$0xff]
    %v3552 = vld [vmem:[%s11 + $0x38] sm:$0xff]
    %v3553 = vld [vmem:[%s12] sm:$0x1]
    %v3555 = vlaneseq
    %v3556 = vshrl.u32 %v3555, 7
    %v3557 = vsub.s32 0, %v3556
    %v3558 = vrot.slane %v3553, %v3557
    %3560 = vmatprep.subr.mxu0 0.0
    %3561 = vmatpush1.msra.mxu0 %v3545
    %3562 = vmatprep.subr.mxu0 0.0
    %3563 = vmatpush1.msra.mxu0 %v3546
    %3564 = vmatprep.subr.mxu0 0.0
    %3565 = vmatpush1.msra.mxu0 %v3547
    %3566 = vmatprep.subr.mxu0 0.0
    %3567 = vmatpush1.msra.mxu0 %v3548
    %3568 = vmatprep.subr.mxu0 0.0
    %3569 = vmatpush1.msra.mxu0 %v3549
    %3570 = vmatprep.subr.mxu0 0.0
    %3571 = vmatpush1.msra.mxu0 %v3550
    %3572 = vmatprep.subr.mxu0 0.0
    %3573 = vmatpush1.msra.mxu0 %v3551
    %3574 = vmatprep.subr.mxu0 0.0
    %3575 = vmatpush1.msra.mxu0 %v3552
    %3576 = vmatprep.subr.mxu0 0.0
    %3577 = vmatpush1.msra.mxu0 0.0
    %3578 = vmatprep.subr.mxu0 0.0
    %3579 = vmatpush1.msra.mxu0 0.0
    %3580 = vmatprep.subr.mxu0 0.0
    %3581 = vmatpush1.msra.mxu0 0.0
    %3582 = vmatprep.subr.mxu0 0.0
    %3583 = vmatpush1.msra.mxu0 0.0
    %3584 = vmatprep.subr.mxu0 0.0
    %3585 = vmatpush1.msra.mxu0 0.0
    %3586 = vmatprep.subr.mxu0 0.0
    %3587 = vmatpush1.msra.mxu0 0.0
    %3588 = vmatprep.subr.mxu0 0.0
    %3589 = vmatpush1.msra.mxu0 0.0
    %3590 = vmatprep.subr.mxu0 0.0
    %3591 = vmatpush1.msra.mxu0 0.0
    %3592 = vmatprep.subr.mxu0 0.0
    %3593 = vmatpush1.msra.mxu0 0.0
    %3594 = vmatprep.subr.mxu0 0.0
    %3595 = vmatpush1.msra.mxu0 0.0
    %3596 = vmatprep.subr.mxu0 0.0
    %3597 = vmatpush1.msra.mxu0 0.0
    %3598 = vmatprep.subr.mxu0 0.0
    %3599 = vmatpush1.msra.mxu0 0.0
    %3600 = vmatprep.subr.mxu0 0.0
    %3601 = vmatpush1.msra.mxu0 0.0
    %3602 = vmatprep.subr.mxu0 0.0
    %3603 = vmatpush1.msra.mxu0 0.0
    %3604 = vmatprep.subr.mxu0 0.0
    %3605 = vmatpush1.msra.mxu0 0.0
    %3606 = vmatprep.subr.mxu0 0.0
    %3607 = vmatpush1.msra.mxu0 0.0
    %3608 = vmatprep.subr.mxu0 0.0
    %3609 = vmatpush1.msra.mxu0 0.0
    %3610 = vmatprep.subr.mxu0 0.0
    %3611 = vmatpush1.msra.mxu0 0.0
    %3612 = vmatprep.subr.mxu0 0.0
    %3613 = vmatpush1.msra.mxu0 0.0
    %3614 = vmatprep.subr.mxu0 0.0
    %3615 = vmatpush1.msra.mxu0 0.0
    %3616 = vmatprep.subr.mxu0 0.0
    %3617 = vmatpush1.msra.mxu0 0.0
    %3618 = vmatprep.subr.mxu0 0.0
    %3619 = vmatpush1.msra.mxu0 0.0
    %3620 = vmatprep.subr.mxu0 0.0
    %3621 = vmatpush1.msra.mxu0 0.0
    %3622 = vmatprep.subr.mxu0 0.0
    %3623 = vmatpush1.msra.mxu0 0.0
    %3624 = vmatprep.mubr.f32.mxu0 0.0
    %3625 = vmatmul.mubr.f32.gmra.mrb[0].mxu0 %v2336
    %v3626 = vpop.f32.mrb[0].mxu0
    %v3627 = vadd.f32 %v3558, %v3626
    %v3628 = vpop.f32.mrb[0].mxu0
    %3629 = vmatprep.mubr.f32.mxu0 0.0
    %3630 = vmatmul.mubr.f32.gmra.mrb[0].mxu0 %v3106
    %v3631 = vpop.f32.mrb[0].mxu0
    %v3632 = vadd.f32 %v3558, %v3631
    %v3633 = vpop.f32.mrb[0].mxu0
    %3634 = vmatprep.mubr.f32.mxu0 0.0
    %3635 = vmatmul.mubr.f32.gmra.mrb[0].mxu0 %v2494
    %v3636 = vpop.f32.mrb[0].mxu0
    %v3637 = vadd.f32 %v3558, %v3636
    %v3638 = vpop.f32.mrb[0].mxu0
    %3639 = vmatprep.mubr.f32.mxu0 0.0
    %3640 = vmatmul.mubr.f32.gmra.mrb[0].mxu0 %v3264
    %v3641 = vpop.f32.mrb[0].mxu0
    %v3642 = vadd.f32 %v3558, %v3641
    %v3643 = vpop.f32.mrb[0].mxu0
    %3644 = vmatprep.mubr.f32.mxu0 0.0
    %3645 = vmatmul.mubr.f32.gmra.mrb[0].mxu0 %v3439
    %v3646 = vpop.f32.mrb[0].mxu0
    %v3647 = vadd.f32 %v3558, %v3646
    %v3648 = vpop.f32.mrb[0].mxu0
    %3649 = vmatprep.mubr.f32.mxu0 0.0
    %3650 = vmatmul.mubr.f32.gmra.mrb[0].mxu0 %v3442
    %v3651 = vpop.f32.mrb[0].mxu0
    %v3652 = vadd.f32 %v3558, %v3651
    %v3653 = vpop.f32.mrb[0].mxu0
    %3654 = vdwg.mxu0
    %v3655 = vmax.f32 %v3627, 0.0
    %v3656 = vmax.f32 %v3632, 0.0
    %v3657 = vmax.f32 %v3637, 0.0
    %v3658 = vmax.f32 %v3642, 0.0
    %v3659 = vmax.f32 %v3647, 0.0
    %v3660 = vmax.f32 %v3652, 0.0
    %v3661 = vld [vmem:[%s13] sm:$0xff]
    %v3662 = vld [vmem:[%s13 + $0x8] sm:$0xff]
    %v3663 = vld [vmem:[%s13 + $0x10] sm:$0xff]
    %v3664 = vld [vmem:[%s13 + $0x18] sm:$0xff]
    %v3665 = vld [vmem:[%s13 + $0x20] sm:$0xff]
    %v3666 = vld [vmem:[%s13 + $0x28] sm:$0xff]
    %v3667 = vld [vmem:[%s13 + $0x30] sm:$0xff]
    %v3668 = vld [vmem:[%s13 + $0x38] sm:$0xff]
    %v3669 = vld [vmem:[%s14] sm:$0x1]
    %v3671 = vlaneseq
    %v3672 = vshrl.u32 %v3671, 7
    %v3673 = vsub.s32 0, %v3672
    %v3674 = vrot.slane %v3669, %v3673
    %v3677 = vsel %vm1781, %v3655, 0
    %v3680 = vsel %vm1781, %v3656, 0
    %v3683 = vsel %vm1781, %v3657, 0
    %v3686 = vsel %vm1781, %v3658, 0
    %v3689 = vsel %vm1781, %v3659, 0
    %v3692 = vsel %vm1781, %v3660, 0
    %3694 = vmatprep.subr.mxu0 0.0
    %3695 = vmatpush1.msra.mxu0 %v3661
    %3696 = vmatprep.subr.mxu0 0.0
    %3697 = vmatpush1.msra.mxu0 %v3662
    %3698 = vmatprep.subr.mxu0 0.0
    %3699 = vmatpush1.msra.mxu0 %v3663
    %3700 = vmatprep.subr.mxu0 0.0
    %3701 = vmatpush1.msra.mxu0 %v3664
    %3702 = vmatprep.subr.mxu0 0.0
    %3703 = vmatpush1.msra.mxu0 %v3665
    %3704 = vmatprep.subr.mxu0 0.0
    %3705 = vmatpush1.msra.mxu0 %v3666
    %3706 = vmatprep.subr.mxu0 0.0
    %3707 = vmatpush1.msra.mxu0 %v3667
    %3708 = vmatprep.subr.mxu0 0.0
    %3709 = vmatpush1.msra.mxu0 %v3668
    %3710 = vmatprep.subr.mxu0 0.0
    %3711 = vmatpush1.msra.mxu0 0.0
    %3712 = vmatprep.subr.mxu0 0.0
    %3713 = vmatpush1.msra.mxu0 0.0
    %3714 = vmatprep.subr.mxu0 0.0
    %3715 = vmatpush1.msra.mxu0 0.0
    %3716 = vmatprep.subr.mxu0 0.0
    %3717 = vmatpush1.msra.mxu0 0.0
    %3718 = vmatprep.subr.mxu0 0.0
    %3719 = vmatpush1.msra.mxu0 0.0
    %3720 = vmatprep.subr.mxu0 0.0
    %3721 = vmatpush1.msra.mxu0 0.0
    %3722 = vmatprep.subr.mxu0 0.0
    %3723 = vmatpush1.msra.mxu0 0.0
    %3724 = vmatprep.subr.mxu0 0.0
    %3725 = vmatpush1.msra.mxu0 0.0
    %3726 = vmatprep.subr.mxu0 0.0
    %3727 = vmatpush1.msra.mxu0 0.0
    %3728 = vmatprep.subr.mxu0 0.0
    %3729 = vmatpush1.msra.mxu0 0.0
    %3730 = vmatprep.subr.mxu0 0.0
    %3731 = vmatpush1.msra.mxu0 0.0
    %3732 = vmatprep.subr.mxu0 0.0
    %3733 = vmatpush1.msra.mxu0 0.0
    %3734 = vmatprep.subr.mxu0 0.0
    %3735 = vmatpush1.msra.mxu0 0.0
    %3736 = vmatprep.subr.mxu0 0.0
    %3737 = vmatpush1.msra.mxu0 0.0
    %3738 = vmatprep.subr.mxu0 0.0
    %3739 = vmatpush1.msra.mxu0 0.0
    %3740 = vmatprep.subr.mxu0 0.0
    %3741 = vmatpush1.msra.mxu0 0.0
    %3742 = vmatprep.subr.mxu0 0.0
    %3743 = vmatpush1.msra.mxu0 0.0
    %3744 = vmatprep.subr.mxu0 0.0
    %3745 = vmatpush1.msra.mxu0 0.0
    %3746 = vmatprep.subr.mxu0 0.0
    %3747 = vmatpush1.msra.mxu0 0.0
    %3748 = vmatprep.subr.mxu0 0.0
    %3749 = vmatpush1.msra.mxu0 0.0
    %3750 = vmatprep.subr.mxu0 0.0
    %3751 = vmatpush1.msra.mxu0 0.0
    %3752 = vmatprep.subr.mxu0 0.0
    %3753 = vmatpush1.msra.mxu0 0.0
    %3754 = vmatprep.subr.mxu0 0.0
    %3755 = vmatpush1.msra.mxu0 0.0
    %3756 = vmatprep.subr.mxu0 0.0
    %3757 = vmatpush1.msra.mxu0 0.0
    %3758 = vmatprep.mubr.f32.mxu0 0.0
    %3759 = vmatmul.mubr.f32.gmra.mrb[0].mxu0 %v3677
    %v3760 = vpop.f32.mrb[0].mxu0
    %v3761 = vadd.f32 %v3674, %v3760
    %v3762 = vpop.f32.mrb[0].mxu0
    %3763 = vmatprep.mubr.f32.mxu0 0.0
    %3764 = vmatmul.mubr.f32.gmra.mrb[0].mxu0 %v3680
    %v3765 = vpop.f32.mrb[0].mxu0
    %v3766 = vadd.f32 %v3674, %v3765
    %v3767 = vpop.f32.mrb[0].mxu0
    %3768 = vmatprep.mubr.f32.mxu0 0.0
    %3769 = vmatmul.mubr.f32.gmra.mrb[0].mxu0 %v3683
    %v3770 = vpop.f32.mrb[0].mxu0
    %v3771 = vadd.f32 %v3674, %v3770
    %v3772 = vpop.f32.mrb[0].mxu0
    %3773 = vmatprep.mubr.f32.mxu0 0.0
    %3774 = vmatmul.mubr.f32.gmra.mrb[0].mxu0 %v3686
    %v3775 = vpop.f32.mrb[0].mxu0
    %v3776 = vadd.f32 %v3674, %v3775
    %v3777 = vpop.f32.mrb[0].mxu0
    %3778 = vmatprep.mubr.f32.mxu0 0.0
    %3779 = vmatmul.mubr.f32.gmra.mrb[0].mxu0 %v3689
    %v3780 = vpop.f32.mrb[0].mxu0
    %v3781 = vadd.f32 %v3674, %v3780
    %v3782 = vpop.f32.mrb[0].mxu0
    %3783 = vmatprep.mubr.f32.mxu0 0.0
    %3784 = vmatmul.mubr.f32.gmra.mrb[0].mxu0 %v3692
    %v3785 = vpop.f32.mrb[0].mxu0
    %v3786 = vadd.f32 %v3674, %v3785
    %v3787 = vpop.f32.mrb[0].mxu0
    %3788 = vdwg.mxu0
    %v3789 = vmax.f32 %v3761, 0.0
    %v3790 = vmax.f32 %v3766, 0.0
    %v3791 = vmax.f32 %v3771, 0.0
    %v3792 = vmax.f32 %v3776, 0.0
    %v3793 = vmax.f32 %v3781, 0.0
    %v3794 = vmax.f32 %v3786, 0.0
    %v3795 = vld [vmem:[%s15] sm:$0xff]
    %v3796 = vld [vmem:[%s15 + $0x8] sm:$0xff]
    %v3797 = vld [vmem:[%s15 + $0x10] sm:$0xff]
    %v3798 = vld [vmem:[%s15 + $0x18] sm:$0xff]
    %v3799 = vld [vmem:[%s15 + $0x20] sm:$0xff]
    %v3800 = vld [vmem:[%s15 + $0x28] sm:$0xff]
    %v3801 = vld [vmem:[%s15 + $0x30] sm:$0xff]
    %v3802 = vld [vmem:[%s15 + $0x38] sm:$0xff]
    %v3803 = vld [vmem:[%s16] sm:$0x1]
    %v3805 = vlaneseq
    %v3806 = vshrl.u32 %v3805, 7
    %v3807 = vsub.s32 0, %v3806
    %v3808 = vrot.slane %v3803, %v3807
    %v3811 = vsel %vm1781, %v3789, 0
    %v3814 = vsel %vm1781, %v3790, 0
    %v3817 = vsel %vm1781, %v3791, 0
    %v3820 = vsel %vm1781, %v3792, 0
    %v3823 = vsel %vm1781, %v3793, 0
    %v3826 = vsel %vm1781, %v3794, 0
    %3828 = vmatprep.subr.mxu0 0.0
    %3829 = vmatpush1.msra.mxu0 %v3795
    %3830 = vmatprep.subr.mxu0 0.0
    %3831 = vmatpush1.msra.mxu0 %v3796
    %3832 = vmatprep.subr.mxu0 0.0
    %3833 = vmatpush1.msra.mxu0 %v3797
    %3834 = vmatprep.subr.mxu0 0.0
    %3835 = vmatpush1.msra.mxu0 %v3798
    %3836 = vmatprep.subr.mxu0 0.0
    %3837 = vmatpush1.msra.mxu0 %v3799
    %3838 = vmatprep.subr.mxu0 0.0
    %3839 = vmatpush1.msra.mxu0 %v3800
    %3840 = vmatprep.subr.mxu0 0.0
    %3841 = vmatpush1.msra.mxu0 %v3801
    %3842 = vmatprep.subr.mxu0 0.0
    %3843 = vmatpush1.msra.mxu0 %v3802
    %3844 = vmatprep.subr.mxu0 0.0
    %3845 = vmatpush1.msra.mxu0 0.0
    %3846 = vmatprep.subr.mxu0 0.0
    %3847 = vmatpush1.msra.mxu0 0.0
    %3848 = vmatprep.subr.mxu0 0.0
    %3849 = vmatpush1.msra.mxu0 0.0
    %3850 = vmatprep.subr.mxu0 0.0
    %3851 = vmatpush1.msra.mxu0 0.0
    %3852 = vmatprep.subr.mxu0 0.0
    %3853 = vmatpush1.msra.mxu0 0.0
    %3854 = vmatprep.subr.mxu0 0.0
    %3855 = vmatpush1.msra.mxu0 0.0
    %3856 = vmatprep.subr.mxu0 0.0
    %3857 = vmatpush1.msra.mxu0 0.0
    %3858 = vmatprep.subr.mxu0 0.0
    %3859 = vmatpush1.msra.mxu0 0.0
    %3860 = vmatprep.subr.mxu0 0.0
    %3861 = vmatpush1.msra.mxu0 0.0
    %3862 = vmatprep.subr.mxu0 0.0
    %3863 = vmatpush1.msra.mxu0 0.0
    %3864 = vmatprep.subr.mxu0 0.0
    %3865 = vmatpush1.msra.mxu0 0.0
    %3866 = vmatprep.subr.mxu0 0.0
    %3867 = vmatpush1.msra.mxu0 0.0
    %3868 = vmatprep.subr.mxu0 0.0
    %3869 = vmatpush1.msra.mxu0 0.0
    %3870 = vmatprep.subr.mxu0 0.0
    %3871 = vmatpush1.msra.mxu0 0.0
    %3872 = vmatprep.subr.mxu0 0.0
    %3873 = vmatpush1.msra.mxu0 0.0
    %3874 = vmatprep.subr.mxu0 0.0
    %3875 = vmatpush1.msra.mxu0 0.0
    %3876 = vmatprep.subr.mxu0 0.0
    %3877 = vmatpush1.msra.mxu0 0.0
    %3878 = vmatprep.subr.mxu0 0.0
    %3879 = vmatpush1.msra.mxu0 0.0
    %3880 = vmatprep.subr.mxu0 0.0
    %3881 = vmatpush1.msra.mxu0 0.0
    %3882 = vmatprep.subr.mxu0 0.0
    %3883 = vmatpush1.msra.mxu0 0.0
    %3884 = vmatprep.subr.mxu0 0.0
    %3885 = vmatpush1.msra.mxu0 0.0
    %3886 = vmatprep.subr.mxu0 0.0
    %3887 = vmatpush1.msra.mxu0 0.0
    %3888 = vmatprep.subr.mxu0 0.0
    %3889 = vmatpush1.msra.mxu0 0.0
    %3890 = vmatprep.subr.mxu0 0.0
    %3891 = vmatpush1.msra.mxu0 0.0
    %3892 = vmatprep.mubr.f32.mxu0 0.0
    %3893 = vmatmul.mubr.f32.gmra.mrb[0].mxu0 %v3811
    %v3894 = vpop.f32.mrb[0].mxu0
    %v3895 = vadd.f32 %v3808, %v3894
    %v3896 = vpop.f32.mrb[0].mxu0
    %3897 = vmatprep.mubr.f32.mxu0 0.0
    %3898 = vmatmul.mubr.f32.gmra.mrb[0].mxu0 %v3814
    %v3899 = vpop.f32.mrb[0].mxu0
    %v3900 = vadd.f32 %v3808, %v3899
    %v3901 = vpop.f32.mrb[0].mxu0
    %3902 = vmatprep.mubr.f32.mxu0 0.0
    %3903 = vmatmul.mubr.f32.gmra.mrb[0].mxu0 %v3817
    %v3904 = vpop.f32.mrb[0].mxu0
    %v3905 = vadd.f32 %v3808, %v3904
    %v3906 = vpop.f32.mrb[0].mxu0
    %3907 = vmatprep.mubr.f32.mxu0 0.0
    %3908 = vmatmul.mubr.f32.gmra.mrb[0].mxu0 %v3820
    %v3909 = vpop.f32.mrb[0].mxu0
    %v3910 = vadd.f32 %v3808, %v3909
    %v3911 = vpop.f32.mrb[0].mxu0
    %3912 = vmatprep.mubr.f32.mxu0 0.0
    %3913 = vmatmul.mubr.f32.gmra.mrb[0].mxu0 %v3823
    %v3914 = vpop.f32.mrb[0].mxu0
    %v3915 = vadd.f32 %v3808, %v3914
    %v3916 = vpop.f32.mrb[0].mxu0
    %3917 = vmatprep.mubr.f32.mxu0 0.0
    %3918 = vmatmul.mubr.f32.gmra.mrb[0].mxu0 %v3826
    %v3919 = vpop.f32.mrb[0].mxu0
    %v3920 = vadd.f32 %v3808, %v3919
    %v3921 = vpop.f32.mrb[0].mxu0
    %3922 = vdwg.mxu0
    %v3923 = vxor.u32 %v1694, 2147483648
    %v3924 = vmul.f32 %v3923, 1.442695
    %v3925 = vpow.pop %v3924
    %v3926 = vadd.f32 %v3925, 1.0
    %v3927 = vrcp.pop %v3926
    %v3928 = vmul.f32 1.0, %v3927
    %v3929 = vmax.f32 %v3928, 0.0
    %v3930 = vmin.f32 %v3929, 1.0
    %v3931 = vmax.f32 %v3930, 0.001
    %v3932 = vsub.f32 1.0, %v3930
    %v3933 = vmax.f32 %v3932, 0.001
    %v3934 = vlog2.pop %v3931
    %v3935 = vmul.f32 %v3934, 0.6931472
    %v3936 = vlog2.pop %v3933
    %v3937 = vmul.f32 %v3936, 0.6931472
    %v3938 = vsub.f32 %v3935, %v3937
    %v3939 = vadd.f32 %v3895, %v3938
    %v3940 = vadd.f32 %v3900, %v3938
    %v3941 = vadd.f32 %v3905, %v3938
    %v3942 = vadd.f32 %v3910, %v3938
    %v3943 = vadd.f32 %v3915, %v3938
    %v3944 = vadd.f32 %v3920, %v3938
    %v3945 = vxor.u32 %v3939, 2147483648
    %v3946 = vxor.u32 %v3940, 2147483648
    %v3947 = vxor.u32 %v3941, 2147483648
    %v3948 = vxor.u32 %v3942, 2147483648
    %v3949 = vxor.u32 %v3943, 2147483648
    %v3950 = vxor.u32 %v3944, 2147483648
    %v3951 = vmul.f32 %v3945, 1.442695
    %v3952 = vpow.pop %v3951
    %v3953 = vmul.f32 %v3946, 1.442695
    %v3954 = vpow.pop %v3953
    %v3955 = vmul.f32 %v3947, 1.442695
    %v3956 = vpow.pop %v3955
    %v3957 = vmul.f32 %v3948, 1.442695
    %v3958 = vpow.pop %v3957
    %v3959 = vmul.f32 %v3949, 1.442695
    %v3960 = vpow.pop %v3959
    %v3961 = vmul.f32 %v3950, 1.442695
    %v3962 = vpow.pop %v3961
    %v3963 = vadd.f32 %v3952, 1.0
    %v3964 = vadd.f32 %v3954, 1.0
    %v3965 = vadd.f32 %v3956, 1.0
    %v3966 = vadd.f32 %v3958, 1.0
    %v3967 = vadd.f32 %v3960, 1.0
    %v3968 = vadd.f32 %v3962, 1.0
    %v3969 = vrcp.pop %v3963
    %v3970 = vmul.f32 1.0, %v3969
    %v3971 = vrcp.pop %v3964
    %v3972 = vmul.f32 1.0, %v3971
    %v3973 = vrcp.pop %v3965
    %v3974 = vmul.f32 1.0, %v3973
    %v3975 = vrcp.pop %v3966
    %v3976 = vmul.f32 1.0, %v3975
    %v3977 = vrcp.pop %v3967
    %v3978 = vmul.f32 1.0, %v3977
    %v3979 = vrcp.pop %v3968
    %v3980 = vmul.f32 1.0, %v3979
    %3981 = vst [vmem:[#allocation4] sm:$0xff] %v3970
    %3982 = vst [vmem:[#allocation4 + $0x8] sm:$0xff] %v3972
    %3983 = vst [vmem:[#allocation4 + $0x10] sm:$0xff] %v3974
    %3984 = vst [vmem:[#allocation4 + $0x18] sm:$0xff] %v3976
    %3985 = vst [vmem:[#allocation4 + $0x20] sm:$0xff] %v3978
    %3986 = vst [vmem:[#allocation4 + $0x28] sm:$0xff] %v3980
    // Predicated region
    $region70: #{tpu_custom_call.1} parent=1 // pred_check
      _
    $region71: #{tpu_custom_call.1} parent=1 // pred_check_branch
      %3988 = sbr.rel (0) target = $region73
    $region72: #{tpu_custom_call.1} parent=1 // pred_region
      %s3990 = ssub.s32 768, 768
      %3991 = vsyncadd [#allocation3], %s3990
      %s3992 = sshll.u32 [#allocation2], 4
      %s3993 = int_to_ptr.vmem [resolvable:$true] %s3992
      %3998 = dma.vmem_to_hbm [thread:$0]  %s3993, 768, %s17, [#allocation3], 128, 128, 8
    $region73: #{tpu_custom_call.1} parent=1 // pred_fallthru
      _
    // Predicated region
    $region74: #{tpu_custom_call.1} parent=1 // pred_check
      _
    $region75: #{tpu_custom_call.1} parent=1 // pred_check_branch
      %4000 = sbr.rel (0) target = $region77
    $region76: #{tpu_custom_call.1} parent=1 // pred_region
      %s4002 = ssub.s32 768, 768
      %4003 = vsyncadd [#allocation5], %s4002
      %s4004 = sshll.u32 [#allocation4], 4
      %s4005 = int_to_ptr.vmem [resolvable:$true] %s4004
      %4010 = dma.vmem_to_hbm [thread:$0]  %s4005, 768, %s18, [#allocation5], 128, 128, 8
    $region77: #{tpu_custom_call.1} parent=1 // pred_fallthru
      _
    // Predicated region
    $region78: #{tpu_custom_call.1} parent=1 // pred_check
      _
    $region79: #{tpu_custom_call.1} parent=1 // pred_check_branch
      %4012 = sbr.rel (0) target = $region81
    $region80: #{tpu_custom_call.1} parent=1 // pred_region
      %s4014 = ssub.s32 128, 128
      %4015 = vsyncadd [#allocation5], %s4014
      %s4017 = sshll.u32 [#allocation6], 4
      %s4018 = int_to_ptr.vmem [resolvable:$true] %s4017
      %4020 = dma.vmem_to_hbm [thread:$0]  %s4018, 128, %s19, [#allocation5]
    $region81: #{tpu_custom_call.1} parent=1 // pred_fallthru
      _
    // Predicated region
    $region82: #{tpu_custom_call.1} parent=1 // pred_check
      _
    $region83: #{tpu_custom_call.1} parent=1 // pred_check_branch
      %4022 = sbr.rel (0) target = $region85
    $region84: #{tpu_custom_call.1} parent=1 // pred_region
      %s4024 = ssub.s32 512, 512
      %4025 = vsyncadd [#allocation8], %s4024
      %s4026 = sshll.u32 [#allocation7], 4
      %s4027 = int_to_ptr.vmem [resolvable:$true] %s4026
      %4032 = dma.vmem_to_hbm [thread:$0]  %s4027, 512, %s20, [#allocation8], 128, 128, 8
    $region85: #{tpu_custom_call.1} parent=1 // pred_fallthru
      _
    // Predicated region
    $region86: #{tpu_custom_call.1} parent=1 // pred_check
      _
    $region87: #{tpu_custom_call.1} parent=1 // pred_check_branch
      %4034 = sbr.rel (0) target = $region89
    $region88: #{tpu_custom_call.1} parent=1 // pred_region
      %s4036 = ssub.s32 256, 256
      %4037 = vsyncadd [#allocation8], %s4036
      %s4038 = sshll.u32 [#allocation9], 4
      %s4039 = int_to_ptr.vmem [resolvable:$true] %s4038
      %4044 = dma.vmem_to_hbm [thread:$0]  %s4039, 256, %s21, [#allocation8], 128, 128, 8
    $region89: #{tpu_custom_call.1} parent=1 // pred_fallthru
      _
    // Predicated region
    $region90: #{tpu_custom_call.1} parent=1 // pred_check
      _
    $region91: #{tpu_custom_call.1} parent=1 // pred_check_branch
      %4046 = sbr.rel (0) target = $region93
    $region92: #{tpu_custom_call.1} parent=1 // pred_region
      %4047 = dma.done [#allocation3], 768
    $region93: #{tpu_custom_call.1} parent=1 // pred_fallthru
      _
    // Predicated region
    $region94: #{tpu_custom_call.1} parent=1 // pred_check
      _
    $region95: #{tpu_custom_call.1} parent=1 // pred_check_branch
      %4049 = sbr.rel (0) target = $region97
    $region96: #{tpu_custom_call.1} parent=1 // pred_region
      %4050 = dma.done [#allocation5], 768
    $region97: #{tpu_custom_call.1} parent=1 // pred_fallthru
      _
    // Predicated region
    $region98: #{tpu_custom_call.1} parent=1 // pred_check
      _
    $region99: #{tpu_custom_call.1} parent=1 // pred_check_branch
      %4052 = sbr.rel (0) target = $region101
    $region100: #{tpu_custom_call.1} parent=1 // pred_region
      %4053 = dma.done [#allocation5], 128
    $region101: #{tpu_custom_call.1} parent=1 // pred_fallthru
      _
    // Predicated region
    $region102: #{tpu_custom_call.1} parent=1 // pred_check
      _
    $region103: #{tpu_custom_call.1} parent=1 // pred_check_branch
      %4055 = sbr.rel (0) target = $region105
    $region104: #{tpu_custom_call.1} parent=1 // pred_region
      %4056 = dma.done [#allocation8], 512
    $region105: #{tpu_custom_call.1} parent=1 // pred_fallthru
      _
    // Predicated region
    $region106: #{tpu_custom_call.1} parent=1 // pred_check
      _
    $region107: #{tpu_custom_call.1} parent=1 // pred_check_branch
      %4058 = sbr.rel (0) target = $region109
    $region108: #{tpu_custom_call.1} parent=1 // pred_region
      %4059 = dma.done [#allocation8], 256
    $region109: #{tpu_custom_call.1} parent=1 // pred_fallthru
      _
    %4060 = vsyncpa [#allocation3], 1
    %4061 = vsyncpa [#allocation5], 1
    %4062 = vsyncpa [#allocation8], 1

</llo_original>
